<compile_context>
chip_gen: v5e
topology: v5e:2x2
jax: 0.10.0
libtpu: 0.0.40
codegen_flags: <defaults>
</compile_context>

<pallas_src>
import functools
from types import SimpleNamespace

import jax
import jax.numpy as jnp
from jax import lax
from jax.experimental import pallas as pl
from jax.experimental.pallas import tpu as pltpu


# ----------------------------------------------------------------------------
# Mega kernel: stem ConvBlock prologue + per-sample channel masks + all residual
# 3x3 ConvBlocks (one K-stacked matmul each) + global mean + MLPBlock + Linear.
# grid = (num_samples,), one step per structure sample.
# ----------------------------------------------------------------------------
def _mega_kernel(cols_ref, wm_ref, s0_ref, b0_ref, z_ref, wc_ref, sb_ref,
                 imask_ref, pm_ref, w1_ref, b1_ref, w2_ref, b2_ref,
                 out_ref, a_scr, *, n_res, C, Wp, Rp, guard):
    f32 = jnp.float32

    # Halo rows must be finite zero (they feed the di=+-1 shifted views).  The
    # interior is fully overwritten below, so only the 2*guard rows are zeroed.
    a_scr[0:guard, :] = jnp.zeros((guard, C), f32)
    a_scr[guard + Rp:guard + Rp + guard, :] = jnp.zeros((guard, C), f32)

    # ---- stem ConvBlock: 5x5 VALID conv + folded BN + ReLU as one matmul on the
    # quadrant-ordered im2col; the 2x2 maxpool is an elementwise max of the four
    # aligned row blocks and lands directly in the padded (B, Hp, Wp) row layout.
    y0 = jnp.dot(cols_ref[...], wm_ref[...], preferred_element_type=f32)
    y0 = jnp.maximum(y0 * s0_ref[...] + b0_ref[...], 0.0)
    pooled0 = jnp.maximum(
        jnp.maximum(y0[0 * Rp:1 * Rp, :], y0[1 * Rp:2 * Rp, :]),
        jnp.maximum(y0[2 * Rp:3 * Rp, :], y0[3 * Rp:4 * Rp, :]))
    z0 = z_ref[0, :, 0:C]                                       # (1, C) layer-0 mask
    a_scr[guard:guard + Rp, :] = pooled0 * imask_ref[...] * z0

    # ---- residual 3x3 ConvBlocks: one (Rp, 9C) x (9C, C) matmul per layer.
    # di shifts (+-Wp rows) are sublane-aligned slices; dj shifts (+-1 row) are
    # XLU rolls.  Wrapped edge rows only feed outputs that imask zeroes below.
    taps = [(di, dj) for di in (-1, 0, 1) for dj in (-1, 0, 1)]
    for l in range(n_res):
        # TODO(synk): for large truncation_level switch this unrolled Python loop
        # to lax.fori_loop(..., unroll=True) and set vmem_limit_bytes explicitly.
        v = {di: a_scr[guard + di * Wp:guard + di * Wp + Rp, :]
             for di in (-1, 0, 1)}
        xs = [v[di] if dj == 0 else pltpu.roll(v[di], shift=(-dj) % Rp, axis=0)
              for (di, dj) in taps]
        x_stk = jnp.concatenate(xs, axis=1).astype(jnp.bfloat16)    # (Rp, 9*C)
        wl = wc_ref[l * 9 * C:(l + 1) * 9 * C, :]                   # (9*C, C) bf16
        acc = jnp.dot(x_stk, wl, preferred_element_type=f32)        # f32 accumulate
        scale = sb_ref[2 * l:2 * l + 1, :]                          # folded BN
        bias = sb_ref[2 * l + 1:2 * l + 2, :]
        y = jnp.maximum(acc * scale + bias, 0.0)
        zl = z_ref[0, :, (l + 1) * C:(l + 2) * C]                   # (1, C) mask
        a_scr[guard:guard + Rp, :] = (
            (y * zl + a_scr[guard:guard + Rp, :]) * imask_ref[...])

    # ---- epilogue: global spatial mean + MLPBlock(residual) + Linear head.
    a_fin = a_scr[guard:guard + Rp, :]
    pooled = jnp.dot(pm_ref[...], a_fin, preferred_element_type=f32)    # (8, C)
    hid = jnp.maximum(
        jnp.dot(pooled, w1_ref[...], preferred_element_type=f32) + b1_ref[...],
        0.0) + pooled
    logits = jnp.dot(hid, w2_ref[...], preferred_element_type=f32) + b2_ref[...]
    out_ref[0, :, :] = logits           # full (8, 128) lane-dense unmasked store


def mega_forward(cols, prep, *, cfg):
    S, B, C = cfg.num_samples, cfg.batch, cfg.channels
    NCp = cfg.nc_pad
    Hp, Wp = cfg.H + 2, cfg.W + 2
    Rp = B * Hp * Wp
    L = cfg.truncation_level
    assert Wp % 8 == 0 and Rp % 8 == 0, "aligned-slice scheme needs Wp, Rp % 8 == 0"
    assert B <= 8
    guard = Wp                       # derived: covers the +-Wp row-shifted views

    kernel = functools.partial(_mega_kernel, n_res=L - 1, C=C, Wp=Wp, Rp=Rp,
                               guard=guard)
    wm, s0, b0 = prep["wm"], prep["s0"], prep["b0"]
    z3, wc, sb = prep["z3"], prep["wc"], prep["sb"]
    imask, pm = prep["imask"], prep["pm"]
    w1, b1, w2, b2 = prep["w1"], prep["b1"], prep["w2"], prep["b2"]

    return pl.pallas_call(
        kernel,
        out_shape=jax.ShapeDtypeStruct((S, 8, NCp), jnp.float32),
        grid_spec=pltpu.PrefetchScalarGridSpec(
            num_scalar_prefetch=0,
            grid=(S,),
            in_specs=[
                pl.BlockSpec(cols.shape, lambda s: (0, 0)),        # stem im2col
                pl.BlockSpec(wm.shape, lambda s: (0, 0)),          # stem weight
                pl.BlockSpec(s0.shape, lambda s: (0, 0)),          # stem BN scale
                pl.BlockSpec(b0.shape, lambda s: (0, 0)),          # stem BN bias
                pl.BlockSpec((1, 1, z3.shape[-1]),
                             lambda s: (s, 0, 0)),                 # per-sample masks
                pl.BlockSpec(wc.shape, lambda s: (0, 0)),          # conv weight slab (bf16)
                pl.BlockSpec(sb.shape, lambda s: (0, 0)),          # folded BN scale/bias
                pl.BlockSpec(imask.shape, lambda s: (0, 0)),       # interior mask
                pl.BlockSpec(pm.shape, lambda s: (0, 0)),          # mean-pool matrix
                pl.BlockSpec(w1.shape, lambda s: (0, 0)),
                pl.BlockSpec(b1.shape, lambda s: (0, 0)),
                pl.BlockSpec(w2.shape, lambda s: (0, 0)),
                pl.BlockSpec(b2.shape, lambda s: (0, 0)),
            ],
            out_specs=pl.BlockSpec((1, 8, NCp), lambda s: (s, 0, 0)),
            scratch_shapes=[pltpu.VMEM((2 * guard + Rp, C), jnp.float32)],
        ),
        compiler_params=pltpu.CompilerParams(
            dimension_semantics=("parallel",)),
    )(cols, wm, s0, b0, z3, wc, sb, imask, pm, w1, b1, w2, b2)


# ----------------------------------------------------------------------------
# Parameter-only preprocessing (hoisted out of the forward, run once)
# ----------------------------------------------------------------------------
def bn_fold(gamma, beta, rmean, rvar, eps=1e-5):
    scale = gamma / jnp.sqrt(rvar + eps)
    return scale, beta - rmean * scale


def prepare_params(params, *, cfg):
    C, NC, L = cfg.channels, cfg.num_classes, cfg.truncation_level
    Cin, K0 = cfg.input_channels, cfg.stem_kernel
    B, H, W = cfg.batch, cfg.H, cfg.W
    Hp, Wp = H + 2, W + 2
    assert L >= 2, "demo assumes at least one residual ConvBlock"

    # stem: 5x5 conv weight -> matmul weight in im2col (dy, dx, cin) order, K->128
    w0 = params["layers"][0]["conv_w"]                              # (C, Cin, K0, K0)
    wm = jnp.transpose(w0, (2, 3, 1, 0)).reshape(K0 * K0 * Cin, C)
    wm = jnp.pad(wm, ((0, cfg.stem_kpad - wm.shape[0]), (0, 0)))
    s0, b0 = bn_fold(*params["layers"][0]["bn"])

    # residual layers: per-tap (Cin -> Cout) blocks stacked along K so each layer
    # is ONE matmul; stored bf16 for MXU throughput (accumulation stays f32).
    wc, sb = [], []
    for l in range(1, L):
        w = params["layers"][l]["conv_w"]                           # (C, C, 3, 3)
        for dy in range(3):
            for dx in range(3):
                wc.append(jnp.transpose(w[:, :, dy, dx]))           # (Cin, Cout)
        s, b = bn_fold(*params["layers"][l]["bn"])
        sb.append(s)
        sb.append(b)
    wc = jnp.concatenate(wc, axis=0).astype(jnp.bfloat16)           # ((L-1)*9*C, C)
    sb = jnp.stack(sb, axis=0)                                      # (2*(L-1), C)

    # per-sample per-layer channel masks, laid out (S, 1, L*C)
    z3 = jnp.transpose(params["Z"], (0, 2, 1)).reshape(cfg.num_samples, 1, L * C)

    # interior mask (zero spatial-padding rows) + mean-pool matrix
    ii = jnp.arange(Hp)[:, None]
    jj = jnp.arange(Wp)[None, :]
    interior = ((ii >= 1) & (ii <= H) & (jj >= 1) & (jj <= W)).astype(jnp.float32)
    interior = interior.reshape(-1)                                  # (Hp*Wp,)
    imask = jnp.tile(interior, B).reshape(B * Hp * Wp, 1)
    bpad = 8
    pm = jnp.zeros((bpad, B, Hp * Wp), jnp.float32)
    pm = pm.at[jnp.arange(B), jnp.arange(B), :].set(interior / float(H * W))
    pm = pm.reshape(bpad, B * Hp * Wp)

    # head (MLPBlock + Linear); classifier padded to 128 lanes for a lane-dense store
    w1 = jnp.transpose(params["mlp_w"])                              # (C, C)
    b1 = params["mlp_b"].reshape(1, C)
    w2 = jnp.pad(jnp.transpose(params["lin_w"]), ((0, 0), (0, cfg.nc_pad - NC)))
    b2 = jnp.pad(params["lin_b"], (0, cfg.nc_pad - NC)).reshape(1, cfg.nc_pad)

    return dict(wm=wm, s0=s0.reshape(1, C), b0=b0.reshape(1, C),
                wc=wc, sb=sb, z3=z3, imask=imask, pm=pm,
                w1=w1, b1=b1, w2=w2, b2=b2)


# ----------------------------------------------------------------------------
# Forward: im2col layout prep (XLA glue on the tiny raw input) + ONE pallas_call
# ----------------------------------------------------------------------------
def im2col_valid_4d(x_nhwc, k):
    B, H, W, Cin = x_nhwc.shape
    Ho, Wo = H - k + 1, W - k + 1
    cols = [x_nhwc[:, dy:dy + Ho, dx:dx + Wo, :] for dy in range(k) for dx in range(k)]
    return jnp.concatenate(cols, axis=-1)                            # (B, Ho, Wo, k*k*Cin)


def adaptive_convnet_forward(prep, x_nchw, *, cfg):
    B, K0 = cfg.batch, cfg.stem_kernel
    H, W = cfg.H, cfg.W                                              # post-pool spatial
    Hp, Wp = H + 2, W + 2
    x = jnp.transpose(x_nchw, (0, 2, 3, 1)).astype(jnp.float32)      # NCHW -> NHWC

    # Quadrant-ordered, spatially padded stem im2col: the 4 maxpool quadrants are
    # contiguous row blocks, each already in the padded (B, Hp, Wp) row layout the
    # kernel consumes, so pool + pad + reshape are all fused into the kernel.
    im = im2col_valid_4d(x, K0)                                      # (B, 2H, 2W, Kc)
    Kc = im.shape[-1]
    im = im.reshape(B, H, 2, W, 2, Kc)
    im = jnp.transpose(im, (2, 4, 0, 1, 3, 5))                       # (2, 2, B, H, W, Kc)
    im = jnp.pad(im, ((0, 0), (0, 0), (0, 0), (1, 1), (1, 1), (0, 0)))
    cols = im.reshape(4 * B * Hp * Wp, Kc)
    cols = jnp.pad(cols, ((0, 0), (0, cfg.stem_kpad - Kc)))

    out = mega_forward(cols, prep, cfg=cfg)                          # (S, 8, 128)
    return out[:, :B, :cfg.num_classes]


# ----------------------------------------------------------------------------
# Pure-JAX reference (same assumed ConvBlock / MLPBlock / sampler semantics)
# ----------------------------------------------------------------------------
def forward_ref(params, x_nchw, num_samples):
    x = jnp.transpose(x_nchw, (0, 2, 3, 1)).astype(jnp.float32)
    Z, L = params["Z"], params["threshold"]
    outs = []
    for s in range(num_samples):
        a = x
        for l in range(L):
            p = params["layers"][l]
            scale, bias = bn_fold(*p["bn"])
            pad = "VALID" if l == 0 else "SAME"
            y = lax.conv_general_dilated(
                a, jnp.transpose(p["conv_w"], (2, 3, 1, 0)), (1, 1), pad,
                dimension_numbers=("NHWC", "HWIO", "NHWC"),
                precision=lax.Precision.HIGHEST)
            y = jnp.maximum(y * scale + bias, 0.0)
            if l == 0:
                Bb, Hh, Ww, Cc = y.shape
                y = y.reshape(Bb, Hh // 2, 2, Ww // 2, 2, Cc).max(axis=(2, 4))
            y = y * Z[s, :, l]
            if l > 0:
                y = y + a
            a = y
        pooled = a.mean(axis=(1, 2))
        hid = jnp.maximum(
            jnp.dot(pooled, params["mlp_w"].T, precision=lax.Precision.HIGHEST)
            + params["mlp_b"], 0.0) + pooled
        logits = jnp.dot(hid, params["lin_w"].T,
                         precision=lax.Precision.HIGHEST) + params["lin_b"]
        outs.append(logits)
    return jnp.stack(outs, axis=0)


# ----------------------------------------------------------------------------
# Deterministic parameter init (shapes implied by AdaptiveConvNet.__init__)
# ----------------------------------------------------------------------------
def init_params(key, *, cfg):
    keys = iter(jax.random.split(key, 64))
    C, Cin, L = cfg.channels, cfg.input_channels, cfg.truncation_level

    def nrm(shape, s=0.05):
        return (s * jax.random.normal(next(keys), shape)).astype(jnp.float32)

    def bn():
        g = jax.random.uniform(next(keys), (C,), minval=0.5, maxval=1.5).astype(jnp.float32)
        b = nrm((C,), 0.1)
        rm = nrm((C,), 0.1)
        rv = jax.random.uniform(next(keys), (C,), minval=0.5, maxval=1.5).astype(jnp.float32)
        return (g, b, rm, rv)

    layers = [{"conv_w": nrm((C, Cin, cfg.stem_kernel, cfg.stem_kernel), 0.1), "bn": bn()}]
    for _ in range(1, L):
        layers.append({"conv_w": nrm((C, C, 3, 3)), "bn": bn()})

    return {
        "layers": layers,
        "mlp_w": nrm((C, C)), "mlp_b": nrm((C,), 0.1),
        "lin_w": nrm((cfg.num_classes, C), 0.05), "lin_b": nrm((cfg.num_classes,), 0.1),
        # TODO(synk): NetworkStructureSampler stub -- fixed Bernoulli Z, threshold = truncation_level.
        "Z": jax.random.bernoulli(
            next(keys), 0.7,
            (cfg.num_samples, C, L)).astype(jnp.float32),
        "threshold": L,
    }


if __name__ == "__main__":
    cfg = SimpleNamespace(
        batch=2, input_channels=3, img=16,
        channels=64, num_classes=10,
        truncation_level=3, num_samples=2,
        stem_kernel=5)
    cfg.H = cfg.W = (cfg.img - cfg.stem_kernel + 1) // 2   # post-stem spatial = 6
    cfg.stem_kpad = 128                                    # padded K for stem matmul
    cfg.nc_pad = 128                                       # padded class dim (lane-dense out)

    key = jax.random.PRNGKey(0)
    pkey, xkey = jax.random.split(key)
    params = init_params(pkey, cfg=cfg)
    x = jax.random.normal(
        xkey, (cfg.batch, cfg.input_channels, cfg.img, cfg.img), jnp.float32)

    prep = prepare_params(params, cfg=cfg)                 # hoisted, runs once
    fwd = jax.jit(functools.partial(adaptive_convnet_forward, cfg=cfg))
    out = jax.block_until_ready(fwd(prep, x))

    ref = forward_ref(params, x, cfg.num_samples)
    assert out.shape == (cfg.num_samples, cfg.batch, cfg.num_classes)
    assert bool(jnp.all(jnp.isfinite(out)))
    err = float(jnp.max(jnp.abs(out - ref)))
    # Tolerance sized for bf16 MXU operands (f32 accumulation) in the conv body.
    assert bool(jnp.allclose(out, ref, rtol=2e-2, atol=2e-2)), err
    print("KERNEL_OK")
</pallas_src>

<mosaic_0001>
module attributes {stable_mosaic.version = 11 : i64} {
  func.func @_mega_kernel(%arg0: i32, %arg1: memref<512x128xf32, #tpu.memory_space<vmem>>, %arg2: memref<128x64xf32, #tpu.memory_space<vmem>>, %arg3: memref<1x64xf32, #tpu.memory_space<vmem>>, %arg4: memref<1x64xf32, #tpu.memory_space<vmem>>, %arg5: memref<1x1x192xf32, #tpu.memory_space<vmem>>, %arg6: memref<1152x64xbf16, #tpu.memory_space<vmem>>, %arg7: memref<4x64xf32, #tpu.memory_space<vmem>>, %arg8: memref<128x1xf32, #tpu.memory_space<vmem>>, %arg9: memref<8x128xf32, #tpu.memory_space<vmem>>, %arg10: memref<64x64xf32, #tpu.memory_space<vmem>>, %arg11: memref<1x64xf32, #tpu.memory_space<vmem>>, %arg12: memref<64x128xf32, #tpu.memory_space<vmem>>, %arg13: memref<1x128xf32, #tpu.memory_space<vmem>>, %arg14: memref<1x8x128xf32, #tpu.memory_space<vmem>>, %arg15: memref<144x64xf32, #tpu.memory_space<vmem>>) attributes {dimension_semantics = [#tpu.dimension_semantics<parallel>], iteration_bounds = array<i64: 2>, scalar_prefetch = 0 : i64, scratch_operands = 1 : i64, tpu.core_type = #tpu.core_type<tc>, window_params = [{pipeline_mode = #tpu.pipeline_mode<synchronous>, transform_indices = @transform_0, window_bounds = array<i64: 512, 128>}, {pipeline_mode = #tpu.pipeline_mode<synchronous>, transform_indices = @transform_1, window_bounds = array<i64: 128, 64>}, {pipeline_mode = #tpu.pipeline_mode<synchronous>, transform_indices = @transform_2, window_bounds = array<i64: 1, 64>}, {pipeline_mode = #tpu.pipeline_mode<synchronous>, transform_indices = @transform_3, window_bounds = array<i64: 1, 64>}, {transform_indices = @transform_4, window_bounds = array<i64: 1, 1, 192>}, {pipeline_mode = #tpu.pipeline_mode<synchronous>, transform_indices = @transform_5, window_bounds = array<i64: 1152, 64>}, {pipeline_mode = #tpu.pipeline_mode<synchronous>, transform_indices = @transform_6, window_bounds = array<i64: 4, 64>}, {pipeline_mode = #tpu.pipeline_mode<synchronous>, transform_indices = @transform_7, window_bounds = array<i64: 128, 1>}, {pipeline_mode = #tpu.pipeline_mode<synchronous>, transform_indices = @transform_8, window_bounds = array<i64: 8, 128>}, {pipeline_mode = #tpu.pipeline_mode<synchronous>, transform_indices = @transform_9, window_bounds = array<i64: 64, 64>}, {pipeline_mode = #tpu.pipeline_mode<synchronous>, transform_indices = @transform_10, window_bounds = array<i64: 1, 64>}, {pipeline_mode = #tpu.pipeline_mode<synchronous>, transform_indices = @transform_11, window_bounds = array<i64: 64, 128>}, {pipeline_mode = #tpu.pipeline_mode<synchronous>, transform_indices = @transform_12, window_bounds = array<i64: 1, 128>}, {transform_indices = @transform_13, window_bounds = array<i64: 1, 8, 128>}]} {
    %cst = arith.constant 0.000000e+00 : f32
    %0 = vector.broadcast %cst : f32 to vector<8x64xf32>
    %c0 = arith.constant 0 : index
    %c0_0 = arith.constant 0 : index
    %1 = vector.load %arg15[%c0, %c0_0] : memref<144x64xf32, #tpu.memory_space<vmem>>, vector<8x64xf32>
    tpu.vector_store %arg15[%c0, %c0_0], %0 {strides = array<i32>} : memref<144x64xf32, #tpu.memory_space<vmem>>, vector<8x64xf32>,
    %cst_1 = arith.constant 0.000000e+00 : f32
    %2 = vector.broadcast %cst_1 : f32 to vector<8x64xf32>
    %c136 = arith.constant 136 : index
    %c0_2 = arith.constant 0 : index
    %3 = vector.load %arg15[%c136, %c0_2] : memref<144x64xf32, #tpu.memory_space<vmem>>, vector<8x64xf32>
    tpu.vector_store %arg15[%c136, %c0_2], %2 {strides = array<i32>} : memref<144x64xf32, #tpu.memory_space<vmem>>, vector<8x64xf32>,
    %c0_3 = arith.constant 0 : index
    %c0_4 = arith.constant 0 : index
    %4 = vector.load %arg1[%c0_3, %c0_4] : memref<512x128xf32, #tpu.memory_space<vmem>>, vector<512x128xf32>
    %c0_5 = arith.constant 0 : index
    %c0_6 = arith.constant 0 : index
    %5 = vector.load %arg2[%c0_5, %c0_6] : memref<128x64xf32, #tpu.memory_space<vmem>>, vector<128x64xf32>
    %cst_7 = arith.constant dense<0.000000e+00> : vector<512x64xf32>
    %6 = tpu.matmul %4, %5, %cst_7 {dimension_numbers = #tpu.dot_dimension_numbers<[1], [0], [0], [1], [0, 0, 1, 1], [], []>} : vector<512x128xf32>, vector<128x64xf32>, vector<512x64xf32> -> vector<512x64xf32>
    %c0_8 = arith.constant 0 : index
    %c0_9 = arith.constant 0 : index
    %7 = vector.load %arg3[%c0_8, %c0_9] : memref<1x64xf32, #tpu.memory_space<vmem>>, vector<1x64xf32>
    %8 = vector.broadcast %7 : vector<1x64xf32> to vector<512x64xf32>
    %9 = arith.mulf %6, %8 : vector<512x64xf32>
    %c0_10 = arith.constant 0 : index
    %c0_11 = arith.constant 0 : index
    %10 = vector.load %arg4[%c0_10, %c0_11] : memref<1x64xf32, #tpu.memory_space<vmem>>, vector<1x64xf32>
    %11 = vector.broadcast %10 : vector<1x64xf32> to vector<512x64xf32>
    %12 = arith.addf %9, %11 : vector<512x64xf32>
    %cst_12 = arith.constant 0.000000e+00 : f32
    %13 = vector.broadcast %cst_12 : f32 to vector<512x64xf32>
    %14 = arith.maximumf %12, %13 : vector<512x64xf32>
    %15 = vector.extract_strided_slice %14 {offsets = [0, 0], sizes = [128, 64], strides = [1, 1]} : vector<512x64xf32> to vector<128x64xf32>
    %16 = vector.extract_strided_slice %14 {offsets = [128, 0], sizes = [128, 64], strides = [1, 1]} : vector<512x64xf32> to vector<128x64xf32>
    %17 = arith.maximumf %15, %16 : vector<128x64xf32>
    %18 = vector.extract_strided_slice %14 {offsets = [256, 0], sizes = [128, 64], strides = [1, 1]} : vector<512x64xf32> to vector<128x64xf32>
    %19 = vector.extract_strided_slice %14 {offsets = [384, 0], sizes = [128, 64], strides = [1, 1]} : vector<512x64xf32> to vector<128x64xf32>
    %20 = arith.maximumf %18, %19 : vector<128x64xf32>
    %21 = arith.maximumf %17, %20 : vector<128x64xf32>
    %c0_13 = arith.constant 0 : index
    %c0_14 = arith.constant 0 : index
    %c0_15 = arith.constant 0 : index
    %22 = vector.load %arg5[%c0_13, %c0_14, %c0_15] : memref<1x1x192xf32, #tpu.memory_space<vmem>>, vector<1x1x64xf32>
    %23 = vector.shape_cast %22 : vector<1x1x64xf32> to vector<1x64xf32>
    %c0_16 = arith.constant 0 : index
    %c0_17 = arith.constant 0 : index
    %24 = vector.load %arg8[%c0_16, %c0_17] : memref<128x1xf32, #tpu.memory_space<vmem>>, vector<128x1xf32>
    %25 = vector.broadcast %24 : vector<128x1xf32> to vector<128x64xf32>
    %26 = arith.mulf %21, %25 : vector<128x64xf32>
    %27 = vector.broadcast %23 : vector<1x64xf32> to vector<128x64xf32>
    %28 = arith.mulf %26, %27 : vector<128x64xf32>
    %c8 = arith.constant 8 : index
    %c0_18 = arith.constant 0 : index
    %29 = vector.load %arg15[%c8, %c0_18] : memref<144x64xf32, #tpu.memory_space<vmem>>, vector<128x64xf32>
    tpu.vector_store %arg15[%c8, %c0_18], %28 {strides = array<i32>} : memref<144x64xf32, #tpu.memory_space<vmem>>, vector<128x64xf32>,
    %c0_19 = arith.constant 0 : index
    %c0_20 = arith.constant 0 : index
    %30 = vector.load %arg15[%c0_19, %c0_20] : memref<144x64xf32, #tpu.memory_space<vmem>>, vector<128x64xf32>
    %c8_21 = arith.constant 8 : index
    %c0_22 = arith.constant 0 : index
    %31 = vector.load %arg15[%c8_21, %c0_22] : memref<144x64xf32, #tpu.memory_space<vmem>>, vector<128x64xf32>
    %c16 = arith.constant 16 : index
    %c0_23 = arith.constant 0 : index
    %32 = vector.load %arg15[%c16, %c0_23] : memref<144x64xf32, #tpu.memory_space<vmem>>, vector<128x64xf32>
    %c1_i32 = arith.constant 1 : i32
    %33 = tpu.dynamic_rotate %30 by %c1_i32 dim 0 : vector<128x64xf32>, i32 -> vector<128x64xf32>
    %c127_i32 = arith.constant 127 : i32
    %34 = tpu.dynamic_rotate %30 by %c127_i32 dim 0 : vector<128x64xf32>, i32 -> vector<128x64xf32>
    %c1_i32_24 = arith.constant 1 : i32
    %35 = tpu.dynamic_rotate %31 by %c1_i32_24 dim 0 : vector<128x64xf32>, i32 -> vector<128x64xf32>
    %c127_i32_25 = arith.constant 127 : i32
    %36 = tpu.dynamic_rotate %31 by %c127_i32_25 dim 0 : vector<128x64xf32>, i32 -> vector<128x64xf32>
    %c1_i32_26 = arith.constant 1 : i32
    %37 = tpu.dynamic_rotate %32 by %c1_i32_26 dim 0 : vector<128x64xf32>, i32 -> vector<128x64xf32>
    %c127_i32_27 = arith.constant 127 : i32
    %38 = tpu.dynamic_rotate %32 by %c127_i32_27 dim 0 : vector<128x64xf32>, i32 -> vector<128x64xf32>
    %39 = tpu.concatenate %33, %30, %34, %35, %31, %36, %37, %32, %38 in 1 : vector<128x64xf32>, vector<128x64xf32>, vector<128x64xf32>, vector<128x64xf32>, vector<128x64xf32>, vector<128x64xf32>, vector<128x64xf32>, vector<128x64xf32>, vector<128x64xf32> -> vector<128x576xf32>
    %40 = arith.truncf %39 : vector<128x576xf32> to vector<128x576xbf16>
    %c0_28 = arith.constant 0 : index
    %c0_29 = arith.constant 0 : index
    %41 = vector.load %arg6[%c0_28, %c0_29] : memref<1152x64xbf16, #tpu.memory_space<vmem>>, vector<576x64xbf16>
    %cst_30 = arith.constant dense<0.000000e+00> : vector<128x64xf32>
    %42 = tpu.matmul %40, %41, %cst_30 {dimension_numbers = #tpu.dot_dimension_numbers<[1], [0], [0], [1], [0, 0, 1, 1], [], []>} : vector<128x576xbf16>, vector<576x64xbf16>, vector<128x64xf32> -> vector<128x64xf32>
    %c0_31 = arith.constant 0 : index
    %c0_32 = arith.constant 0 : index
    %43 = vector.load %arg7[%c0_31, %c0_32] : memref<4x64xf32, #tpu.memory_space<vmem>>, vector<1x64xf32>
    %c1 = arith.constant 1 : index
    %c0_33 = arith.constant 0 : index
    %44 = vector.load %arg7[%c1, %c0_33] : memref<4x64xf32, #tpu.memory_space<vmem>>, vector<1x64xf32>
    %45 = vector.broadcast %43 : vector<1x64xf32> to vector<128x64xf32>
    %46 = arith.mulf %42, %45 : vector<128x64xf32>
    %47 = vector.broadcast %44 : vector<1x64xf32> to vector<128x64xf32>
    %48 = arith.addf %46, %47 : vector<128x64xf32>
    %cst_34 = arith.constant 0.000000e+00 : f32
    %49 = vector.broadcast %cst_34 : f32 to vector<128x64xf32>
    %50 = arith.maximumf %48, %49 : vector<128x64xf32>
    %c0_35 = arith.constant 0 : index
    %c0_36 = arith.constant 0 : index
    %c64 = arith.constant 64 : index
    %51 = vector.load %arg5[%c0_35, %c0_36, %c64] : memref<1x1x192xf32, #tpu.memory_space<vmem>>, vector<1x1x64xf32>
    %52 = vector.shape_cast %51 : vector<1x1x64xf32> to vector<1x64xf32>
    %53 = vector.broadcast %52 : vector<1x64xf32> to vector<128x64xf32>
    %54 = arith.mulf %50, %53 : vector<128x64xf32>
    %c8_37 = arith.constant 8 : index
    %c0_38 = arith.constant 0 : index
    %55 = vector.load %arg15[%c8_37, %c0_38] : memref<144x64xf32, #tpu.memory_space<vmem>>, vector<128x64xf32>
    %56 = arith.addf %54, %55 : vector<128x64xf32>
    %c0_39 = arith.constant 0 : index
    %c0_40 = arith.constant 0 : index
    %57 = vector.load %arg8[%c0_39, %c0_40] : memref<128x1xf32, #tpu.memory_space<vmem>>, vector<128x1xf32>
    %58 = vector.broadcast %57 : vector<128x1xf32> to vector<128x64xf32>
    %59 = arith.mulf %56, %58 : vector<128x64xf32>
    %c8_41 = arith.constant 8 : index
    %c0_42 = arith.constant 0 : index
    %60 = vector.load %arg15[%c8_41, %c0_42] : memref<144x64xf32, #tpu.memory_space<vmem>>, vector<128x64xf32>
    tpu.vector_store %arg15[%c8_41, %c0_42], %59 {strides = array<i32>} : memref<144x64xf32, #tpu.memory_space<vmem>>, vector<128x64xf32>,
    %c0_43 = arith.constant 0 : index
    %c0_44 = arith.constant 0 : index
    %61 = vector.load %arg15[%c0_43, %c0_44] : memref<144x64xf32, #tpu.memory_space<vmem>>, vector<128x64xf32>
    %c8_45 = arith.constant 8 : index
    %c0_46 = arith.constant 0 : index
    %62 = vector.load %arg15[%c8_45, %c0_46] : memref<144x64xf32, #tpu.memory_space<vmem>>, vector<128x64xf32>
    %c16_47 = arith.constant 16 : index
    %c0_48 = arith.constant 0 : index
    %63 = vector.load %arg15[%c16_47, %c0_48] : memref<144x64xf32, #tpu.memory_space<vmem>>, vector<128x64xf32>
    %c1_i32_49 = arith.constant 1 : i32
    %64 = tpu.dynamic_rotate %61 by %c1_i32_49 dim 0 : vector<128x64xf32>, i32 -> vector<128x64xf32>
    %c127_i32_50 = arith.constant 127 : i32
    %65 = tpu.dynamic_rotate %61 by %c127_i32_50 dim 0 : vector<128x64xf32>, i32 -> vector<128x64xf32>
    %c1_i32_51 = arith.constant 1 : i32
    %66 = tpu.dynamic_rotate %62 by %c1_i32_51 dim 0 : vector<128x64xf32>, i32 -> vector<128x64xf32>
    %c127_i32_52 = arith.constant 127 : i32
    %67 = tpu.dynamic_rotate %62 by %c127_i32_52 dim 0 : vector<128x64xf32>, i32 -> vector<128x64xf32>
    %c1_i32_53 = arith.constant 1 : i32
    %68 = tpu.dynamic_rotate %63 by %c1_i32_53 dim 0 : vector<128x64xf32>, i32 -> vector<128x64xf32>
    %c127_i32_54 = arith.constant 127 : i32
    %69 = tpu.dynamic_rotate %63 by %c127_i32_54 dim 0 : vector<128x64xf32>, i32 -> vector<128x64xf32>
    %70 = tpu.concatenate %64, %61, %65, %66, %62, %67, %68, %63, %69 in 1 : vector<128x64xf32>, vector<128x64xf32>, vector<128x64xf32>, vector<128x64xf32>, vector<128x64xf32>, vector<128x64xf32>, vector<128x64xf32>, vector<128x64xf32>, vector<128x64xf32> -> vector<128x576xf32>
    %71 = arith.truncf %70 : vector<128x576xf32> to vector<128x576xbf16>
    %c576 = arith.constant 576 : index
    %c0_55 = arith.constant 0 : index
    %72 = vector.load %arg6[%c576, %c0_55] : memref<1152x64xbf16, #tpu.memory_space<vmem>>, vector<576x64xbf16>
    %cst_56 = arith.constant dense<0.000000e+00> : vector<128x64xf32>
    %73 = tpu.matmul %71, %72, %cst_56 {dimension_numbers = #tpu.dot_dimension_numbers<[1], [0], [0], [1], [0, 0, 1, 1], [], []>} : vector<128x576xbf16>, vector<576x64xbf16>, vector<128x64xf32> -> vector<128x64xf32>
    %c2 = arith.constant 2 : index
    %c0_57 = arith.constant 0 : index
    %74 = vector.load %arg7[%c2, %c0_57] : memref<4x64xf32, #tpu.memory_space<vmem>>, vector<1x64xf32>
    %c3 = arith.constant 3 : index
    %c0_58 = arith.constant 0 : index
    %75 = vector.load %arg7[%c3, %c0_58] : memref<4x64xf32, #tpu.memory_space<vmem>>, vector<1x64xf32>
    %76 = vector.broadcast %74 : vector<1x64xf32> to vector<128x64xf32>
    %77 = arith.mulf %73, %76 : vector<128x64xf32>
    %78 = vector.broadcast %75 : vector<1x64xf32> to vector<128x64xf32>
    %79 = arith.addf %77, %78 : vector<128x64xf32>
    %cst_59 = arith.constant 0.000000e+00 : f32
    %80 = vector.broadcast %cst_59 : f32 to vector<128x64xf32>
    %81 = arith.maximumf %79, %80 : vector<128x64xf32>
    %c0_60 = arith.constant 0 : index
    %c0_61 = arith.constant 0 : index
    %c128 = arith.constant 128 : index
    %82 = vector.load %arg5[%c0_60, %c0_61, %c128] : memref<1x1x192xf32, #tpu.memory_space<vmem>>, vector<1x1x64xf32>
    %83 = vector.shape_cast %82 : vector<1x1x64xf32> to vector<1x64xf32>
    %84 = vector.broadcast %83 : vector<1x64xf32> to vector<128x64xf32>
    %85 = arith.mulf %81, %84 : vector<128x64xf32>
    %c8_62 = arith.constant 8 : index
    %c0_63 = arith.constant 0 : index
    %86 = vector.load %arg15[%c8_62, %c0_63] : memref<144x64xf32, #tpu.memory_space<vmem>>, vector<128x64xf32>
    %87 = arith.addf %85, %86 : vector<128x64xf32>
    %c0_64 = arith.constant 0 : index
    %c0_65 = arith.constant 0 : index
    %88 = vector.load %arg8[%c0_64, %c0_65] : memref<128x1xf32, #tpu.memory_space<vmem>>, vector<128x1xf32>
    %89 = vector.broadcast %88 : vector<128x1xf32> to vector<128x64xf32>
    %90 = arith.mulf %87, %89 : vector<128x64xf32>
    %c8_66 = arith.constant 8 : index
    %c0_67 = arith.constant 0 : index
    %91 = vector.load %arg15[%c8_66, %c0_67] : memref<144x64xf32, #tpu.memory_space<vmem>>, vector<128x64xf32>
    tpu.vector_store %arg15[%c8_66, %c0_67], %90 {strides = array<i32>} : memref<144x64xf32, #tpu.memory_space<vmem>>, vector<128x64xf32>,
    %c8_68 = arith.constant 8 : index
    %c0_69 = arith.constant 0 : index
    %92 = vector.load %arg15[%c8_68, %c0_69] : memref<144x64xf32, #tpu.memory_space<vmem>>, vector<128x64xf32>
    %c0_70 = arith.constant 0 : index
    %c0_71 = arith.constant 0 : index
    %93 = vector.load %arg9[%c0_70, %c0_71] : memref<8x128xf32, #tpu.memory_space<vmem>>, vector<8x128xf32>
    %cst_72 = arith.constant dense<0.000000e+00> : vector<8x64xf32>
    %94 = tpu.matmul %93, %92, %cst_72 {dimension_numbers = #tpu.dot_dimension_numbers<[1], [0], [0], [1], [0, 0, 1, 1], [], []>} : vector<8x128xf32>, vector<128x64xf32>, vector<8x64xf32> -> vector<8x64xf32>
    %c0_73 = arith.constant 0 : index
    %c0_74 = arith.constant 0 : index
    %95 = vector.load %arg10[%c0_73, %c0_74] : memref<64x64xf32, #tpu.memory_space<vmem>>, vector<64x64xf32>
    %cst_75 = arith.constant dense<0.000000e+00> : vector<8x64xf32>
    %96 = tpu.matmul %94, %95, %cst_75 {dimension_numbers = #tpu.dot_dimension_numbers<[1], [0], [0], [1], [0, 0, 1, 1], [], []>} : vector<8x64xf32>, vector<64x64xf32>, vector<8x64xf32> -> vector<8x64xf32>
    %c0_76 = arith.constant 0 : index
    %c0_77 = arith.constant 0 : index
    %97 = vector.load %arg11[%c0_76, %c0_77] : memref<1x64xf32, #tpu.memory_space<vmem>>, vector<1x64xf32>
    %98 = vector.broadcast %97 : vector<1x64xf32> to vector<8x64xf32>
    %99 = arith.addf %96, %98 : vector<8x64xf32>
    %cst_78 = arith.constant 0.000000e+00 : f32
    %100 = vector.broadcast %cst_78 : f32 to vector<8x64xf32>
    %101 = arith.maximumf %99, %100 : vector<8x64xf32>
    %102 = arith.addf %101, %94 : vector<8x64xf32>
    %c0_79 = arith.constant 0 : index
    %c0_80 = arith.constant 0 : index
    %103 = vector.load %arg12[%c0_79, %c0_80] : memref<64x128xf32, #tpu.memory_space<vmem>>, vector<64x128xf32>
    %cst_81 = arith.constant dense<0.000000e+00> : vector<8x128xf32>
    %104 = tpu.matmul %102, %103, %cst_81 {dimension_numbers = #tpu.dot_dimension_numbers<[1], [0], [0], [1], [0, 0, 1, 1], [], []>} : vector<8x64xf32>, vector<64x128xf32>, vector<8x128xf32> -> vector<8x128xf32>
    %c0_82 = arith.constant 0 : index
    %c0_83 = arith.constant 0 : index
    %105 = vector.load %arg13[%c0_82, %c0_83] : memref<1x128xf32, #tpu.memory_space<vmem>>, vector<1x128xf32>
    %106 = vector.broadcast %105 : vector<1x128xf32> to vector<8x128xf32>
    %107 = arith.addf %104, %106 : vector<8x128xf32>
    %c0_84 = arith.constant 0 : index
    %c0_85 = arith.constant 0 : index
    %c0_86 = arith.constant 0 : index
    %108 = vector.load %arg14[%c0_84, %c0_85, %c0_86] : memref<1x8x128xf32, #tpu.memory_space<vmem>>, vector<1x8x128xf32>
    %109 = vector.shape_cast %108 : vector<1x8x128xf32> to vector<8x128xf32>
    %110 = vector.shape_cast %107 : vector<8x128xf32> to vector<1x8x128xf32>
    tpu.vector_store %arg14[%c0_84, %c0_85, %c0_86], %110 {strides = array<i32>} : memref<1x8x128xf32, #tpu.memory_space<vmem>>, vector<1x8x128xf32>,
    return
  }
  func.func @transform_0(%arg0: i32) -> (i32, i32) {
    %c0_i32 = arith.constant 0 : i32
    %c0_i32_0 = arith.constant 0 : i32
    %c0_i32_1 = arith.constant 0 : i32
    return %c0_i32, %c0_i32_0 : i32, i32
  }
  func.func @transform_1(%arg0: i32) -> (i32, i32) {
    %c0_i32 = arith.constant 0 : i32
    %c0_i32_0 = arith.constant 0 : i32
    %c0_i32_1 = arith.constant 0 : i32
    return %c0_i32, %c0_i32_0 : i32, i32
  }
  func.func @transform_2(%arg0: i32) -> (i32, i32) {
    %c0_i32 = arith.constant 0 : i32
    %c0_i32_0 = arith.constant 0 : i32
    %c0_i32_1 = arith.constant 0 : i32
    return %c0_i32, %c0_i32_0 : i32, i32
  }
  func.func @transform_3(%arg0: i32) -> (i32, i32) {
    %c0_i32 = arith.constant 0 : i32
    %c0_i32_0 = arith.constant 0 : i32
    %c0_i32_1 = arith.constant 0 : i32
    return %c0_i32, %c0_i32_0 : i32, i32
  }
  func.func @transform_4(%arg0: i32) -> (i32, i32, i32) {
    %c0_i32 = arith.constant 0 : i32
    %c0_i32_0 = arith.constant 0 : i32
    %c0_i32_1 = arith.constant 0 : i32
    return %arg0, %c0_i32, %c0_i32_0 : i32, i32, i32
  }
  func.func @transform_5(%arg0: i32) -> (i32, i32) {
    %c0_i32 = arith.constant 0 : i32
    %c0_i32_0 = arith.constant 0 : i32
    %c0_i32_1 = arith.constant 0 : i32
    return %c0_i32, %c0_i32_0 : i32, i32
  }
  func.func @transform_6(%arg0: i32) -> (i32, i32) {
    %c0_i32 = arith.constant 0 : i32
    %c0_i32_0 = arith.constant 0 : i32
    %c0_i32_1 = arith.constant 0 : i32
    return %c0_i32, %c0_i32_0 : i32, i32
  }
  func.func @transform_7(%arg0: i32) -> (i32, i32) {
    %c0_i32 = arith.constant 0 : i32
    %c0_i32_0 = arith.constant 0 : i32
    %c0_i32_1 = arith.constant 0 : i32
    return %c0_i32, %c0_i32_0 : i32, i32
  }
  func.func @transform_8(%arg0: i32) -> (i32, i32) {
    %c0_i32 = arith.constant 0 : i32
    %c0_i32_0 = arith.constant 0 : i32
    %c0_i32_1 = arith.constant 0 : i32
    return %c0_i32, %c0_i32_0 : i32, i32
  }
  func.func @transform_9(%arg0: i32) -> (i32, i32) {
    %c0_i32 = arith.constant 0 : i32
    %c0_i32_0 = arith.constant 0 : i32
    %c0_i32_1 = arith.constant 0 : i32
    return %c0_i32, %c0_i32_0 : i32, i32
  }
  func.func @transform_10(%arg0: i32) -> (i32, i32) {
    %c0_i32 = arith.constant 0 : i32
    %c0_i32_0 = arith.constant 0 : i32
    %c0_i32_1 = arith.constant 0 : i32
    return %c0_i32, %c0_i32_0 : i32, i32
  }
  func.func @transform_11(%arg0: i32) -> (i32, i32) {
    %c0_i32 = arith.constant 0 : i32
    %c0_i32_0 = arith.constant 0 : i32
    %c0_i32_1 = arith.constant 0 : i32
    return %c0_i32, %c0_i32_0 : i32, i32
  }
  func.func @transform_12(%arg0: i32) -> (i32, i32) {
    %c0_i32 = arith.constant 0 : i32
    %c0_i32_0 = arith.constant 0 : i32
    %c0_i32_1 = arith.constant 0 : i32
    return %c0_i32, %c0_i32_0 : i32, i32
  }
  func.func @transform_13(%arg0: i32) -> (i32, i32, i32) {
    %c0_i32 = arith.constant 0 : i32
    %c0_i32_0 = arith.constant 0 : i32
    %c0_i32_1 = arith.constant 0 : i32
    return %arg0, %c0_i32, %c0_i32_0 : i32, i32, i32
  }
}

</mosaic_0001>

<llo_original>
// kernel: adaptive_convnet_forward.1
$region0: #{adaptive_convnet_forward.1}
  #allocation0 [shape = 'u32[]', space=smem, size = 0x4, offset = 0x4, fixed_abs, tag = 'smem constant byte address 0x4 - core index']
  #allocation1 [shape = 'u32[72,128]{1,0:T(1,128)}', space=vmem, size = 0x9000, scoped, tag = 'internal scratch']
  #allocation2 [shape = 'f32[144,64]{1,0:T(8,128)}', space=vmem, size = 0x12000, scoped, tag = 'scratch operand']
  %s0 = inlined_call_operand.vmem [shape: f32[512,128], index: 0, kind: input, shape index: {}]
  %s1 = inlined_call_operand.vmem [shape: f32[128,64], index: 1, kind: input, shape index: {}]
  %s2 = inlined_call_operand.vmem [shape: f32[1,64], index: 2, kind: input, shape index: {}]
  %s3 = inlined_call_operand.vmem [shape: f32[1,64], index: 3, kind: input, shape index: {}]
  %s4 = inlined_call_operand.vmem [shape: f32[2,1,192], index: 4, kind: input, shape index: {}]
  %s5 = inlined_call_operand.vmem [shape: bf16[1152,64], index: 5, kind: input, shape index: {}]
  %s6 = inlined_call_operand.vmem [shape: f32[4,64], index: 6, kind: input, shape index: {}]
  %s7 = inlined_call_operand.vmem [shape: f32[128,1], index: 7, kind: input, shape index: {}]
  %s8 = inlined_call_operand.vmem [shape: f32[8,128], index: 8, kind: input, shape index: {}]
  %s9 = inlined_call_operand.vmem [shape: f32[64,64], index: 9, kind: input, shape index: {}]
  %s10 = inlined_call_operand.vmem [shape: f32[1,64], index: 10, kind: input, shape index: {}]
  %s11 = inlined_call_operand.vmem [shape: f32[64,128], index: 11, kind: input, shape index: {}]
  %s12 = inlined_call_operand.vmem [shape: f32[1,128], index: 12, kind: input, shape index: {}]
  %s13 = inlined_call_operand.vmem [shape: f32[2,8,128], index: 13, kind: output, shape index: {}]
  %s14 = sld [smem:[#allocation0]]
  $region85: #{adaptive_convnet_forward.1} parent=0
    _
  %s16 = ssub.s32 1, %s14
  %s17 = scalar_select 0, %s16, %s14
  loop: start=0, step=1, limit=4
  $region2: #{adaptive_convnet_forward.1} parent=0 // loop_pre_header
    _
  $region3: #{adaptive_convnet_forward.1} parent=0 // loop_header
    %s19 = sphi 0, %s23
    %p20 = scmp.ge.s32.totalorder %s19, 4
    %s27 = sphi 0, %s27
    %s29 = sphi 0, %s27
    %s30 = sphi 0, %s29
    %s44 = sphi 0, %s30
    %s48 = sphi 0, %s48
    %s50 = sphi 0, %s48
    %s51 = sphi 0, %s50
    %s65 = sphi 0, %s51
    %s69 = sphi 0, %s69
    %s71 = sphi 0, %s69
    %s72 = sphi 0, %s71
    %s86 = sphi 0, %s72
    %s90 = sphi 0, %s90
    %s92 = sphi 0, %s90
    %s93 = sphi 0, %s92
    %s107 = sphi 0, %s93
    %s113 = sphi 0, %s115
    %s116 = sphi 0, %s113
    %s117 = sphi 0, %s116
    %s133 = sphi 0, %s117
    %s137 = sphi 0, %s137
    %s139 = sphi 0, %s137
    %s140 = sphi 0, %s139
    %s154 = sphi 0, %s140
    %s158 = sphi 0, %s158
    %s160 = sphi 0, %s158
    %s161 = sphi 0, %s160
    %s175 = sphi 0, %s161
    %s179 = sphi 0, %s179
    %s181 = sphi 0, %s179
    %s182 = sphi 0, %s181
    %s196 = sphi 0, %s182
    %s200 = sphi 0, %s200
    %s202 = sphi 0, %s200
    %s203 = sphi 0, %s202
    %s217 = sphi 0, %s203
    %s221 = sphi 0, %s221
    %s223 = sphi 0, %s221
    %s224 = sphi 0, %s223
    %s238 = sphi 0, %s224
    %s242 = sphi 0, %s242
    %s244 = sphi 0, %s242
    %s245 = sphi 0, %s244
    %s259 = sphi 0, %s245
    %s263 = sphi 0, %s263
    %s265 = sphi 0, %s263
    %s266 = sphi 0, %s265
    %s280 = sphi 0, %s266
    %s284 = sphi 0, %s284
    %s286 = sphi 0, %s284
    %s287 = sphi 0, %s286
    %s301 = sphi 0, %s287
    %s307 = sphi 0, %s309
    %s310 = sphi 0, %s307
    %s311 = sphi 0, %s310
    %s327 = sphi 0, %s311
  $region4: #{adaptive_convnet_forward.1} parent=0 // loop_header_branch
    %22 = sbr.rel (%p20) target = $region8
  $region5: #{adaptive_convnet_forward.1} parent=0 // loop_body
    %s24 = ssub.s32 %s19, 1
    %s25 = ssub.s32 %s19, 2
    %s26 = sadd.s32 %s19, 1
    %s28 = sadd.s32 %s27, 1
    %p31 = scmp.eq.s32.totalorder %s19, 1
    %p32 = scmp.ne.s32.totalorder %s27, %s29
    %p33 = scmp.eq.s32.totalorder %s19, 0
    %p34 = por %p32, %p33
    %p35 = scmp.ne.s32.totalorder %s27, %s29
    %p36 = scmp.eq.s32.totalorder %s24, 1
    %p37 = por %p35, %p36
    %p38 = scmp.ne.s32.totalorder %s29, %s30
    %p39 = scmp.eq.s32.totalorder %s24, 0
    %p40 = por %p38, %p39
    %p41 = scmp.ne.s32.totalorder %s29, %s30
    %p42 = scmp.eq.s32.totalorder %s25, 1
    %p43 = por %p41, %p42
    %p45 = scmp.ne.s32.totalorder %s30, %s44
    %p46 = scmp.eq.s32.totalorder %s25, 0
    %p47 = por %p45, %p46
    %s49 = sadd.s32 %s48, 1
    %p52 = scmp.eq.s32.totalorder %s19, 1
    %p53 = scmp.ne.s32.totalorder %s48, %s50
    %p54 = scmp.eq.s32.totalorder %s19, 0
    %p55 = por %p53, %p54
    %p56 = scmp.ne.s32.totalorder %s48, %s50
    %p57 = scmp.eq.s32.totalorder %s24, 1
    %p58 = por %p56, %p57
    %p59 = scmp.ne.s32.totalorder %s50, %s51
    %p60 = scmp.eq.s32.totalorder %s24, 0
    %p61 = por %p59, %p60
    %p62 = scmp.ne.s32.totalorder %s50, %s51
    %p63 = scmp.eq.s32.totalorder %s25, 1
    %p64 = por %p62, %p63
    %p66 = scmp.ne.s32.totalorder %s51, %s65
    %p67 = scmp.eq.s32.totalorder %s25, 0
    %p68 = por %p66, %p67
    %s70 = sadd.s32 %s69, 1
    %p73 = scmp.eq.s32.totalorder %s19, 1
    %p74 = scmp.ne.s32.totalorder %s69, %s71
    %p75 = scmp.eq.s32.totalorder %s19, 0
    %p76 = por %p74, %p75
    %p77 = scmp.ne.s32.totalorder %s69, %s71
    %p78 = scmp.eq.s32.totalorder %s24, 1
    %p79 = por %p77, %p78
    %p80 = scmp.ne.s32.totalorder %s71, %s72
    %p81 = scmp.eq.s32.totalorder %s24, 0
    %p82 = por %p80, %p81
    %p83 = scmp.ne.s32.totalorder %s71, %s72
    %p84 = scmp.eq.s32.totalorder %s25, 1
    %p85 = por %p83, %p84
    %p87 = scmp.ne.s32.totalorder %s72, %s86
    %p88 = scmp.eq.s32.totalorder %s25, 0
    %p89 = por %p87, %p88
    %s91 = sadd.s32 %s90, 1
    %p94 = scmp.eq.s32.totalorder %s19, 1
    %p95 = scmp.ne.s32.totalorder %s90, %s92
    %p96 = scmp.eq.s32.totalorder %s19, 0
    %p97 = por %p95, %p96
    %p98 = scmp.ne.s32.totalorder %s90, %s92
    %p99 = scmp.eq.s32.totalorder %s24, 1
    %p100 = por %p98, %p99
    %p101 = scmp.ne.s32.totalorder %s92, %s93
    %p102 = scmp.eq.s32.totalorder %s24, 0
    %p103 = por %p101, %p102
    %p104 = scmp.ne.s32.totalorder %s92, %s93
    %p105 = scmp.eq.s32.totalorder %s25, 1
    %p106 = por %p104, %p105
    %p108 = scmp.ne.s32.totalorder %s93, %s107
    %p109 = scmp.eq.s32.totalorder %s25, 0
    %p110 = por %p108, %p109
    %s111 = ssub.s32 %s19, %s26
    %p112 = scmp.eq.s32.totalorder %s111, 0
    %s114 = sadd.s32 %s113, 1
    %s115 = scalar_select %p112, %s113, %s114
    %p118 = pneg %p112
    %p119 = scmp.eq.s32.totalorder %s19, 1
    %p120 = por %p118, %p119
    %p121 = scmp.ne.s32.totalorder %s113, %s116
    %p122 = scmp.eq.s32.totalorder %s19, 0
    %p123 = por %p121, %p122
    %p124 = scmp.ne.s32.totalorder %s113, %s116
    %p125 = scmp.eq.s32.totalorder %s24, 1
    %p126 = por %p124, %p125
    %p127 = scmp.ne.s32.totalorder %s116, %s117
    %p128 = scmp.eq.s32.totalorder %s24, 0
    %p129 = por %p127, %p128
    %p130 = scmp.ne.s32.totalorder %s116, %s117
    %p131 = scmp.eq.s32.totalorder %s25, 1
    %p132 = por %p130, %p131
    %p134 = scmp.ne.s32.totalorder %s117, %s133
    %p135 = scmp.eq.s32.totalorder %s25, 0
    %p136 = por %p134, %p135
    %s138 = sadd.s32 %s137, 1
    %p141 = scmp.eq.s32.totalorder %s19, 1
    %p142 = scmp.ne.s32.totalorder %s137, %s139
    %p143 = scmp.eq.s32.totalorder %s19, 0
    %p144 = por %p142, %p143
    %p145 = scmp.ne.s32.totalorder %s137, %s139
    %p146 = scmp.eq.s32.totalorder %s24, 1
    %p147 = por %p145, %p146
    %p148 = scmp.ne.s32.totalorder %s139, %s140
    %p149 = scmp.eq.s32.totalorder %s24, 0
    %p150 = por %p148, %p149
    %p151 = scmp.ne.s32.totalorder %s139, %s140
    %p152 = scmp.eq.s32.totalorder %s25, 1
    %p153 = por %p151, %p152
    %p155 = scmp.ne.s32.totalorder %s140, %s154
    %p156 = scmp.eq.s32.totalorder %s25, 0
    %p157 = por %p155, %p156
    %s159 = sadd.s32 %s158, 1
    %p162 = scmp.eq.s32.totalorder %s19, 1
    %p163 = scmp.ne.s32.totalorder %s158, %s160
    %p164 = scmp.eq.s32.totalorder %s19, 0
    %p165 = por %p163, %p164
    %p166 = scmp.ne.s32.totalorder %s158, %s160
    %p167 = scmp.eq.s32.totalorder %s24, 1
    %p168 = por %p166, %p167
    %p169 = scmp.ne.s32.totalorder %s160, %s161
    %p170 = scmp.eq.s32.totalorder %s24, 0
    %p171 = por %p169, %p170
    %p172 = scmp.ne.s32.totalorder %s160, %s161
    %p173 = scmp.eq.s32.totalorder %s25, 1
    %p174 = por %p172, %p173
    %p176 = scmp.ne.s32.totalorder %s161, %s175
    %p177 = scmp.eq.s32.totalorder %s25, 0
    %p178 = por %p176, %p177
    %s180 = sadd.s32 %s179, 1
    %p183 = scmp.eq.s32.totalorder %s19, 1
    %p184 = scmp.ne.s32.totalorder %s179, %s181
    %p185 = scmp.eq.s32.totalorder %s19, 0
    %p186 = por %p184, %p185
    %p187 = scmp.ne.s32.totalorder %s179, %s181
    %p188 = scmp.eq.s32.totalorder %s24, 1
    %p189 = por %p187, %p188
    %p190 = scmp.ne.s32.totalorder %s181, %s182
    %p191 = scmp.eq.s32.totalorder %s24, 0
    %p192 = por %p190, %p191
    %p193 = scmp.ne.s32.totalorder %s181, %s182
    %p194 = scmp.eq.s32.totalorder %s25, 1
    %p195 = por %p193, %p194
    %p197 = scmp.ne.s32.totalorder %s182, %s196
    %p198 = scmp.eq.s32.totalorder %s25, 0
    %p199 = por %p197, %p198
    %s201 = sadd.s32 %s200, 1
    %p204 = scmp.eq.s32.totalorder %s19, 1
    %p205 = scmp.ne.s32.totalorder %s200, %s202
    %p206 = scmp.eq.s32.totalorder %s19, 0
    %p207 = por %p205, %p206
    %p208 = scmp.ne.s32.totalorder %s200, %s202
    %p209 = scmp.eq.s32.totalorder %s24, 1
    %p210 = por %p208, %p209
    %p211 = scmp.ne.s32.totalorder %s202, %s203
    %p212 = scmp.eq.s32.totalorder %s24, 0
    %p213 = por %p211, %p212
    %p214 = scmp.ne.s32.totalorder %s202, %s203
    %p215 = scmp.eq.s32.totalorder %s25, 1
    %p216 = por %p214, %p215
    %p218 = scmp.ne.s32.totalorder %s203, %s217
    %p219 = scmp.eq.s32.totalorder %s25, 0
    %p220 = por %p218, %p219
    %s222 = sadd.s32 %s221, 1
    %p225 = scmp.eq.s32.totalorder %s19, 1
    %p226 = scmp.ne.s32.totalorder %s221, %s223
    %p227 = scmp.eq.s32.totalorder %s19, 0
    %p228 = por %p226, %p227
    %p229 = scmp.ne.s32.totalorder %s221, %s223
    %p230 = scmp.eq.s32.totalorder %s24, 1
    %p231 = por %p229, %p230
    %p232 = scmp.ne.s32.totalorder %s223, %s224
    %p233 = scmp.eq.s32.totalorder %s24, 0
    %p234 = por %p232, %p233
    %p235 = scmp.ne.s32.totalorder %s223, %s224
    %p236 = scmp.eq.s32.totalorder %s25, 1
    %p237 = por %p235, %p236
    %p239 = scmp.ne.s32.totalorder %s224, %s238
    %p240 = scmp.eq.s32.totalorder %s25, 0
    %p241 = por %p239, %p240
    %s243 = sadd.s32 %s242, 1
    %p246 = scmp.eq.s32.totalorder %s19, 1
    %p247 = scmp.ne.s32.totalorder %s242, %s244
    %p248 = scmp.eq.s32.totalorder %s19, 0
    %p249 = por %p247, %p248
    %p250 = scmp.ne.s32.totalorder %s242, %s244
    %p251 = scmp.eq.s32.totalorder %s24, 1
    %p252 = por %p250, %p251
    %p253 = scmp.ne.s32.totalorder %s244, %s245
    %p254 = scmp.eq.s32.totalorder %s24, 0
    %p255 = por %p253, %p254
    %p256 = scmp.ne.s32.totalorder %s244, %s245
    %p257 = scmp.eq.s32.totalorder %s25, 1
    %p258 = por %p256, %p257
    %p260 = scmp.ne.s32.totalorder %s245, %s259
    %p261 = scmp.eq.s32.totalorder %s25, 0
    %p262 = por %p260, %p261
    %s264 = sadd.s32 %s263, 1
    %p267 = scmp.eq.s32.totalorder %s19, 1
    %p268 = scmp.ne.s32.totalorder %s263, %s265
    %p269 = scmp.eq.s32.totalorder %s19, 0
    %p270 = por %p268, %p269
    %p271 = scmp.ne.s32.totalorder %s263, %s265
    %p272 = scmp.eq.s32.totalorder %s24, 1
    %p273 = por %p271, %p272
    %p274 = scmp.ne.s32.totalorder %s265, %s266
    %p275 = scmp.eq.s32.totalorder %s24, 0
    %p276 = por %p274, %p275
    %p277 = scmp.ne.s32.totalorder %s265, %s266
    %p278 = scmp.eq.s32.totalorder %s25, 1
    %p279 = por %p277, %p278
    %p281 = scmp.ne.s32.totalorder %s266, %s280
    %p282 = scmp.eq.s32.totalorder %s25, 0
    %p283 = por %p281, %p282
    %s285 = sadd.s32 %s284, 1
    %p288 = scmp.eq.s32.totalorder %s19, 1
    %p289 = scmp.ne.s32.totalorder %s284, %s286
    %p290 = scmp.eq.s32.totalorder %s19, 0
    %p291 = por %p289, %p290
    %p292 = scmp.ne.s32.totalorder %s284, %s286
    %p293 = scmp.eq.s32.totalorder %s24, 1
    %p294 = por %p292, %p293
    %p295 = scmp.ne.s32.totalorder %s286, %s287
    %p296 = scmp.eq.s32.totalorder %s24, 0
    %p297 = por %p295, %p296
    %p298 = scmp.ne.s32.totalorder %s286, %s287
    %p299 = scmp.eq.s32.totalorder %s25, 1
    %p300 = por %p298, %p299
    %p302 = scmp.ne.s32.totalorder %s287, %s301
    %p303 = scmp.eq.s32.totalorder %s25, 0
    %p304 = por %p302, %p303
    %s305 = ssub.s32 %s19, %s26
    %p306 = scmp.eq.s32.totalorder %s305, 0
    %s308 = sadd.s32 %s307, 1
    %s309 = scalar_select %p306, %s307, %s308
    %p312 = pneg %p306
    %p313 = scmp.eq.s32.totalorder %s19, 1
    %p314 = por %p312, %p313
    %p315 = scmp.ne.s32.totalorder %s307, %s310
    %p316 = scmp.eq.s32.totalorder %s19, 0
    %p317 = por %p315, %p316
    %p318 = scmp.ne.s32.totalorder %s307, %s310
    %p319 = scmp.eq.s32.totalorder %s24, 1
    %p320 = por %p318, %p319
    %p321 = scmp.ne.s32.totalorder %s310, %s311
    %p322 = scmp.eq.s32.totalorder %s24, 0
    %p323 = por %p321, %p322
    %p324 = scmp.ne.s32.totalorder %s310, %s311
    %p325 = scmp.eq.s32.totalorder %s25, 1
    %p326 = por %p324, %p325
    %p328 = scmp.ne.s32.totalorder %s311, %s327
    %p329 = scmp.eq.s32.totalorder %s25, 0
    %p330 = por %p328, %p329
    %p331 = scmp.le.s32.totalorder 1, %s19
    %p332 = scmp.lt.s32.totalorder %s19, 3
    %p333 = pnand %p331, %p332
    %p334 = pneg %p333
    // Predicated region
    $region9: #{adaptive_convnet_forward.1} parent=5 // pred_check
      _
    $region10: #{adaptive_convnet_forward.1} parent=5 // pred_check_branch
      %336 = sbr.rel (%p333) target = $region12
    $region11: #{adaptive_convnet_forward.1} parent=5 // pred_region
      %s337 = ssub.s32 %s19, 1
      // Predicated region
      $region13: #{adaptive_convnet_forward.1} parent=11 // pred_check
        %p338 = pneg %p40
      $region14: #{adaptive_convnet_forward.1} parent=11 // pred_check_branch
        %340 = sbr.rel (%p338) target = $region16
      $region15: #{adaptive_convnet_forward.1} parent=11 // pred_region
        _
      $region16: #{adaptive_convnet_forward.1} parent=11 // pred_fallthru
        _
      // Predicated region
      $region17: #{adaptive_convnet_forward.1} parent=11 // pred_check
        %p341 = pneg %p61
      $region18: #{adaptive_convnet_forward.1} parent=11 // pred_check_branch
        %343 = sbr.rel (%p341) target = $region20
      $region19: #{adaptive_convnet_forward.1} parent=11 // pred_region
        _
      $region20: #{adaptive_convnet_forward.1} parent=11 // pred_fallthru
        _
      // Predicated region
      $region21: #{adaptive_convnet_forward.1} parent=11 // pred_check
        %p344 = pneg %p82
      $region22: #{adaptive_convnet_forward.1} parent=11 // pred_check_branch
        %346 = sbr.rel (%p344) target = $region24
      $region23: #{adaptive_convnet_forward.1} parent=11 // pred_region
        _
      $region24: #{adaptive_convnet_forward.1} parent=11 // pred_fallthru
        _
      // Predicated region
      $region25: #{adaptive_convnet_forward.1} parent=11 // pred_check
        %p347 = pneg %p103
      $region26: #{adaptive_convnet_forward.1} parent=11 // pred_check_branch
        %349 = sbr.rel (%p347) target = $region28
      $region27: #{adaptive_convnet_forward.1} parent=11 // pred_region
        _
      $region28: #{adaptive_convnet_forward.1} parent=11 // pred_fallthru
        _
      // Predicated region
      $region29: #{adaptive_convnet_forward.1} parent=11 // pred_check
        %p350 = pneg %p150
      $region30: #{adaptive_convnet_forward.1} parent=11 // pred_check_branch
        %352 = sbr.rel (%p350) target = $region32
      $region31: #{adaptive_convnet_forward.1} parent=11 // pred_region
        _
      $region32: #{adaptive_convnet_forward.1} parent=11 // pred_fallthru
        _
      // Predicated region
      $region33: #{adaptive_convnet_forward.1} parent=11 // pred_check
        %p353 = pneg %p171
      $region34: #{adaptive_convnet_forward.1} parent=11 // pred_check_branch
        %355 = sbr.rel (%p353) target = $region36
      $region35: #{adaptive_convnet_forward.1} parent=11 // pred_region
        _
      $region36: #{adaptive_convnet_forward.1} parent=11 // pred_fallthru
        _
      // Predicated region
      $region37: #{adaptive_convnet_forward.1} parent=11 // pred_check
        %p356 = pneg %p192
      $region38: #{adaptive_convnet_forward.1} parent=11 // pred_check_branch
        %358 = sbr.rel (%p356) target = $region40
      $region39: #{adaptive_convnet_forward.1} parent=11 // pred_region
        _
      $region40: #{adaptive_convnet_forward.1} parent=11 // pred_fallthru
        _
      // Predicated region
      $region41: #{adaptive_convnet_forward.1} parent=11 // pred_check
        %p359 = pneg %p213
      $region42: #{adaptive_convnet_forward.1} parent=11 // pred_check_branch
        %361 = sbr.rel (%p359) target = $region44
      $region43: #{adaptive_convnet_forward.1} parent=11 // pred_region
        _
      $region44: #{adaptive_convnet_forward.1} parent=11 // pred_fallthru
        _
      // Predicated region
      $region45: #{adaptive_convnet_forward.1} parent=11 // pred_check
        %p362 = pneg %p234
      $region46: #{adaptive_convnet_forward.1} parent=11 // pred_check_branch
        %364 = sbr.rel (%p362) target = $region48
      $region47: #{adaptive_convnet_forward.1} parent=11 // pred_region
        _
      $region48: #{adaptive_convnet_forward.1} parent=11 // pred_fallthru
        _
      // Predicated region
      $region49: #{adaptive_convnet_forward.1} parent=11 // pred_check
        %p365 = pneg %p255
      $region50: #{adaptive_convnet_forward.1} parent=11 // pred_check_branch
        %367 = sbr.rel (%p365) target = $region52
      $region51: #{adaptive_convnet_forward.1} parent=11 // pred_region
        _
      $region52: #{adaptive_convnet_forward.1} parent=11 // pred_fallthru
        _
      // Predicated region
      $region53: #{adaptive_convnet_forward.1} parent=11 // pred_check
        %p368 = pneg %p276
      $region54: #{adaptive_convnet_forward.1} parent=11 // pred_check_branch
        %370 = sbr.rel (%p368) target = $region56
      $region55: #{adaptive_convnet_forward.1} parent=11 // pred_region
        _
      $region56: #{adaptive_convnet_forward.1} parent=11 // pred_fallthru
        _
      // Predicated region
      $region57: #{adaptive_convnet_forward.1} parent=11 // pred_check
        %p371 = pneg %p297
      $region58: #{adaptive_convnet_forward.1} parent=11 // pred_check_branch
        %373 = sbr.rel (%p371) target = $region60
      $region59: #{adaptive_convnet_forward.1} parent=11 // pred_region
        _
      $region60: #{adaptive_convnet_forward.1} parent=11 // pred_fallthru
        _
    $region12: #{adaptive_convnet_forward.1} parent=5 // pred_fallthru
      _
    %p374 = scmp.lt.s32.totalorder %s19, 2
    // Predicated region
    $region61: #{adaptive_convnet_forward.1} parent=5 // pred_check
      %p375 = pneg %p374
    $region62: #{adaptive_convnet_forward.1} parent=5 // pred_check_branch
      %377 = sbr.rel (%p375) target = $region64
    $region63: #{adaptive_convnet_forward.1} parent=5 // pred_region
      // Predicated region
      $region65: #{adaptive_convnet_forward.1} parent=63 // pred_check
        %p378 = pneg %p123
      $region66: #{adaptive_convnet_forward.1} parent=63 // pred_check_branch
        %380 = sbr.rel (%p378) target = $region68
      $region67: #{adaptive_convnet_forward.1} parent=63 // pred_region
        %p381 = scmp.lt.s32.totalorder %s19, 1
        %s382 = scalar_select %p381, %s19, 1
        %s383 = smul.addr %s382, 2
        %s384 = scalar_lea.vmem %s4, %s383
      $region68: #{adaptive_convnet_forward.1} parent=63 // pred_fallthru
        _
    $region64: #{adaptive_convnet_forward.1} parent=5 // pred_fallthru
      _
    %p385 = scmp.le.s32.totalorder 1, %s19
    %p386 = scmp.lt.s32.totalorder %s19, 3
    %p387 = pnand %p385, %p386
    %p388 = pneg %p387
    // Predicated region
    $region69: #{adaptive_convnet_forward.1} parent=5 // pred_check
      _
    $region70: #{adaptive_convnet_forward.1} parent=5 // pred_check_branch
      %390 = sbr.rel (%p387) target = $region72
    $region71: #{adaptive_convnet_forward.1} parent=5 // pred_region
      %s391 = ssub.s32 %s19, 1
      %p392 = pneg %p40
      %p393 = pneg %p37
      %p394 = pneg %p61
      %p395 = pneg %p58
      %p396 = pneg %p82
      %p397 = pneg %p79
      %p398 = pneg %p103
      %p399 = pneg %p100
      %p400 = scmp.lt.s32.totalorder %s24, 1
      %s401 = scalar_select %p400, %s24, 1
      %s402 = smul.addr %s401, 2
      %s403 = scalar_lea.vmem %s4, %s402
      %p404 = pneg %p129
      %p405 = pneg %p126
      %p406 = pneg %p150
      %p407 = pneg %p147
      %p408 = pneg %p171
      %p409 = pneg %p168
      %p410 = pneg %p192
      %p411 = pneg %p189
      %p412 = pneg %p213
      %p413 = pneg %p210
      %p414 = pneg %p234
      %p415 = pneg %p231
      %p416 = pneg %p255
      %p417 = pneg %p252
      %p418 = pneg %p276
      %p419 = pneg %p273
      %p420 = pneg %p297
      %p421 = pneg %p294
      %p422 = pneg %p323
      %p423 = pneg %p320
      %p424 = scmp.lt.s32.totalorder %s24, 1
      %s425 = scalar_select %p424, %s24, 1
      %s426 = smul.addr %s425, 8
      %s427 = scalar_lea.vmem %s13, %s426
      %p428 = scmp.lt.s32.totalorder %s24, 1
      %s429 = scalar_select %p428, %s24, 1
      %s430 = smul.addr %s429, 2
      %s431 = scalar_lea.vmem %s4, %s430
      %p432 = scmp.lt.s32.totalorder %s24, 1
      %s433 = scalar_select %p432, %s24, 1
      %s434 = smul.addr %s433, 8
      %s435 = scalar_lea.vmem %s13, %s434
      %vm437 = vcmask 523264
      %438 = vst.msk [vmem:[#allocation2] sm:$0xff] %vm437, 0.0
      %439 = vst.msk [vmem:[#allocation2 + $0x88] sm:$0xff] %vm437, 0.0
      %v440 = vld [vmem:[%s0] sm:$0xff]
      %v441 = vld [vmem:[%s0 + $0x8] sm:$0xff]
      %v442 = vld [vmem:[%s0 + $0x10] sm:$0xff]
      %v443 = vld [vmem:[%s0 + $0x18] sm:$0xff]
      %v444 = vld [vmem:[%s0 + $0x20] sm:$0xff]
      %v445 = vld [vmem:[%s0 + $0x28] sm:$0xff]
      %v446 = vld [vmem:[%s0 + $0x30] sm:$0xff]
      %v447 = vld [vmem:[%s0 + $0x38] sm:$0xff]
      %v448 = vld [vmem:[%s0 + $0x40] sm:$0xff]
      %v449 = vld [vmem:[%s0 + $0x48] sm:$0xff]
      %v450 = vld [vmem:[%s0 + $0x50] sm:$0xff]
      %v451 = vld [vmem:[%s0 + $0x58] sm:$0xff]
      %v452 = vld [vmem:[%s0 + $0x60] sm:$0xff]
      %v453 = vld [vmem:[%s0 + $0x68] sm:$0xff]
      %v454 = vld [vmem:[%s0 + $0x70] sm:$0xff]
      %v455 = vld [vmem:[%s0 + $0x78] sm:$0xff]
      %v456 = vld [vmem:[%s0 + $0x80] sm:$0xff]
      %v457 = vld [vmem:[%s0 + $0x88] sm:$0xff]
      %v458 = vld [vmem:[%s0 + $0x90] sm:$0xff]
      %v459 = vld [vmem:[%s0 + $0x98] sm:$0xff]
      %v460 = vld [vmem:[%s0 + $0xa0] sm:$0xff]
      %v461 = vld [vmem:[%s0 + $0xa8] sm:$0xff]
      %v462 = vld [vmem:[%s0 + $0xb0] sm:$0xff]
      %v463 = vld [vmem:[%s0 + $0xb8] sm:$0xff]
      %v464 = vld [vmem:[%s0 + $0xc0] sm:$0xff]
      %v465 = vld [vmem:[%s0 + $0xc8] sm:$0xff]
      %v466 = vld [vmem:[%s0 + $0xd0] sm:$0xff]
      %v467 = vld [vmem:[%s0 + $0xd8] sm:$0xff]
      %v468 = vld [vmem:[%s0 + $0xe0] sm:$0xff]
      %v469 = vld [vmem:[%s0 + $0xe8] sm:$0xff]
      %v470 = vld [vmem:[%s0 + $0xf0] sm:$0xff]
      %v471 = vld [vmem:[%s0 + $0xf8] sm:$0xff]
      %v472 = vld [vmem:[%s0 + $0x100] sm:$0xff]
      %v473 = vld [vmem:[%s0 + $0x108] sm:$0xff]
      %v474 = vld [vmem:[%s0 + $0x110] sm:$0xff]
      %v475 = vld [vmem:[%s0 + $0x118] sm:$0xff]
      %v476 = vld [vmem:[%s0 + $0x120] sm:$0xff]
      %v477 = vld [vmem:[%s0 + $0x128] sm:$0xff]
      %v478 = vld [vmem:[%s0 + $0x130] sm:$0xff]
      %v479 = vld [vmem:[%s0 + $0x138] sm:$0xff]
      %v480 = vld [vmem:[%s0 + $0x140] sm:$0xff]
      %v481 = vld [vmem:[%s0 + $0x148] sm:$0xff]
      %v482 = vld [vmem:[%s0 + $0x150] sm:$0xff]
      %v483 = vld [vmem:[%s0 + $0x158] sm:$0xff]
      %v484 = vld [vmem:[%s0 + $0x160] sm:$0xff]
      %v485 = vld [vmem:[%s0 + $0x168] sm:$0xff]
      %v486 = vld [vmem:[%s0 + $0x170] sm:$0xff]
      %v487 = vld [vmem:[%s0 + $0x178] sm:$0xff]
      %v488 = vld [vmem:[%s0 + $0x180] sm:$0xff]
      %v489 = vld [vmem:[%s0 + $0x188] sm:$0xff]
      %v490 = vld [vmem:[%s0 + $0x190] sm:$0xff]
      %v491 = vld [vmem:[%s0 + $0x198] sm:$0xff]
      %v492 = vld [vmem:[%s0 + $0x1a0] sm:$0xff]
      %v493 = vld [vmem:[%s0 + $0x1a8] sm:$0xff]
      %v494 = vld [vmem:[%s0 + $0x1b0] sm:$0xff]
      %v495 = vld [vmem:[%s0 + $0x1b8] sm:$0xff]
      %v496 = vld [vmem:[%s0 + $0x1c0] sm:$0xff]
      %v497 = vld [vmem:[%s0 + $0x1c8] sm:$0xff]
      %v498 = vld [vmem:[%s0 + $0x1d0] sm:$0xff]
      %v499 = vld [vmem:[%s0 + $0x1d8] sm:$0xff]
      %v500 = vld [vmem:[%s0 + $0x1e0] sm:$0xff]
      %v501 = vld [vmem:[%s0 + $0x1e8] sm:$0xff]
      %v502 = vld [vmem:[%s0 + $0x1f0] sm:$0xff]
      %v503 = vld [vmem:[%s0 + $0x1f8] sm:$0xff]
      %v504 = vld [vmem:[%s1] sm:$0xff]
      %v505 = vld [vmem:[%s1 + $0x8] sm:$0xff]
      %v506 = vld [vmem:[%s1 + $0x10] sm:$0xff]
      %v507 = vld [vmem:[%s1 + $0x18] sm:$0xff]
      %v508 = vld [vmem:[%s1 + $0x20] sm:$0xff]
      %v509 = vld [vmem:[%s1 + $0x28] sm:$0xff]
      %v510 = vld [vmem:[%s1 + $0x30] sm:$0xff]
      %v511 = vld [vmem:[%s1 + $0x38] sm:$0xff]
      %v512 = vld [vmem:[%s1 + $0x40] sm:$0xff]
      %v513 = vld [vmem:[%s1 + $0x48] sm:$0xff]
      %v514 = vld [vmem:[%s1 + $0x50] sm:$0xff]
      %v515 = vld [vmem:[%s1 + $0x58] sm:$0xff]
      %v516 = vld [vmem:[%s1 + $0x60] sm:$0xff]
      %v517 = vld [vmem:[%s1 + $0x68] sm:$0xff]
      %v518 = vld [vmem:[%s1 + $0x70] sm:$0xff]
      %v519 = vld [vmem:[%s1 + $0x78] sm:$0xff]
      %520 = vmatpush.msra.mxu0 %v519
      %521 = vmatpush.msra.mxu0 %v518
      %522 = vmatpush.msra.mxu0 %v517
      %523 = vmatpush.msra.mxu0 %v516
      %524 = vmatpush.msra.mxu0 %v515
      %525 = vmatpush.msra.mxu0 %v514
      %526 = vmatpush.msra.mxu0 %v513
      %527 = vmatpush.msra.mxu0 %v512
      %528 = vmatpush.msra.mxu0 %v511
      %529 = vmatpush.msra.mxu0 %v510
      %530 = vmatpush.msra.mxu0 %v509
      %531 = vmatpush.msra.mxu0 %v508
      %532 = vmatpush.msra.mxu0 %v507
      %533 = vmatpush.msra.mxu0 %v506
      %534 = vmatpush.msra.mxu0 %v505
      %535 = vmatpush.msra.mxu0 %v504
      %536 = vmatmul.f32.gmra.mxu0 %v440
      %v537 = vpop.f32.mrf.mxu0
      %v538 = vadd.f32 0.0, %v537
      %539 = vmatmul.f32.gmra.mxu0 %v441
      %v540 = vpop.f32.mrf.mxu0
      %v541 = vadd.f32 0.0, %v540
      %542 = vmatmul.f32.gmra.mxu0 %v442
      %v543 = vpop.f32.mrf.mxu0
      %v544 = vadd.f32 0.0, %v543
      %545 = vmatmul.f32.gmra.mxu0 %v443
      %v546 = vpop.f32.mrf.mxu0
      %v547 = vadd.f32 0.0, %v546
      %548 = vmatmul.f32.gmra.mxu0 %v444
      %v549 = vpop.f32.mrf.mxu0
      %v550 = vadd.f32 0.0, %v549
      %551 = vmatmul.f32.gmra.mxu0 %v445
      %v552 = vpop.f32.mrf.mxu0
      %v553 = vadd.f32 0.0, %v552
      %554 = vmatmul.f32.gmra.mxu0 %v446
      %v555 = vpop.f32.mrf.mxu0
      %v556 = vadd.f32 0.0, %v555
      %557 = vmatmul.f32.gmra.mxu0 %v447
      %v558 = vpop.f32.mrf.mxu0
      %v559 = vadd.f32 0.0, %v558
      %560 = vmatmul.f32.gmra.mxu0 %v448
      %v561 = vpop.f32.mrf.mxu0
      %v562 = vadd.f32 0.0, %v561
      %563 = vmatmul.f32.gmra.mxu0 %v449
      %v564 = vpop.f32.mrf.mxu0
      %v565 = vadd.f32 0.0, %v564
      %566 = vmatmul.f32.gmra.mxu0 %v450
      %v567 = vpop.f32.mrf.mxu0
      %v568 = vadd.f32 0.0, %v567
      %569 = vmatmul.f32.gmra.mxu0 %v451
      %v570 = vpop.f32.mrf.mxu0
      %v571 = vadd.f32 0.0, %v570
      %572 = vmatmul.f32.gmra.mxu0 %v452
      %v573 = vpop.f32.mrf.mxu0
      %v574 = vadd.f32 0.0, %v573
      %575 = vmatmul.f32.gmra.mxu0 %v453
      %v576 = vpop.f32.mrf.mxu0
      %v577 = vadd.f32 0.0, %v576
      %578 = vmatmul.f32.gmra.mxu0 %v454
      %v579 = vpop.f32.mrf.mxu0
      %v580 = vadd.f32 0.0, %v579
      %581 = vmatmul.f32.gmra.mxu0 %v455
      %v582 = vpop.f32.mrf.mxu0
      %v583 = vadd.f32 0.0, %v582
      %584 = vmatmul.f32.gmra.mxu0 %v456
      %v585 = vpop.f32.mrf.mxu0
      %v586 = vadd.f32 0.0, %v585
      %587 = vmatmul.f32.gmra.mxu0 %v457
      %v588 = vpop.f32.mrf.mxu0
      %v589 = vadd.f32 0.0, %v588
      %590 = vmatmul.f32.gmra.mxu0 %v458
      %v591 = vpop.f32.mrf.mxu0
      %v592 = vadd.f32 0.0, %v591
      %593 = vmatmul.f32.gmra.mxu0 %v459
      %v594 = vpop.f32.mrf.mxu0
      %v595 = vadd.f32 0.0, %v594
      %596 = vmatmul.f32.gmra.mxu0 %v460
      %v597 = vpop.f32.mrf.mxu0
      %v598 = vadd.f32 0.0, %v597
      %599 = vmatmul.f32.gmra.mxu0 %v461
      %v600 = vpop.f32.mrf.mxu0
      %v601 = vadd.f32 0.0, %v600
      %602 = vmatmul.f32.gmra.mxu0 %v462
      %v603 = vpop.f32.mrf.mxu0
      %v604 = vadd.f32 0.0, %v603
      %605 = vmatmul.f32.gmra.mxu0 %v463
      %v606 = vpop.f32.mrf.mxu0
      %v607 = vadd.f32 0.0, %v606
      %608 = vmatmul.f32.gmra.mxu0 %v464
      %v609 = vpop.f32.mrf.mxu0
      %v610 = vadd.f32 0.0, %v609
      %611 = vmatmul.f32.gmra.mxu0 %v465
      %v612 = vpop.f32.mrf.mxu0
      %v613 = vadd.f32 0.0, %v612
      %614 = vmatmul.f32.gmra.mxu0 %v466
      %v615 = vpop.f32.mrf.mxu0
      %v616 = vadd.f32 0.0, %v615
      %617 = vmatmul.f32.gmra.mxu0 %v467
      %v618 = vpop.f32.mrf.mxu0
      %v619 = vadd.f32 0.0, %v618
      %620 = vmatmul.f32.gmra.mxu0 %v468
      %v621 = vpop.f32.mrf.mxu0
      %v622 = vadd.f32 0.0, %v621
      %623 = vmatmul.f32.gmra.mxu0 %v469
      %v624 = vpop.f32.mrf.mxu0
      %v625 = vadd.f32 0.0, %v624
      %626 = vmatmul.f32.gmra.mxu0 %v470
      %v627 = vpop.f32.mrf.mxu0
      %v628 = vadd.f32 0.0, %v627
      %629 = vmatmul.f32.gmra.mxu0 %v471
      %v630 = vpop.f32.mrf.mxu0
      %v631 = vadd.f32 0.0, %v630
      %632 = vmatmul.f32.gmra.mxu0 %v472
      %v633 = vpop.f32.mrf.mxu0
      %v634 = vadd.f32 0.0, %v633
      %635 = vmatmul.f32.gmra.mxu0 %v473
      %v636 = vpop.f32.mrf.mxu0
      %v637 = vadd.f32 0.0, %v636
      %638 = vmatmul.f32.gmra.mxu0 %v474
      %v639 = vpop.f32.mrf.mxu0
      %v640 = vadd.f32 0.0, %v639
      %641 = vmatmul.f32.gmra.mxu0 %v475
      %v642 = vpop.f32.mrf.mxu0
      %v643 = vadd.f32 0.0, %v642
      %644 = vmatmul.f32.gmra.mxu0 %v476
      %v645 = vpop.f32.mrf.mxu0
      %v646 = vadd.f32 0.0, %v645
      %647 = vmatmul.f32.gmra.mxu0 %v477
      %v648 = vpop.f32.mrf.mxu0
      %v649 = vadd.f32 0.0, %v648
      %650 = vmatmul.f32.gmra.mxu0 %v478
      %v651 = vpop.f32.mrf.mxu0
      %v652 = vadd.f32 0.0, %v651
      %653 = vmatmul.f32.gmra.mxu0 %v479
      %v654 = vpop.f32.mrf.mxu0
      %v655 = vadd.f32 0.0, %v654
      %656 = vmatmul.f32.gmra.mxu0 %v480
      %v657 = vpop.f32.mrf.mxu0
      %v658 = vadd.f32 0.0, %v657
      %659 = vmatmul.f32.gmra.mxu0 %v481
      %v660 = vpop.f32.mrf.mxu0
      %v661 = vadd.f32 0.0, %v660
      %662 = vmatmul.f32.gmra.mxu0 %v482
      %v663 = vpop.f32.mrf.mxu0
      %v664 = vadd.f32 0.0, %v663
      %665 = vmatmul.f32.gmra.mxu0 %v483
      %v666 = vpop.f32.mrf.mxu0
      %v667 = vadd.f32 0.0, %v666
      %668 = vmatmul.f32.gmra.mxu0 %v484
      %v669 = vpop.f32.mrf.mxu0
      %v670 = vadd.f32 0.0, %v669
      %671 = vmatmul.f32.gmra.mxu0 %v485
      %v672 = vpop.f32.mrf.mxu0
      %v673 = vadd.f32 0.0, %v672
      %674 = vmatmul.f32.gmra.mxu0 %v486
      %v675 = vpop.f32.mrf.mxu0
      %v676 = vadd.f32 0.0, %v675
      %677 = vmatmul.f32.gmra.mxu0 %v487
      %v678 = vpop.f32.mrf.mxu0
      %v679 = vadd.f32 0.0, %v678
      %680 = vmatmul.f32.gmra.mxu0 %v488
      %v681 = vpop.f32.mrf.mxu0
      %v682 = vadd.f32 0.0, %v681
      %683 = vmatmul.f32.gmra.mxu0 %v489
      %v684 = vpop.f32.mrf.mxu0
      %v685 = vadd.f32 0.0, %v684
      %686 = vmatmul.f32.gmra.mxu0 %v490
      %v687 = vpop.f32.mrf.mxu0
      %v688 = vadd.f32 0.0, %v687
      %689 = vmatmul.f32.gmra.mxu0 %v491
      %v690 = vpop.f32.mrf.mxu0
      %v691 = vadd.f32 0.0, %v690
      %692 = vmatmul.f32.gmra.mxu0 %v492
      %v693 = vpop.f32.mrf.mxu0
      %v694 = vadd.f32 0.0, %v693
      %695 = vmatmul.f32.gmra.mxu0 %v493
      %v696 = vpop.f32.mrf.mxu0
      %v697 = vadd.f32 0.0, %v696
      %698 = vmatmul.f32.gmra.mxu0 %v494
      %v699 = vpop.f32.mrf.mxu0
      %v700 = vadd.f32 0.0, %v699
      %701 = vmatmul.f32.gmra.mxu0 %v495
      %v702 = vpop.f32.mrf.mxu0
      %v703 = vadd.f32 0.0, %v702
      %704 = vmatmul.f32.gmra.mxu0 %v496
      %v705 = vpop.f32.mrf.mxu0
      %v706 = vadd.f32 0.0, %v705
      %707 = vmatmul.f32.gmra.mxu0 %v497
      %v708 = vpop.f32.mrf.mxu0
      %v709 = vadd.f32 0.0, %v708
      %710 = vmatmul.f32.gmra.mxu0 %v498
      %v711 = vpop.f32.mrf.mxu0
      %v712 = vadd.f32 0.0, %v711
      %713 = vmatmul.f32.gmra.mxu0 %v499
      %v714 = vpop.f32.mrf.mxu0
      %v715 = vadd.f32 0.0, %v714
      %716 = vmatmul.f32.gmra.mxu0 %v500
      %v717 = vpop.f32.mrf.mxu0
      %v718 = vadd.f32 0.0, %v717
      %719 = vmatmul.f32.gmra.mxu0 %v501
      %v720 = vpop.f32.mrf.mxu0
      %v721 = vadd.f32 0.0, %v720
      %722 = vmatmul.f32.gmra.mxu0 %v502
      %v723 = vpop.f32.mrf.mxu0
      %v724 = vadd.f32 0.0, %v723
      %725 = vmatmul.f32.gmra.mxu0 %v503
      %v726 = vpop.f32.mrf.mxu0
      %v727 = vadd.f32 0.0, %v726
      %728 = vdwg.mxu0
      %v729 = vld [vmem:[%s2] sm:$0x1]
      %v731 = vperm.slane %v729, 0
      %v733 = vmul.f32 %v538, %v731
      %v734 = vmul.f32 %v541, %v731
      %v735 = vmul.f32 %v544, %v731
      %v736 = vmul.f32 %v547, %v731
      %v737 = vmul.f32 %v550, %v731
      %v738 = vmul.f32 %v553, %v731
      %v739 = vmul.f32 %v556, %v731
      %v740 = vmul.f32 %v559, %v731
      %v741 = vmul.f32 %v562, %v731
      %v742 = vmul.f32 %v565, %v731
      %v743 = vmul.f32 %v568, %v731
      %v744 = vmul.f32 %v571, %v731
      %v745 = vmul.f32 %v574, %v731
      %v746 = vmul.f32 %v577, %v731
      %v747 = vmul.f32 %v580, %v731
      %v748 = vmul.f32 %v583, %v731
      %v749 = vmul.f32 %v586, %v731
      %v750 = vmul.f32 %v589, %v731
      %v751 = vmul.f32 %v592, %v731
      %v752 = vmul.f32 %v595, %v731
      %v753 = vmul.f32 %v598, %v731
      %v754 = vmul.f32 %v601, %v731
      %v755 = vmul.f32 %v604, %v731
      %v756 = vmul.f32 %v607, %v731
      %v757 = vmul.f32 %v610, %v731
      %v758 = vmul.f32 %v613, %v731
      %v759 = vmul.f32 %v616, %v731
      %v760 = vmul.f32 %v619, %v731
      %v761 = vmul.f32 %v622, %v731
      %v762 = vmul.f32 %v625, %v731
      %v763 = vmul.f32 %v628, %v731
      %v764 = vmul.f32 %v631, %v731
      %v765 = vmul.f32 %v634, %v731
      %v766 = vmul.f32 %v637, %v731
      %v767 = vmul.f32 %v640, %v731
      %v768 = vmul.f32 %v643, %v731
      %v769 = vmul.f32 %v646, %v731
      %v770 = vmul.f32 %v649, %v731
      %v771 = vmul.f32 %v652, %v731
      %v772 = vmul.f32 %v655, %v731
      %v773 = vmul.f32 %v658, %v731
      %v774 = vmul.f32 %v661, %v731
      %v775 = vmul.f32 %v664, %v731
      %v776 = vmul.f32 %v667, %v731
      %v777 = vmul.f32 %v670, %v731
      %v778 = vmul.f32 %v673, %v731
      %v779 = vmul.f32 %v676, %v731
      %v780 = vmul.f32 %v679, %v731
      %v781 = vmul.f32 %v682, %v731
      %v782 = vmul.f32 %v685, %v731
      %v783 = vmul.f32 %v688, %v731
      %v784 = vmul.f32 %v691, %v731
      %v785 = vmul.f32 %v694, %v731
      %v786 = vmul.f32 %v697, %v731
      %v787 = vmul.f32 %v700, %v731
      %v788 = vmul.f32 %v703, %v731
      %v789 = vmul.f32 %v706, %v731
      %v790 = vmul.f32 %v709, %v731
      %v791 = vmul.f32 %v712, %v731
      %v792 = vmul.f32 %v715, %v731
      %v793 = vmul.f32 %v718, %v731
      %v794 = vmul.f32 %v721, %v731
      %v795 = vmul.f32 %v724, %v731
      %v796 = vmul.f32 %v727, %v731
      %v797 = vld [vmem:[%s3] sm:$0x1]
      %v799 = vperm.slane %v797, 0
      %v801 = vadd.f32 %v733, %v799
      %v802 = vadd.f32 %v734, %v799
      %v803 = vadd.f32 %v735, %v799
      %v804 = vadd.f32 %v736, %v799
      %v805 = vadd.f32 %v737, %v799
      %v806 = vadd.f32 %v738, %v799
      %v807 = vadd.f32 %v739, %v799
      %v808 = vadd.f32 %v740, %v799
      %v809 = vadd.f32 %v741, %v799
      %v810 = vadd.f32 %v742, %v799
      %v811 = vadd.f32 %v743, %v799
      %v812 = vadd.f32 %v744, %v799
      %v813 = vadd.f32 %v745, %v799
      %v814 = vadd.f32 %v746, %v799
      %v815 = vadd.f32 %v747, %v799
      %v816 = vadd.f32 %v748, %v799
      %v817 = vadd.f32 %v749, %v799
      %v818 = vadd.f32 %v750, %v799
      %v819 = vadd.f32 %v751, %v799
      %v820 = vadd.f32 %v752, %v799
      %v821 = vadd.f32 %v753, %v799
      %v822 = vadd.f32 %v754, %v799
      %v823 = vadd.f32 %v755, %v799
      %v824 = vadd.f32 %v756, %v799
      %v825 = vadd.f32 %v757, %v799
      %v826 = vadd.f32 %v758, %v799
      %v827 = vadd.f32 %v759, %v799
      %v828 = vadd.f32 %v760, %v799
      %v829 = vadd.f32 %v761, %v799
      %v830 = vadd.f32 %v762, %v799
      %v831 = vadd.f32 %v763, %v799
      %v832 = vadd.f32 %v764, %v799
      %v833 = vadd.f32 %v765, %v799
      %v834 = vadd.f32 %v766, %v799
      %v835 = vadd.f32 %v767, %v799
      %v836 = vadd.f32 %v768, %v799
      %v837 = vadd.f32 %v769, %v799
      %v838 = vadd.f32 %v770, %v799
      %v839 = vadd.f32 %v771, %v799
      %v840 = vadd.f32 %v772, %v799
      %v841 = vadd.f32 %v773, %v799
      %v842 = vadd.f32 %v774, %v799
      %v843 = vadd.f32 %v775, %v799
      %v844 = vadd.f32 %v776, %v799
      %v845 = vadd.f32 %v777, %v799
      %v846 = vadd.f32 %v778, %v799
      %v847 = vadd.f32 %v779, %v799
      %v848 = vadd.f32 %v780, %v799
      %v849 = vadd.f32 %v781, %v799
      %v850 = vadd.f32 %v782, %v799
      %v851 = vadd.f32 %v783, %v799
      %v852 = vadd.f32 %v784, %v799
      %v853 = vadd.f32 %v785, %v799
      %v854 = vadd.f32 %v786, %v799
      %v855 = vadd.f32 %v787, %v799
      %v856 = vadd.f32 %v788, %v799
      %v857 = vadd.f32 %v789, %v799
      %v858 = vadd.f32 %v790, %v799
      %v859 = vadd.f32 %v791, %v799
      %v860 = vadd.f32 %v792, %v799
      %v861 = vadd.f32 %v793, %v799
      %v862 = vadd.f32 %v794, %v799
      %v863 = vadd.f32 %v795, %v799
      %v864 = vadd.f32 %v796, %v799
      %v865 = vmax.f32 %v801, 0.0
      %v866 = vmax.f32 %v802, 0.0
      %v867 = vmax.f32 %v803, 0.0
      %v868 = vmax.f32 %v804, 0.0
      %v869 = vmax.f32 %v805, 0.0
      %v870 = vmax.f32 %v806, 0.0
      %v871 = vmax.f32 %v807, 0.0
      %v872 = vmax.f32 %v808, 0.0
      %v873 = vmax.f32 %v809, 0.0
      %v874 = vmax.f32 %v810, 0.0
      %v875 = vmax.f32 %v811, 0.0
      %v876 = vmax.f32 %v812, 0.0
      %v877 = vmax.f32 %v813, 0.0
      %v878 = vmax.f32 %v814, 0.0
      %v879 = vmax.f32 %v815, 0.0
      %v880 = vmax.f32 %v816, 0.0
      %v881 = vmax.f32 %v817, 0.0
      %v882 = vmax.f32 %v818, 0.0
      %v883 = vmax.f32 %v819, 0.0
      %v884 = vmax.f32 %v820, 0.0
      %v885 = vmax.f32 %v821, 0.0
      %v886 = vmax.f32 %v822, 0.0
      %v887 = vmax.f32 %v823, 0.0
      %v888 = vmax.f32 %v824, 0.0
      %v889 = vmax.f32 %v825, 0.0
      %v890 = vmax.f32 %v826, 0.0
      %v891 = vmax.f32 %v827, 0.0
      %v892 = vmax.f32 %v828, 0.0
      %v893 = vmax.f32 %v829, 0.0
      %v894 = vmax.f32 %v830, 0.0
      %v895 = vmax.f32 %v831, 0.0
      %v896 = vmax.f32 %v832, 0.0
      %v897 = vmax.f32 %v833, 0.0
      %v898 = vmax.f32 %v834, 0.0
      %v899 = vmax.f32 %v835, 0.0
      %v900 = vmax.f32 %v836, 0.0
      %v901 = vmax.f32 %v837, 0.0
      %v902 = vmax.f32 %v838, 0.0
      %v903 = vmax.f32 %v839, 0.0
      %v904 = vmax.f32 %v840, 0.0
      %v905 = vmax.f32 %v841, 0.0
      %v906 = vmax.f32 %v842, 0.0
      %v907 = vmax.f32 %v843, 0.0
      %v908 = vmax.f32 %v844, 0.0
      %v909 = vmax.f32 %v845, 0.0
      %v910 = vmax.f32 %v846, 0.0
      %v911 = vmax.f32 %v847, 0.0
      %v912 = vmax.f32 %v848, 0.0
      %v913 = vmax.f32 %v849, 0.0
      %v914 = vmax.f32 %v850, 0.0
      %v915 = vmax.f32 %v851, 0.0
      %v916 = vmax.f32 %v852, 0.0
      %v917 = vmax.f32 %v853, 0.0
      %v918 = vmax.f32 %v854, 0.0
      %v919 = vmax.f32 %v855, 0.0
      %v920 = vmax.f32 %v856, 0.0
      %v921 = vmax.f32 %v857, 0.0
      %v922 = vmax.f32 %v858, 0.0
      %v923 = vmax.f32 %v859, 0.0
      %v924 = vmax.f32 %v860, 0.0
      %v925 = vmax.f32 %v861, 0.0
      %v926 = vmax.f32 %v862, 0.0
      %v927 = vmax.f32 %v863, 0.0
      %v928 = vmax.f32 %v864, 0.0
      %v929 = vmax.f32 %v865, %v881
      %v930 = vmax.f32 %v866, %v882
      %v931 = vmax.f32 %v867, %v883
      %v932 = vmax.f32 %v868, %v884
      %v933 = vmax.f32 %v869, %v885
      %v934 = vmax.f32 %v870, %v886
      %v935 = vmax.f32 %v871, %v887
      %v936 = vmax.f32 %v872, %v888
      %v937 = vmax.f32 %v873, %v889
      %v938 = vmax.f32 %v874, %v890
      %v939 = vmax.f32 %v875, %v891
      %v940 = vmax.f32 %v876, %v892
      %v941 = vmax.f32 %v877, %v893
      %v942 = vmax.f32 %v878, %v894
      %v943 = vmax.f32 %v879, %v895
      %v944 = vmax.f32 %v880, %v896
      %v945 = vmax.f32 %v897, %v913
      %v946 = vmax.f32 %v898, %v914
      %v947 = vmax.f32 %v899, %v915
      %v948 = vmax.f32 %v900, %v916
      %v949 = vmax.f32 %v901, %v917
      %v950 = vmax.f32 %v902, %v918
      %v951 = vmax.f32 %v903, %v919
      %v952 = vmax.f32 %v904, %v920
      %v953 = vmax.f32 %v905, %v921
      %v954 = vmax.f32 %v906, %v922
      %v955 = vmax.f32 %v907, %v923
      %v956 = vmax.f32 %v908, %v924
      %v957 = vmax.f32 %v909, %v925
      %v958 = vmax.f32 %v910, %v926
      %v959 = vmax.f32 %v911, %v927
      %v960 = vmax.f32 %v912, %v928
      %v961 = vmax.f32 %v929, %v945
      %v962 = vmax.f32 %v930, %v946
      %v963 = vmax.f32 %v931, %v947
      %v964 = vmax.f32 %v932, %v948
      %v965 = vmax.f32 %v933, %v949
      %v966 = vmax.f32 %v934, %v950
      %v967 = vmax.f32 %v935, %v951
      %v968 = vmax.f32 %v936, %v952
      %v969 = vmax.f32 %v937, %v953
      %v970 = vmax.f32 %v938, %v954
      %v971 = vmax.f32 %v939, %v955
      %v972 = vmax.f32 %v940, %v956
      %v973 = vmax.f32 %v941, %v957
      %v974 = vmax.f32 %v942, %v958
      %v975 = vmax.f32 %v943, %v959
      %v976 = vmax.f32 %v944, %v960
      %v977 = vld [vmem:[%s431] sm:$0x1]
      %v978 = vld [vmem:[%s7] sm:$0xff]
      %v979 = vld [vmem:[%s7 + $0x8] sm:$0xff]
      %v980 = vld [vmem:[%s7 + $0x10] sm:$0xff]
      %v981 = vld [vmem:[%s7 + $0x18] sm:$0xff]
      %v982 = vld [vmem:[%s7 + $0x20] sm:$0xff]
      %v983 = vld [vmem:[%s7 + $0x28] sm:$0xff]
      %v984 = vld [vmem:[%s7 + $0x30] sm:$0xff]
      %v985 = vld [vmem:[%s7 + $0x38] sm:$0xff]
      %v986 = vld [vmem:[%s7 + $0x40] sm:$0xff]
      %v987 = vld [vmem:[%s7 + $0x48] sm:$0xff]
      %v988 = vld [vmem:[%s7 + $0x50] sm:$0xff]
      %v989 = vld [vmem:[%s7 + $0x58] sm:$0xff]
      %v990 = vld [vmem:[%s7 + $0x60] sm:$0xff]
      %v991 = vld [vmem:[%s7 + $0x68] sm:$0xff]
      %v992 = vld [vmem:[%s7 + $0x70] sm:$0xff]
      %v993 = vld [vmem:[%s7 + $0x78] sm:$0xff]
      %995 = vset.pattern.permute.xlu0 0
      %996 = vperm.xlu0 %995, %v978
      %v997 = vpop.permute.xlu0 %996
      %1000 = vset.pattern.permute.xlu0 0
      %1001 = vperm.xlu0 %1000, %v979
      %v1002 = vpop.permute.xlu0 %1001
      %1005 = vset.pattern.permute.xlu0 0
      %1006 = vperm.xlu0 %1005, %v980
      %v1007 = vpop.permute.xlu0 %1006
      %1010 = vset.pattern.permute.xlu0 0
      %1011 = vperm.xlu0 %1010, %v981
      %v1012 = vpop.permute.xlu0 %1011
      %1015 = vset.pattern.permute.xlu0 0
      %1016 = vperm.xlu0 %1015, %v982
      %v1017 = vpop.permute.xlu0 %1016
      %1020 = vset.pattern.permute.xlu0 0
      %1021 = vperm.xlu0 %1020, %v983
      %v1022 = vpop.permute.xlu0 %1021
      %1025 = vset.pattern.permute.xlu0 0
      %1026 = vperm.xlu0 %1025, %v984
      %v1027 = vpop.permute.xlu0 %1026
      %1030 = vset.pattern.permute.xlu0 0
      %1031 = vperm.xlu0 %1030, %v985
      %v1032 = vpop.permute.xlu0 %1031
      %1035 = vset.pattern.permute.xlu0 0
      %1036 = vperm.xlu0 %1035, %v986
      %v1037 = vpop.permute.xlu0 %1036
      %1040 = vset.pattern.permute.xlu0 0
      %1041 = vperm.xlu0 %1040, %v987
      %v1042 = vpop.permute.xlu0 %1041
      %1045 = vset.pattern.permute.xlu0 0
      %1046 = vperm.xlu0 %1045, %v988
      %v1047 = vpop.permute.xlu0 %1046
      %1050 = vset.pattern.permute.xlu0 0
      %1051 = vperm.xlu0 %1050, %v989
      %v1052 = vpop.permute.xlu0 %1051
      %1055 = vset.pattern.permute.xlu0 0
      %1056 = vperm.xlu0 %1055, %v990
      %v1057 = vpop.permute.xlu0 %1056
      %1060 = vset.pattern.permute.xlu0 0
      %1061 = vperm.xlu0 %1060, %v991
      %v1062 = vpop.permute.xlu0 %1061
      %1065 = vset.pattern.permute.xlu0 0
      %1066 = vperm.xlu0 %1065, %v992
      %v1067 = vpop.permute.xlu0 %1066
      %1070 = vset.pattern.permute.xlu0 0
      %1071 = vperm.xlu0 %1070, %v993
      %v1072 = vpop.permute.xlu0 %1071
      %v1074 = vmul.f32 %v961, %v997
      %v1075 = vmul.f32 %v962, %v1002
      %v1076 = vmul.f32 %v963, %v1007
      %v1077 = vmul.f32 %v964, %v1012
      %v1078 = vmul.f32 %v965, %v1017
      %v1079 = vmul.f32 %v966, %v1022
      %v1080 = vmul.f32 %v967, %v1027
      %v1081 = vmul.f32 %v968, %v1032
      %v1082 = vmul.f32 %v969, %v1037
      %v1083 = vmul.f32 %v970, %v1042
      %v1084 = vmul.f32 %v971, %v1047
      %v1085 = vmul.f32 %v972, %v1052
      %v1086 = vmul.f32 %v973, %v1057
      %v1087 = vmul.f32 %v974, %v1062
      %v1088 = vmul.f32 %v975, %v1067
      %v1089 = vmul.f32 %v976, %v1072
      %v1091 = vperm.slane %v977, 0
      %v1093 = vmul.f32 %v1074, %v1091
      %v1094 = vmul.f32 %v1075, %v1091
      %v1095 = vmul.f32 %v1076, %v1091
      %v1096 = vmul.f32 %v1077, %v1091
      %v1097 = vmul.f32 %v1078, %v1091
      %v1098 = vmul.f32 %v1079, %v1091
      %v1099 = vmul.f32 %v1080, %v1091
      %v1100 = vmul.f32 %v1081, %v1091
      %v1101 = vmul.f32 %v1082, %v1091
      %v1102 = vmul.f32 %v1083, %v1091
      %v1103 = vmul.f32 %v1084, %v1091
      %v1104 = vmul.f32 %v1085, %v1091
      %v1105 = vmul.f32 %v1086, %v1091
      %v1106 = vmul.f32 %v1087, %v1091
      %v1107 = vmul.f32 %v1088, %v1091
      %v1108 = vmul.f32 %v1089, %v1091
      %1109 = vst.msk [vmem:[#allocation2 + $0x8] sm:$0xff] %vm437, %v1093
      %1110 = vst.msk [vmem:[#allocation2 + $0x10] sm:$0xff] %vm437, %v1094
      %1111 = vst.msk [vmem:[#allocation2 + $0x18] sm:$0xff] %vm437, %v1095
      %1112 = vst.msk [vmem:[#allocation2 + $0x20] sm:$0xff] %vm437, %v1096
      %1113 = vst.msk [vmem:[#allocation2 + $0x28] sm:$0xff] %vm437, %v1097
      %1114 = vst.msk [vmem:[#allocation2 + $0x30] sm:$0xff] %vm437, %v1098
      %1115 = vst.msk [vmem:[#allocation2 + $0x38] sm:$0xff] %vm437, %v1099
      %1116 = vst.msk [vmem:[#allocation2 + $0x40] sm:$0xff] %vm437, %v1100
      %1117 = vst.msk [vmem:[#allocation2 + $0x48] sm:$0xff] %vm437, %v1101
      %1118 = vst.msk [vmem:[#allocation2 + $0x50] sm:$0xff] %vm437, %v1102
      %1119 = vst.msk [vmem:[#allocation2 + $0x58] sm:$0xff] %vm437, %v1103
      %1120 = vst.msk [vmem:[#allocation2 + $0x60] sm:$0xff] %vm437, %v1104
      %1121 = vst.msk [vmem:[#allocation2 + $0x68] sm:$0xff] %vm437, %v1105
      %1122 = vst.msk [vmem:[#allocation2 + $0x70] sm:$0xff] %vm437, %v1106
      %1123 = vst.msk [vmem:[#allocation2 + $0x78] sm:$0xff] %vm437, %v1107
      %1124 = vst.msk [vmem:[#allocation2 + $0x80] sm:$0xff] %vm437, %v1108
      %v1125 = vld [vmem:[#allocation2] sm:$0xff]
      %v1126 = vld [vmem:[#allocation2 + $0x8] sm:$0xff]
      %v1127 = vld [vmem:[#allocation2 + $0x10] sm:$0xff]
      %v1128 = vld [vmem:[#allocation2 + $0x18] sm:$0xff]
      %v1129 = vld [vmem:[#allocation2 + $0x20] sm:$0xff]
      %v1130 = vld [vmem:[#allocation2 + $0x28] sm:$0xff]
      %v1131 = vld [vmem:[#allocation2 + $0x30] sm:$0xff]
      %v1132 = vld [vmem:[#allocation2 + $0x38] sm:$0xff]
      %v1133 = vld [vmem:[#allocation2 + $0x40] sm:$0xff]
      %v1134 = vld [vmem:[#allocation2 + $0x48] sm:$0xff]
      %v1135 = vld [vmem:[#allocation2 + $0x50] sm:$0xff]
      %v1136 = vld [vmem:[#allocation2 + $0x58] sm:$0xff]
      %v1137 = vld [vmem:[#allocation2 + $0x60] sm:$0xff]
      %v1138 = vld [vmem:[#allocation2 + $0x68] sm:$0xff]
      %v1139 = vld [vmem:[#allocation2 + $0x70] sm:$0xff]
      %v1140 = vld [vmem:[#allocation2 + $0x78] sm:$0xff]
      %v1141 = vld [vmem:[#allocation2 + $0x80] sm:$0xff]
      %v1142 = vld [vmem:[#allocation2 + $0x88] sm:$0xff]
      %v1143 = vrot.slane %v1125, 7
      %v1144 = vrot.slane %v1126, 7
      %v1145 = vrot.slane %v1127, 7
      %v1146 = vrot.slane %v1128, 7
      %v1147 = vrot.slane %v1129, 7
      %v1148 = vrot.slane %v1130, 7
      %v1149 = vrot.slane %v1131, 7
      %v1150 = vrot.slane %v1132, 7
      %v1151 = vrot.slane %v1133, 7
      %v1152 = vrot.slane %v1134, 7
      %v1153 = vrot.slane %v1135, 7
      %v1154 = vrot.slane %v1136, 7
      %v1155 = vrot.slane %v1137, 7
      %v1156 = vrot.slane %v1138, 7
      %v1157 = vrot.slane %v1139, 7
      %v1158 = vrot.slane %v1140, 7
      %v1159 = vlaneseq
      %v1160 = vshrl.u32 %v1159, 7
      %vm1161 = vcmp.lt.s32.totalorder %v1160, 1
      %v1162 = vsel %vm1161, %v1157, %v1158
      %v1163 = vsel %vm1161, %v1156, %v1157
      %v1164 = vsel %vm1161, %v1155, %v1156
      %v1165 = vsel %vm1161, %v1154, %v1155
      %v1166 = vsel %vm1161, %v1153, %v1154
      %v1167 = vsel %vm1161, %v1152, %v1153
      %v1168 = vsel %vm1161, %v1151, %v1152
      %v1169 = vsel %vm1161, %v1150, %v1151
      %v1170 = vsel %vm1161, %v1149, %v1150
      %v1171 = vsel %vm1161, %v1148, %v1149
      %v1172 = vsel %vm1161, %v1147, %v1148
      %v1173 = vsel %vm1161, %v1146, %v1147
      %v1174 = vsel %vm1161, %v1145, %v1146
      %v1175 = vsel %vm1161, %v1144, %v1145
      %v1176 = vsel %vm1161, %v1143, %v1144
      %v1177 = vsel %vm1161, %v1158, %v1143
      %v1178 = vrot.slane %v1125, 1
      %v1179 = vrot.slane %v1126, 1
      %v1180 = vrot.slane %v1127, 1
      %v1181 = vrot.slane %v1128, 1
      %v1182 = vrot.slane %v1129, 1
      %v1183 = vrot.slane %v1130, 1
      %v1184 = vrot.slane %v1131, 1
      %v1185 = vrot.slane %v1132, 1
      %v1186 = vrot.slane %v1133, 1
      %v1187 = vrot.slane %v1134, 1
      %v1188 = vrot.slane %v1135, 1
      %v1189 = vrot.slane %v1136, 1
      %v1190 = vrot.slane %v1137, 1
      %v1191 = vrot.slane %v1138, 1
      %v1192 = vrot.slane %v1139, 1
      %v1193 = vrot.slane %v1140, 1
      %vm1194 = vcmp.lt.s32.totalorder %v1160, 7
      %v1195 = vsel %vm1194, %v1192, %v1193
      %v1196 = vsel %vm1194, %v1191, %v1192
      %v1197 = vsel %vm1194, %v1190, %v1191
      %v1198 = vsel %vm1194, %v1189, %v1190
      %v1199 = vsel %vm1194, %v1188, %v1189
      %v1200 = vsel %vm1194, %v1187, %v1188
      %v1201 = vsel %vm1194, %v1186, %v1187
      %v1202 = vsel %vm1194, %v1185, %v1186
      %v1203 = vsel %vm1194, %v1184, %v1185
      %v1204 = vsel %vm1194, %v1183, %v1184
      %v1205 = vsel %vm1194, %v1182, %v1183
      %v1206 = vsel %vm1194, %v1181, %v1182
      %v1207 = vsel %vm1194, %v1180, %v1181
      %v1208 = vsel %vm1194, %v1179, %v1180
      %v1209 = vsel %vm1194, %v1178, %v1179
      %v1210 = vsel %vm1194, %v1193, %v1178
      %v1211 = vrot.slane %v1141, 7
      %v1212 = vsel %vm1161, %v1158, %v1211
      %v1213 = vsel %vm1161, %v1211, %v1144
      %v1214 = vrot.slane %v1141, 1
      %v1215 = vsel %vm1194, %v1193, %v1214
      %v1216 = vsel %vm1194, %v1214, %v1179
      %v1217 = vrot.slane %v1142, 7
      %v1218 = vsel %vm1161, %v1211, %v1217
      %v1219 = vsel %vm1161, %v1217, %v1145
      %v1220 = vrot.slane %v1142, 1
      %v1221 = vsel %vm1194, %v1214, %v1220
      %v1222 = vsel %vm1194, %v1220, %v1180
      %1239 = vrot.lane.b32.xlu0 %v1125, 64
      %v1240 = vpop.permute.xlu0 %1239
      %1241 = vrot.lane.b32.xlu0 %v1126, 64
      %v1242 = vpop.permute.xlu0 %1241
      %1243 = vrot.lane.b32.xlu0 %v1127, 64
      %v1244 = vpop.permute.xlu0 %1243
      %1245 = vrot.lane.b32.xlu0 %v1128, 64
      %v1246 = vpop.permute.xlu0 %1245
      %1247 = vrot.lane.b32.xlu0 %v1129, 64
      %v1248 = vpop.permute.xlu0 %1247
      %1249 = vrot.lane.b32.xlu0 %v1130, 64
      %v1250 = vpop.permute.xlu0 %1249
      %1251 = vrot.lane.b32.xlu0 %v1131, 64
      %v1252 = vpop.permute.xlu0 %1251
      %1253 = vrot.lane.b32.xlu0 %v1132, 64
      %v1254 = vpop.permute.xlu0 %1253
      %1255 = vrot.lane.b32.xlu0 %v1133, 64
      %v1256 = vpop.permute.xlu0 %1255
      %1257 = vrot.lane.b32.xlu0 %v1134, 64
      %v1258 = vpop.permute.xlu0 %1257
      %1259 = vrot.lane.b32.xlu0 %v1135, 64
      %v1260 = vpop.permute.xlu0 %1259
      %1261 = vrot.lane.b32.xlu0 %v1136, 64
      %v1262 = vpop.permute.xlu0 %1261
      %1263 = vrot.lane.b32.xlu0 %v1137, 64
      %v1264 = vpop.permute.xlu0 %1263
      %1265 = vrot.lane.b32.xlu0 %v1138, 64
      %v1266 = vpop.permute.xlu0 %1265
      %1267 = vrot.lane.b32.xlu0 %v1139, 64
      %v1268 = vpop.permute.xlu0 %1267
      %1269 = vrot.lane.b32.xlu0 %v1140, 64
      %v1270 = vpop.permute.xlu0 %1269
      %1303 = vrot.lane.b32.xlu0 %v1213, 64
      %v1304 = vpop.permute.xlu0 %1303
      %1305 = vrot.lane.b32.xlu0 %v1175, 64
      %v1306 = vpop.permute.xlu0 %1305
      %1307 = vrot.lane.b32.xlu0 %v1174, 64
      %v1308 = vpop.permute.xlu0 %1307
      %1309 = vrot.lane.b32.xlu0 %v1173, 64
      %v1310 = vpop.permute.xlu0 %1309
      %1311 = vrot.lane.b32.xlu0 %v1172, 64
      %v1312 = vpop.permute.xlu0 %1311
      %1313 = vrot.lane.b32.xlu0 %v1171, 64
      %v1314 = vpop.permute.xlu0 %1313
      %1315 = vrot.lane.b32.xlu0 %v1170, 64
      %v1316 = vpop.permute.xlu0 %1315
      %1317 = vrot.lane.b32.xlu0 %v1169, 64
      %v1318 = vpop.permute.xlu0 %1317
      %1319 = vrot.lane.b32.xlu0 %v1168, 64
      %v1320 = vpop.permute.xlu0 %1319
      %1321 = vrot.lane.b32.xlu0 %v1167, 64
      %v1322 = vpop.permute.xlu0 %1321
      %1323 = vrot.lane.b32.xlu0 %v1166, 64
      %v1324 = vpop.permute.xlu0 %1323
      %1325 = vrot.lane.b32.xlu0 %v1165, 64
      %v1326 = vpop.permute.xlu0 %1325
      %1327 = vrot.lane.b32.xlu0 %v1164, 64
      %v1328 = vpop.permute.xlu0 %1327
      %1329 = vrot.lane.b32.xlu0 %v1163, 64
      %v1330 = vpop.permute.xlu0 %1329
      %1331 = vrot.lane.b32.xlu0 %v1162, 64
      %v1332 = vpop.permute.xlu0 %1331
      %1333 = vrot.lane.b32.xlu0 %v1212, 64
      %v1334 = vpop.permute.xlu0 %1333
      %1367 = vrot.lane.b32.xlu0 %v1208, 64
      %v1368 = vpop.permute.xlu0 %1367
      %1369 = vrot.lane.b32.xlu0 %v1207, 64
      %v1370 = vpop.permute.xlu0 %1369
      %1371 = vrot.lane.b32.xlu0 %v1206, 64
      %v1372 = vpop.permute.xlu0 %1371
      %1373 = vrot.lane.b32.xlu0 %v1205, 64
      %v1374 = vpop.permute.xlu0 %1373
      %1375 = vrot.lane.b32.xlu0 %v1204, 64
      %v1376 = vpop.permute.xlu0 %1375
      %1377 = vrot.lane.b32.xlu0 %v1203, 64
      %v1378 = vpop.permute.xlu0 %1377
      %1379 = vrot.lane.b32.xlu0 %v1202, 64
      %v1380 = vpop.permute.xlu0 %1379
      %1381 = vrot.lane.b32.xlu0 %v1201, 64
      %v1382 = vpop.permute.xlu0 %1381
      %1383 = vrot.lane.b32.xlu0 %v1200, 64
      %v1384 = vpop.permute.xlu0 %1383
      %1385 = vrot.lane.b32.xlu0 %v1199, 64
      %v1386 = vpop.permute.xlu0 %1385
      %1387 = vrot.lane.b32.xlu0 %v1198, 64
      %v1388 = vpop.permute.xlu0 %1387
      %1389 = vrot.lane.b32.xlu0 %v1197, 64
      %v1390 = vpop.permute.xlu0 %1389
      %1391 = vrot.lane.b32.xlu0 %v1196, 64
      %v1392 = vpop.permute.xlu0 %1391
      %1393 = vrot.lane.b32.xlu0 %v1195, 64
      %v1394 = vpop.permute.xlu0 %1393
      %1395 = vrot.lane.b32.xlu0 %v1215, 64
      %v1396 = vpop.permute.xlu0 %1395
      %1397 = vrot.lane.b32.xlu0 %v1216, 64
      %v1398 = vpop.permute.xlu0 %1397
      %1417 = vrot.lane.b32.xlu0 %v1141, 64
      %v1418 = vpop.permute.xlu0 %1417
      %1419 = vrot.lane.b32.xlu0 %v1142, 64
      %v1420 = vpop.permute.xlu0 %1419
      %v1423 = vsel %vm437, %v1177, %v1240
      %v1424 = vsel %vm437, %v1176, %v1242
      %v1425 = vsel %vm437, %v1175, %v1244
      %v1426 = vsel %vm437, %v1174, %v1246
      %v1427 = vsel %vm437, %v1173, %v1248
      %v1428 = vsel %vm437, %v1172, %v1250
      %v1429 = vsel %vm437, %v1171, %v1252
      %v1430 = vsel %vm437, %v1170, %v1254
      %v1431 = vsel %vm437, %v1169, %v1256
      %v1432 = vsel %vm437, %v1168, %v1258
      %v1433 = vsel %vm437, %v1167, %v1260
      %v1434 = vsel %vm437, %v1166, %v1262
      %v1435 = vsel %vm437, %v1165, %v1264
      %v1436 = vsel %vm437, %v1164, %v1266
      %v1437 = vsel %vm437, %v1163, %v1268
      %v1438 = vsel %vm437, %v1162, %v1270
      %v1439 = vsel %vm437, %v1209, %v1304
      %v1440 = vsel %vm437, %v1208, %v1306
      %v1441 = vsel %vm437, %v1207, %v1308
      %v1442 = vsel %vm437, %v1206, %v1310
      %v1443 = vsel %vm437, %v1205, %v1312
      %v1444 = vsel %vm437, %v1204, %v1314
      %v1445 = vsel %vm437, %v1203, %v1316
      %v1446 = vsel %vm437, %v1202, %v1318
      %v1447 = vsel %vm437, %v1201, %v1320
      %v1448 = vsel %vm437, %v1200, %v1322
      %v1449 = vsel %vm437, %v1199, %v1324
      %v1450 = vsel %vm437, %v1198, %v1326
      %v1451 = vsel %vm437, %v1197, %v1328
      %v1452 = vsel %vm437, %v1196, %v1330
      %v1453 = vsel %vm437, %v1195, %v1332
      %v1454 = vsel %vm437, %v1210, %v1334
      %v1455 = vsel %vm437, %v1126, %v1368
      %v1456 = vsel %vm437, %v1127, %v1370
      %v1457 = vsel %vm437, %v1128, %v1372
      %v1458 = vsel %vm437, %v1129, %v1374
      %v1459 = vsel %vm437, %v1130, %v1376
      %v1460 = vsel %vm437, %v1131, %v1378
      %v1461 = vsel %vm437, %v1132, %v1380
      %v1462 = vsel %vm437, %v1133, %v1382
      %v1463 = vsel %vm437, %v1134, %v1384
      %v1464 = vsel %vm437, %v1135, %v1386
      %v1465 = vsel %vm437, %v1136, %v1388
      %v1466 = vsel %vm437, %v1137, %v1390
      %v1467 = vsel %vm437, %v1138, %v1392
      %v1468 = vsel %vm437, %v1139, %v1394
      %v1469 = vsel %vm437, %v1140, %v1396
      %v1470 = vsel %vm437, %v1141, %v1398
      %v1471 = vsel %vm437, %v1219, %v1244
      %v1472 = vsel %vm437, %v1212, %v1418
      %v1473 = vsel %vm437, %v1218, %v1420
      %v1474 = vpack.c.bf16 %v1424, %v1423
      %v1475 = vpack.c.bf16 %v1440, %v1439
      %v1476 = vpack.c.bf16 %v1456, %v1455
      %v1477 = vpack.c.bf16 %v1426, %v1471
      %v1478 = vpack.c.bf16 %v1206, %v1207
      %v1479 = vpack.c.bf16 %v1426, %v1425
      %v1480 = vpack.c.bf16 %v1442, %v1441
      %v1481 = vpack.c.bf16 %v1458, %v1457
      %v1482 = vpack.c.bf16 %v1428, %v1427
      %v1483 = vpack.c.bf16 %v1204, %v1205
      %v1484 = vpack.c.bf16 %v1444, %v1443
      %v1485 = vpack.c.bf16 %v1460, %v1459
      %v1486 = vpack.c.bf16 %v1430, %v1429
      %v1487 = vpack.c.bf16 %v1202, %v1203
      %v1488 = vpack.c.bf16 %v1446, %v1445
      %v1489 = vpack.c.bf16 %v1462, %v1461
      %v1490 = vpack.c.bf16 %v1432, %v1431
      %v1491 = vpack.c.bf16 %v1200, %v1201
      %v1492 = vpack.c.bf16 %v1448, %v1447
      %v1493 = vpack.c.bf16 %v1464, %v1463
      %v1494 = vpack.c.bf16 %v1434, %v1433
      %v1495 = vpack.c.bf16 %v1198, %v1199
      %v1496 = vpack.c.bf16 %v1450, %v1449
      %v1497 = vpack.c.bf16 %v1466, %v1465
      %v1498 = vpack.c.bf16 %v1436, %v1435
      %v1499 = vpack.c.bf16 %v1196, %v1197
      %v1500 = vpack.c.bf16 %v1452, %v1451
      %v1501 = vpack.c.bf16 %v1468, %v1467
      %v1502 = vpack.c.bf16 %v1438, %v1437
      %v1503 = vpack.c.bf16 %v1215, %v1195
      %v1504 = vpack.c.bf16 %v1454, %v1453
      %v1505 = vpack.c.bf16 %v1470, %v1469
      %v1506 = vpack.c.bf16 %v1473, %v1472
      %v1507 = vpack.c.bf16 %v1222, %v1221
      %v1508 = vld [vmem:[%s5] sm:$0xf]
      %v1509 = vld [vmem:[%s5 + $0x4] sm:$0xf]
      %v1510 = vld [vmem:[%s5 + $0x8] sm:$0xf]
      %v1511 = vld [vmem:[%s5 + $0xc] sm:$0xf]
      %v1512 = vld [vmem:[%s5 + $0x10] sm:$0xf]
      %v1513 = vld [vmem:[%s5 + $0x14] sm:$0xf]
      %v1514 = vld [vmem:[%s5 + $0x18] sm:$0xf]
      %v1515 = vld [vmem:[%s5 + $0x1c] sm:$0xf]
      %v1516 = vld [vmem:[%s5 + $0x20] sm:$0xf]
      %v1517 = vld [vmem:[%s5 + $0x24] sm:$0xf]
      %v1518 = vld [vmem:[%s5 + $0x28] sm:$0xf]
      %v1519 = vld [vmem:[%s5 + $0x2c] sm:$0xf]
      %v1520 = vld [vmem:[%s5 + $0x30] sm:$0xf]
      %v1521 = vld [vmem:[%s5 + $0x34] sm:$0xf]
      %v1522 = vld [vmem:[%s5 + $0x38] sm:$0xf]
      %v1523 = vld [vmem:[%s5 + $0x3c] sm:$0xf]
      %v1524 = vld [vmem:[%s5 + $0x40] sm:$0xf]
      %v1525 = vld [vmem:[%s5 + $0x44] sm:$0xf]
      %v1526 = vld [vmem:[%s5 + $0x48] sm:$0xf]
      %v1527 = vld [vmem:[%s5 + $0x4c] sm:$0xf]
      %v1528 = vld [vmem:[%s5 + $0x50] sm:$0xf]
      %v1529 = vld [vmem:[%s5 + $0x54] sm:$0xf]
      %v1530 = vld [vmem:[%s5 + $0x58] sm:$0xf]
      %v1531 = vld [vmem:[%s5 + $0x5c] sm:$0xf]
      %v1532 = vld [vmem:[%s5 + $0x60] sm:$0xf]
      %v1533 = vld [vmem:[%s5 + $0x64] sm:$0xf]
      %v1534 = vld [vmem:[%s5 + $0x68] sm:$0xf]
      %v1535 = vld [vmem:[%s5 + $0x6c] sm:$0xf]
      %v1536 = vld [vmem:[%s5 + $0x70] sm:$0xf]
      %v1537 = vld [vmem:[%s5 + $0x74] sm:$0xf]
      %v1538 = vld [vmem:[%s5 + $0x78] sm:$0xf]
      %v1539 = vld [vmem:[%s5 + $0x7c] sm:$0xf]
      %v1540 = vld [vmem:[%s5 + $0x80] sm:$0xf]
      %v1541 = vld [vmem:[%s5 + $0x84] sm:$0xf]
      %v1542 = vld [vmem:[%s5 + $0x88] sm:$0xf]
      %v1543 = vld [vmem:[%s5 + $0x8c] sm:$0xf]
      %v1544 = vld [vmem:[%s5 + $0x90] sm:$0xf]
      %v1545 = vld [vmem:[%s5 + $0x94] sm:$0xf]
      %v1546 = vld [vmem:[%s5 + $0x98] sm:$0xf]
      %v1547 = vld [vmem:[%s5 + $0x9c] sm:$0xf]
      %v1548 = vld [vmem:[%s5 + $0xa0] sm:$0xf]
      %v1549 = vld [vmem:[%s5 + $0xa4] sm:$0xf]
      %v1550 = vld [vmem:[%s5 + $0xa8] sm:$0xf]
      %v1551 = vld [vmem:[%s5 + $0xac] sm:$0xf]
      %v1552 = vld [vmem:[%s5 + $0xb0] sm:$0xf]
      %v1553 = vld [vmem:[%s5 + $0xb4] sm:$0xf]
      %v1554 = vld [vmem:[%s5 + $0xb8] sm:$0xf]
      %v1555 = vld [vmem:[%s5 + $0xbc] sm:$0xf]
      %v1556 = vld [vmem:[%s5 + $0xc0] sm:$0xf]
      %v1557 = vld [vmem:[%s5 + $0xc4] sm:$0xf]
      %v1558 = vld [vmem:[%s5 + $0xc8] sm:$0xf]
      %v1559 = vld [vmem:[%s5 + $0xcc] sm:$0xf]
      %v1560 = vld [vmem:[%s5 + $0xd0] sm:$0xf]
      %v1561 = vld [vmem:[%s5 + $0xd4] sm:$0xf]
      %v1562 = vld [vmem:[%s5 + $0xd8] sm:$0xf]
      %v1563 = vld [vmem:[%s5 + $0xdc] sm:$0xf]
      %v1564 = vld [vmem:[%s5 + $0xe0] sm:$0xf]
      %v1565 = vld [vmem:[%s5 + $0xe4] sm:$0xf]
      %v1566 = vld [vmem:[%s5 + $0xe8] sm:$0xf]
      %v1567 = vld [vmem:[%s5 + $0xec] sm:$0xf]
      %v1568 = vld [vmem:[%s5 + $0xf0] sm:$0xf]
      %v1569 = vld [vmem:[%s5 + $0xf4] sm:$0xf]
      %v1570 = vld [vmem:[%s5 + $0xf8] sm:$0xf]
      %v1571 = vld [vmem:[%s5 + $0xfc] sm:$0xf]
      %v1572 = vld [vmem:[%s5 + $0x100] sm:$0xf]
      %v1573 = vld [vmem:[%s5 + $0x104] sm:$0xf]
      %v1574 = vld [vmem:[%s5 + $0x108] sm:$0xf]
      %v1575 = vld [vmem:[%s5 + $0x10c] sm:$0xf]
      %v1576 = vld [vmem:[%s5 + $0x110] sm:$0xf]
      %v1577 = vld [vmem:[%s5 + $0x114] sm:$0xf]
      %v1578 = vld [vmem:[%s5 + $0x118] sm:$0xf]
      %v1579 = vld [vmem:[%s5 + $0x11c] sm:$0xf]
      %v1652 = vunpack.c.l.b16 %v1508
      %v1653 = vunpack.c.l.b16 %v1509
      %v1654 = vunpack.c.l.b16 %v1510
      %v1655 = vunpack.c.l.b16 %v1511
      %v1656 = vunpack.c.l.b16 %v1512
      %v1657 = vunpack.c.l.b16 %v1513
      %v1658 = vunpack.c.l.b16 %v1514
      %v1659 = vunpack.c.l.b16 %v1515
      %v1660 = vunpack.c.l.b16 %v1516
      %v1661 = vunpack.c.l.b16 %v1517
      %v1662 = vunpack.c.l.b16 %v1518
      %v1663 = vunpack.c.l.b16 %v1519
      %v1664 = vunpack.c.l.b16 %v1520
      %v1665 = vunpack.c.l.b16 %v1521
      %v1666 = vunpack.c.l.b16 %v1522
      %v1667 = vunpack.c.l.b16 %v1523
      %v1668 = vunpack.c.l.b16 %v1524
      %v1669 = vunpack.c.l.b16 %v1525
      %v1670 = vunpack.c.l.b16 %v1526
      %v1671 = vunpack.c.l.b16 %v1527
      %v1672 = vunpack.c.l.b16 %v1528
      %v1673 = vunpack.c.l.b16 %v1529
      %v1674 = vunpack.c.l.b16 %v1530
      %v1675 = vunpack.c.l.b16 %v1531
      %v1676 = vunpack.c.l.b16 %v1532
      %v1677 = vunpack.c.l.b16 %v1533
      %v1678 = vunpack.c.l.b16 %v1534
      %v1679 = vunpack.c.l.b16 %v1535
      %v1680 = vunpack.c.l.b16 %v1536
      %v1681 = vunpack.c.l.b16 %v1537
      %v1682 = vunpack.c.l.b16 %v1538
      %v1683 = vunpack.c.l.b16 %v1539
      %v1684 = vunpack.c.l.b16 %v1540
      %v1685 = vunpack.c.l.b16 %v1541
      %v1686 = vunpack.c.l.b16 %v1542
      %v1687 = vunpack.c.l.b16 %v1543
      %v1688 = vunpack.c.l.b16 %v1544
      %v1689 = vunpack.c.l.b16 %v1545
      %v1690 = vunpack.c.l.b16 %v1546
      %v1691 = vunpack.c.l.b16 %v1547
      %v1692 = vunpack.c.l.b16 %v1548
      %v1693 = vunpack.c.l.b16 %v1549
      %v1694 = vunpack.c.l.b16 %v1550
      %v1695 = vunpack.c.l.b16 %v1551
      %v1696 = vunpack.c.l.b16 %v1552
      %v1697 = vunpack.c.l.b16 %v1553
      %v1698 = vunpack.c.l.b16 %v1554
      %v1699 = vunpack.c.l.b16 %v1555
      %v1700 = vunpack.c.l.b16 %v1556
      %v1701 = vunpack.c.l.b16 %v1557
      %v1702 = vunpack.c.l.b16 %v1558
      %v1703 = vunpack.c.l.b16 %v1559
      %v1704 = vunpack.c.l.b16 %v1560
      %v1705 = vunpack.c.l.b16 %v1561
      %v1706 = vunpack.c.l.b16 %v1562
      %v1707 = vunpack.c.l.b16 %v1563
      %v1708 = vunpack.c.l.b16 %v1564
      %v1709 = vunpack.c.l.b16 %v1565
      %v1710 = vunpack.c.l.b16 %v1566
      %v1711 = vunpack.c.l.b16 %v1567
      %v1712 = vunpack.c.l.b16 %v1568
      %v1713 = vunpack.c.l.b16 %v1569
      %v1714 = vunpack.c.l.b16 %v1570
      %v1715 = vunpack.c.l.b16 %v1571
      %v1716 = vunpack.c.l.b16 %v1572
      %v1717 = vunpack.c.l.b16 %v1573
      %v1718 = vunpack.c.l.b16 %v1574
      %v1719 = vunpack.c.l.b16 %v1575
      %v1720 = vunpack.c.l.b16 %v1576
      %v1721 = vunpack.c.l.b16 %v1577
      %v1722 = vunpack.c.l.b16 %v1578
      %v1723 = vunpack.c.l.b16 %v1579
      %v1724 = vpack.c.b16 %v1653, %v1652
      %v1725 = vpack.c.b16 %v1655, %v1654
      %v1726 = vpack.c.b16 %v1657, %v1656
      %v1727 = vpack.c.b16 %v1659, %v1658
      %v1728 = vpack.c.b16 %v1661, %v1660
      %v1729 = vpack.c.b16 %v1663, %v1662
      %v1730 = vpack.c.b16 %v1665, %v1664
      %v1731 = vpack.c.b16 %v1667, %v1666
      %v1732 = vpack.c.b16 %v1669, %v1668
      %v1733 = vpack.c.b16 %v1671, %v1670
      %v1734 = vpack.c.b16 %v1673, %v1672
      %v1735 = vpack.c.b16 %v1675, %v1674
      %v1736 = vpack.c.b16 %v1677, %v1676
      %v1737 = vpack.c.b16 %v1679, %v1678
      %v1738 = vpack.c.b16 %v1681, %v1680
      %v1739 = vpack.c.b16 %v1683, %v1682
      %v1740 = vpack.c.b16 %v1685, %v1684
      %v1741 = vpack.c.b16 %v1687, %v1686
      %v1742 = vpack.c.b16 %v1689, %v1688
      %v1743 = vpack.c.b16 %v1691, %v1690
      %v1744 = vpack.c.b16 %v1693, %v1692
      %v1745 = vpack.c.b16 %v1695, %v1694
      %v1746 = vpack.c.b16 %v1697, %v1696
      %v1747 = vpack.c.b16 %v1699, %v1698
      %v1748 = vpack.c.b16 %v1701, %v1700
      %v1749 = vpack.c.b16 %v1703, %v1702
      %v1750 = vpack.c.b16 %v1705, %v1704
      %v1751 = vpack.c.b16 %v1707, %v1706
      %v1752 = vpack.c.b16 %v1709, %v1708
      %v1753 = vpack.c.b16 %v1711, %v1710
      %v1754 = vpack.c.b16 %v1713, %v1712
      %v1755 = vpack.c.b16 %v1715, %v1714
      %v1756 = vpack.c.b16 %v1717, %v1716
      %v1757 = vpack.c.b16 %v1719, %v1718
      %v1758 = vpack.c.b16 %v1721, %v1720
      %v1759 = vpack.c.b16 %v1723, %v1722
      %v1797 = vsel %vm437, %v1478, 0
      %v1800 = vsel %vm437, %v1483, 0
      %v1803 = vsel %vm437, %v1487, 0
      %v1806 = vsel %vm437, %v1491, 0
      %v1809 = vsel %vm437, %v1495, 0
      %v1812 = vsel %vm437, %v1499, 0
      %v1815 = vsel %vm437, %v1503, 0
      %v1818 = vsel %vm437, %v1507, 0
      %1820 = vmatpush.bf16.msra.mxu0 %v1731
      %1821 = vmatpush.bf16.msra.mxu0 %v1730
      %1822 = vmatpush.bf16.msra.mxu0 %v1729
      %1823 = vmatpush.bf16.msra.mxu0 %v1728
      %1824 = vmatpush.bf16.msra.mxu0 %v1727
      %1825 = vmatpush.bf16.msra.mxu0 %v1726
      %1826 = vmatpush.bf16.msra.mxu0 %v1725
      %1827 = vmatpush.bf16.msra.mxu0 %v1724
      %1828 = vmatmul.bf16.gmra.mxu0 %v1474
      %v1829 = vpop.f32.mrf.mxu0
      %v1830 = vadd.f32 0.0, %v1829
      %v1831 = vpop.f32.mrf.mxu0
      %v1832 = vadd.f32 0.0, %v1831
      %1833 = vmatmul.bf16.gmra.mxu0 %v1479
      %v1834 = vpop.f32.mrf.mxu0
      %v1835 = vadd.f32 0.0, %v1834
      %v1836 = vpop.f32.mrf.mxu0
      %v1837 = vadd.f32 0.0, %v1836
      %1838 = vmatmul.bf16.gmra.mxu0 %v1482
      %v1839 = vpop.f32.mrf.mxu0
      %v1840 = vadd.f32 0.0, %v1839
      %v1841 = vpop.f32.mrf.mxu0
      %v1842 = vadd.f32 0.0, %v1841
      %1843 = vmatmul.bf16.gmra.mxu0 %v1486
      %v1844 = vpop.f32.mrf.mxu0
      %v1845 = vadd.f32 0.0, %v1844
      %v1846 = vpop.f32.mrf.mxu0
      %v1847 = vadd.f32 0.0, %v1846
      %1848 = vmatmul.bf16.gmra.mxu0 %v1490
      %v1849 = vpop.f32.mrf.mxu0
      %v1850 = vadd.f32 0.0, %v1849
      %v1851 = vpop.f32.mrf.mxu0
      %v1852 = vadd.f32 0.0, %v1851
      %1853 = vmatmul.bf16.gmra.mxu0 %v1494
      %v1854 = vpop.f32.mrf.mxu0
      %v1855 = vadd.f32 0.0, %v1854
      %v1856 = vpop.f32.mrf.mxu0
      %v1857 = vadd.f32 0.0, %v1856
      %1858 = vmatmul.bf16.gmra.mxu0 %v1498
      %v1859 = vpop.f32.mrf.mxu0
      %v1860 = vadd.f32 0.0, %v1859
      %v1861 = vpop.f32.mrf.mxu0
      %v1862 = vadd.f32 0.0, %v1861
      %1863 = vmatmul.bf16.gmra.mxu0 %v1502
      %v1864 = vpop.f32.mrf.mxu0
      %v1865 = vadd.f32 0.0, %v1864
      %v1866 = vpop.f32.mrf.mxu0
      %v1867 = vadd.f32 0.0, %v1866
      %1868 = vdwg.mxu0
      %1869 = vmatpush.bf16.msra.mxu0 %v1739
      %1870 = vmatpush.bf16.msra.mxu0 %v1738
      %1871 = vmatpush.bf16.msra.mxu0 %v1737
      %1872 = vmatpush.bf16.msra.mxu0 %v1736
      %1873 = vmatpush.bf16.msra.mxu0 %v1735
      %1874 = vmatpush.bf16.msra.mxu0 %v1734
      %1875 = vmatpush.bf16.msra.mxu0 %v1733
      %1876 = vmatpush.bf16.msra.mxu0 %v1732
      %1877 = vmatmul.bf16.gmra.mxu0 %v1475
      %v1878 = vpop.f32.mrf.mxu0
      %v1879 = vadd.f32 %v1830, %v1878
      %v1880 = vpop.f32.mrf.mxu0
      %v1881 = vadd.f32 %v1832, %v1880
      %1882 = vmatmul.bf16.gmra.mxu0 %v1480
      %v1883 = vpop.f32.mrf.mxu0
      %v1884 = vadd.f32 %v1835, %v1883
      %v1885 = vpop.f32.mrf.mxu0
      %v1886 = vadd.f32 %v1837, %v1885
      %1887 = vmatmul.bf16.gmra.mxu0 %v1484
      %v1888 = vpop.f32.mrf.mxu0
      %v1889 = vadd.f32 %v1840, %v1888
      %v1890 = vpop.f32.mrf.mxu0
      %v1891 = vadd.f32 %v1842, %v1890
      %1892 = vmatmul.bf16.gmra.mxu0 %v1488
      %v1893 = vpop.f32.mrf.mxu0
      %v1894 = vadd.f32 %v1845, %v1893
      %v1895 = vpop.f32.mrf.mxu0
      %v1896 = vadd.f32 %v1847, %v1895
      %1897 = vmatmul.bf16.gmra.mxu0 %v1492
      %v1898 = vpop.f32.mrf.mxu0
      %v1899 = vadd.f32 %v1850, %v1898
      %v1900 = vpop.f32.mrf.mxu0
      %v1901 = vadd.f32 %v1852, %v1900
      %1902 = vmatmul.bf16.gmra.mxu0 %v1496
      %v1903 = vpop.f32.mrf.mxu0
      %v1904 = vadd.f32 %v1855, %v1903
      %v1905 = vpop.f32.mrf.mxu0
      %v1906 = vadd.f32 %v1857, %v1905
      %1907 = vmatmul.bf16.gmra.mxu0 %v1500
      %v1908 = vpop.f32.mrf.mxu0
      %v1909 = vadd.f32 %v1860, %v1908
      %v1910 = vpop.f32.mrf.mxu0
      %v1911 = vadd.f32 %v1862, %v1910
      %1912 = vmatmul.bf16.gmra.mxu0 %v1504
      %v1913 = vpop.f32.mrf.mxu0
      %v1914 = vadd.f32 %v1865, %v1913
      %v1915 = vpop.f32.mrf.mxu0
      %v1916 = vadd.f32 %v1867, %v1915
      %1917 = vdwg.mxu0
      %1918 = vmatpush.bf16.msra.mxu0 %v1747
      %1919 = vmatpush.bf16.msra.mxu0 %v1746
      %1920 = vmatpush.bf16.msra.mxu0 %v1745
      %1921 = vmatpush.bf16.msra.mxu0 %v1744
      %1922 = vmatpush.bf16.msra.mxu0 %v1743
      %1923 = vmatpush.bf16.msra.mxu0 %v1742
      %1924 = vmatpush.bf16.msra.mxu0 %v1741
      %1925 = vmatpush.bf16.msra.mxu0 %v1740
      %1926 = vmatmul.bf16.gmra.mxu0 %v1476
      %v1927 = vpop.f32.mrf.mxu0
      %v1928 = vadd.f32 %v1879, %v1927
      %v1929 = vpop.f32.mrf.mxu0
      %v1930 = vadd.f32 %v1881, %v1929
      %1931 = vmatmul.bf16.gmra.mxu0 %v1481
      %v1932 = vpop.f32.mrf.mxu0
      %v1933 = vadd.f32 %v1884, %v1932
      %v1934 = vpop.f32.mrf.mxu0
      %v1935 = vadd.f32 %v1886, %v1934
      %1936 = vmatmul.bf16.gmra.mxu0 %v1485
      %v1937 = vpop.f32.mrf.mxu0
      %v1938 = vadd.f32 %v1889, %v1937
      %v1939 = vpop.f32.mrf.mxu0
      %v1940 = vadd.f32 %v1891, %v1939
      %1941 = vmatmul.bf16.gmra.mxu0 %v1489
      %v1942 = vpop.f32.mrf.mxu0
      %v1943 = vadd.f32 %v1894, %v1942
      %v1944 = vpop.f32.mrf.mxu0
      %v1945 = vadd.f32 %v1896, %v1944
      %1946 = vmatmul.bf16.gmra.mxu0 %v1493
      %v1947 = vpop.f32.mrf.mxu0
      %v1948 = vadd.f32 %v1899, %v1947
      %v1949 = vpop.f32.mrf.mxu0
      %v1950 = vadd.f32 %v1901, %v1949
      %1951 = vmatmul.bf16.gmra.mxu0 %v1497
      %v1952 = vpop.f32.mrf.mxu0
      %v1953 = vadd.f32 %v1904, %v1952
      %v1954 = vpop.f32.mrf.mxu0
      %v1955 = vadd.f32 %v1906, %v1954
      %1956 = vmatmul.bf16.gmra.mxu0 %v1501
      %v1957 = vpop.f32.mrf.mxu0
      %v1958 = vadd.f32 %v1909, %v1957
      %v1959 = vpop.f32.mrf.mxu0
      %v1960 = vadd.f32 %v1911, %v1959
      %1961 = vmatmul.bf16.gmra.mxu0 %v1505
      %v1962 = vpop.f32.mrf.mxu0
      %v1963 = vadd.f32 %v1914, %v1962
      %v1964 = vpop.f32.mrf.mxu0
      %v1965 = vadd.f32 %v1916, %v1964
      %1966 = vdwg.mxu0
      %1967 = vmatpush.bf16.msra.mxu0 %v1755
      %1968 = vmatpush.bf16.msra.mxu0 %v1754
      %1969 = vmatpush.bf16.msra.mxu0 %v1753
      %1970 = vmatpush.bf16.msra.mxu0 %v1752
      %1971 = vmatpush.bf16.msra.mxu0 %v1751
      %1972 = vmatpush.bf16.msra.mxu0 %v1750
      %1973 = vmatpush.bf16.msra.mxu0 %v1749
      %1974 = vmatpush.bf16.msra.mxu0 %v1748
      %1975 = vmatmul.bf16.gmra.mxu0 %v1477
      %v1976 = vpop.f32.mrf.mxu0
      %v1977 = vadd.f32 %v1928, %v1976
      %v1978 = vpop.f32.mrf.mxu0
      %v1979 = vadd.f32 %v1930, %v1978
      %1980 = vmatmul.bf16.gmra.mxu0 %v1482
      %v1981 = vpop.f32.mrf.mxu0
      %v1982 = vadd.f32 %v1933, %v1981
      %v1983 = vpop.f32.mrf.mxu0
      %v1984 = vadd.f32 %v1935, %v1983
      %1985 = vmatmul.bf16.gmra.mxu0 %v1486
      %v1986 = vpop.f32.mrf.mxu0
      %v1987 = vadd.f32 %v1938, %v1986
      %v1988 = vpop.f32.mrf.mxu0
      %v1989 = vadd.f32 %v1940, %v1988
      %1990 = vmatmul.bf16.gmra.mxu0 %v1490
      %v1991 = vpop.f32.mrf.mxu0
      %v1992 = vadd.f32 %v1943, %v1991
      %v1993 = vpop.f32.mrf.mxu0
      %v1994 = vadd.f32 %v1945, %v1993
      %1995 = vmatmul.bf16.gmra.mxu0 %v1494
      %v1996 = vpop.f32.mrf.mxu0
      %v1997 = vadd.f32 %v1948, %v1996
      %v1998 = vpop.f32.mrf.mxu0
      %v1999 = vadd.f32 %v1950, %v1998
      %2000 = vmatmul.bf16.gmra.mxu0 %v1498
      %v2001 = vpop.f32.mrf.mxu0
      %v2002 = vadd.f32 %v1953, %v2001
      %v2003 = vpop.f32.mrf.mxu0
      %v2004 = vadd.f32 %v1955, %v2003
      %2005 = vmatmul.bf16.gmra.mxu0 %v1502
      %v2006 = vpop.f32.mrf.mxu0
      %v2007 = vadd.f32 %v1958, %v2006
      %v2008 = vpop.f32.mrf.mxu0
      %v2009 = vadd.f32 %v1960, %v2008
      %2010 = vmatmul.bf16.gmra.mxu0 %v1506
      %v2011 = vpop.f32.mrf.mxu0
      %v2012 = vadd.f32 %v1963, %v2011
      %v2013 = vpop.f32.mrf.mxu0
      %v2014 = vadd.f32 %v1965, %v2013
      %2015 = vdwg.mxu0
      %2016 = vmatpush.bf16.msra.mxu0 0
      %2017 = vmatpush.bf16.msra.mxu0 0
      %2018 = vmatpush.bf16.msra.mxu0 0
      %2019 = vmatpush.bf16.msra.mxu0 0
      %2020 = vmatpush.bf16.msra.mxu0 %v1759
      %2021 = vmatpush.bf16.msra.mxu0 %v1758
      %2022 = vmatpush.bf16.msra.mxu0 %v1757
      %2023 = vmatpush.bf16.msra.mxu0 %v1756
      %2024 = vmatmul.bf16.gmra.mxu0 %v1797
      %v2025 = vpop.f32.mrf.mxu0
      %v2026 = vadd.f32 %v1977, %v2025
      %v2027 = vpop.f32.mrf.mxu0
      %v2028 = vadd.f32 %v1979, %v2027
      %2029 = vmatmul.bf16.gmra.mxu0 %v1800
      %v2030 = vpop.f32.mrf.mxu0
      %v2031 = vadd.f32 %v1982, %v2030
      %v2032 = vpop.f32.mrf.mxu0
      %v2033 = vadd.f32 %v1984, %v2032
      %2034 = vmatmul.bf16.gmra.mxu0 %v1803
      %v2035 = vpop.f32.mrf.mxu0
      %v2036 = vadd.f32 %v1987, %v2035
      %v2037 = vpop.f32.mrf.mxu0
      %v2038 = vadd.f32 %v1989, %v2037
      %2039 = vmatmul.bf16.gmra.mxu0 %v1806
      %v2040 = vpop.f32.mrf.mxu0
      %v2041 = vadd.f32 %v1992, %v2040
      %v2042 = vpop.f32.mrf.mxu0
      %v2043 = vadd.f32 %v1994, %v2042
      %2044 = vmatmul.bf16.gmra.mxu0 %v1809
      %v2045 = vpop.f32.mrf.mxu0
      %v2046 = vadd.f32 %v1997, %v2045
      %v2047 = vpop.f32.mrf.mxu0
      %v2048 = vadd.f32 %v1999, %v2047
      %2049 = vmatmul.bf16.gmra.mxu0 %v1812
      %v2050 = vpop.f32.mrf.mxu0
      %v2051 = vadd.f32 %v2002, %v2050
      %v2052 = vpop.f32.mrf.mxu0
      %v2053 = vadd.f32 %v2004, %v2052
      %2054 = vmatmul.bf16.gmra.mxu0 %v1815
      %v2055 = vpop.f32.mrf.mxu0
      %v2056 = vadd.f32 %v2007, %v2055
      %v2057 = vpop.f32.mrf.mxu0
      %v2058 = vadd.f32 %v2009, %v2057
      %2059 = vmatmul.bf16.gmra.mxu0 %v1818
      %v2060 = vpop.f32.mrf.mxu0
      %v2061 = vadd.f32 %v2012, %v2060
      %v2062 = vpop.f32.mrf.mxu0
      %v2063 = vadd.f32 %v2014, %v2062
      %2064 = vdwg.mxu0
      %v2065 = vld [vmem:[%s6] sm:$0x1]
      %v2066 = vld [vmem:[%s6 + $0x1] sm:$0x1]
      %v2067 = vperm.slane %v2065, 0
      %v2068 = vmul.f32 %v2026, %v2067
      %v2069 = vmul.f32 %v2028, %v2067
      %v2070 = vmul.f32 %v2031, %v2067
      %v2071 = vmul.f32 %v2033, %v2067
      %v2072 = vmul.f32 %v2036, %v2067
      %v2073 = vmul.f32 %v2038, %v2067
      %v2074 = vmul.f32 %v2041, %v2067
      %v2075 = vmul.f32 %v2043, %v2067
      %v2076 = vmul.f32 %v2046, %v2067
      %v2077 = vmul.f32 %v2048, %v2067
      %v2078 = vmul.f32 %v2051, %v2067
      %v2079 = vmul.f32 %v2053, %v2067
      %v2080 = vmul.f32 %v2056, %v2067
      %v2081 = vmul.f32 %v2058, %v2067
      %v2082 = vmul.f32 %v2061, %v2067
      %v2083 = vmul.f32 %v2063, %v2067
      %v2084 = vperm.slane %v2066, 0
      %v2085 = vadd.f32 %v2068, %v2084
      %v2086 = vadd.f32 %v2069, %v2084
      %v2087 = vadd.f32 %v2070, %v2084
      %v2088 = vadd.f32 %v2071, %v2084
      %v2089 = vadd.f32 %v2072, %v2084
      %v2090 = vadd.f32 %v2073, %v2084
      %v2091 = vadd.f32 %v2074, %v2084
      %v2092 = vadd.f32 %v2075, %v2084
      %v2093 = vadd.f32 %v2076, %v2084
      %v2094 = vadd.f32 %v2077, %v2084
      %v2095 = vadd.f32 %v2078, %v2084
      %v2096 = vadd.f32 %v2079, %v2084
      %v2097 = vadd.f32 %v2080, %v2084
      %v2098 = vadd.f32 %v2081, %v2084
      %v2099 = vadd.f32 %v2082, %v2084
      %v2100 = vadd.f32 %v2083, %v2084
      %v2101 = vmax.f32 %v2085, 0.0
      %v2102 = vmax.f32 %v2086, 0.0
      %v2103 = vmax.f32 %v2087, 0.0
      %v2104 = vmax.f32 %v2088, 0.0
      %v2105 = vmax.f32 %v2089, 0.0
      %v2106 = vmax.f32 %v2090, 0.0
      %v2107 = vmax.f32 %v2091, 0.0
      %v2108 = vmax.f32 %v2092, 0.0
      %v2109 = vmax.f32 %v2093, 0.0
      %v2110 = vmax.f32 %v2094, 0.0
      %v2111 = vmax.f32 %v2095, 0.0
      %v2112 = vmax.f32 %v2096, 0.0
      %v2113 = vmax.f32 %v2097, 0.0
      %v2114 = vmax.f32 %v2098, 0.0
      %v2115 = vmax.f32 %v2099, 0.0
      %v2116 = vmax.f32 %v2100, 0.0
      %v2117 = vld [vmem:[%s431] sm:$0x1]
      %v2119 = vperm.slane %v2117, 0
      %2120 = vrot.lane.b32.xlu0 %v2119, 64
      %v2121 = vpop.permute.xlu0 %2120
      %v2123 = vmul.f32 %v2101, %v2121
      %v2124 = vmul.f32 %v2102, %v2121
      %v2125 = vmul.f32 %v2103, %v2121
      %v2126 = vmul.f32 %v2104, %v2121
      %v2127 = vmul.f32 %v2105, %v2121
      %v2128 = vmul.f32 %v2106, %v2121
      %v2129 = vmul.f32 %v2107, %v2121
      %v2130 = vmul.f32 %v2108, %v2121
      %v2131 = vmul.f32 %v2109, %v2121
      %v2132 = vmul.f32 %v2110, %v2121
      %v2133 = vmul.f32 %v2111, %v2121
      %v2134 = vmul.f32 %v2112, %v2121
      %v2135 = vmul.f32 %v2113, %v2121
      %v2136 = vmul.f32 %v2114, %v2121
      %v2137 = vmul.f32 %v2115, %v2121
      %v2138 = vmul.f32 %v2116, %v2121
      %v2139 = vadd.f32 %v2123, %v1126
      %v2140 = vadd.f32 %v2124, %v1127
      %v2141 = vadd.f32 %v2125, %v1128
      %v2142 = vadd.f32 %v2126, %v1129
      %v2143 = vadd.f32 %v2127, %v1130
      %v2144 = vadd.f32 %v2128, %v1131
      %v2145 = vadd.f32 %v2129, %v1132
      %v2146 = vadd.f32 %v2130, %v1133
      %v2147 = vadd.f32 %v2131, %v1134
      %v2148 = vadd.f32 %v2132, %v1135
      %v2149 = vadd.f32 %v2133, %v1136
      %v2150 = vadd.f32 %v2134, %v1137
      %v2151 = vadd.f32 %v2135, %v1138
      %v2152 = vadd.f32 %v2136, %v1139
      %v2153 = vadd.f32 %v2137, %v1140
      %v2154 = vadd.f32 %v2138, %v1141
      %v2155 = vld [vmem:[%s7] sm:$0xff]
      %v2156 = vld [vmem:[%s7 + $0x8] sm:$0xff]
      %v2157 = vld [vmem:[%s7 + $0x10] sm:$0xff]
      %v2158 = vld [vmem:[%s7 + $0x18] sm:$0xff]
      %v2159 = vld [vmem:[%s7 + $0x20] sm:$0xff]
      %v2160 = vld [vmem:[%s7 + $0x28] sm:$0xff]
      %v2161 = vld [vmem:[%s7 + $0x30] sm:$0xff]
      %v2162 = vld [vmem:[%s7 + $0x38] sm:$0xff]
      %v2163 = vld [vmem:[%s7 + $0x40] sm:$0xff]
      %v2164 = vld [vmem:[%s7 + $0x48] sm:$0xff]
      %v2165 = vld [vmem:[%s7 + $0x50] sm:$0xff]
      %v2166 = vld [vmem:[%s7 + $0x58] sm:$0xff]
      %v2167 = vld [vmem:[%s7 + $0x60] sm:$0xff]
      %v2168 = vld [vmem:[%s7 + $0x68] sm:$0xff]
      %v2169 = vld [vmem:[%s7 + $0x70] sm:$0xff]
      %v2170 = vld [vmem:[%s7 + $0x78] sm:$0xff]
      %2172 = vset.pattern.permute.xlu0 0
      %2173 = vperm.xlu0 %2172, %v2155
      %v2174 = vpop.permute.xlu0 %2173
      %2177 = vset.pattern.permute.xlu0 0
      %2178 = vperm.xlu0 %2177, %v2156
      %v2179 = vpop.permute.xlu0 %2178
      %2182 = vset.pattern.permute.xlu0 0
      %2183 = vperm.xlu0 %2182, %v2157
      %v2184 = vpop.permute.xlu0 %2183
      %2187 = vset.pattern.permute.xlu0 0
      %2188 = vperm.xlu0 %2187, %v2158
      %v2189 = vpop.permute.xlu0 %2188
      %2192 = vset.pattern.permute.xlu0 0
      %2193 = vperm.xlu0 %2192, %v2159
      %v2194 = vpop.permute.xlu0 %2193
      %2197 = vset.pattern.permute.xlu0 0
      %2198 = vperm.xlu0 %2197, %v2160
      %v2199 = vpop.permute.xlu0 %2198
      %2202 = vset.pattern.permute.xlu0 0
      %2203 = vperm.xlu0 %2202, %v2161
      %v2204 = vpop.permute.xlu0 %2203
      %2207 = vset.pattern.permute.xlu0 0
      %2208 = vperm.xlu0 %2207, %v2162
      %v2209 = vpop.permute.xlu0 %2208
      %2212 = vset.pattern.permute.xlu0 0
      %2213 = vperm.xlu0 %2212, %v2163
      %v2214 = vpop.permute.xlu0 %2213
      %2217 = vset.pattern.permute.xlu0 0
      %2218 = vperm.xlu0 %2217, %v2164
      %v2219 = vpop.permute.xlu0 %2218
      %2222 = vset.pattern.permute.xlu0 0
      %2223 = vperm.xlu0 %2222, %v2165
      %v2224 = vpop.permute.xlu0 %2223
      %2227 = vset.pattern.permute.xlu0 0
      %2228 = vperm.xlu0 %2227, %v2166
      %v2229 = vpop.permute.xlu0 %2228
      %2232 = vset.pattern.permute.xlu0 0
      %2233 = vperm.xlu0 %2232, %v2167
      %v2234 = vpop.permute.xlu0 %2233
      %2237 = vset.pattern.permute.xlu0 0
      %2238 = vperm.xlu0 %2237, %v2168
      %v2239 = vpop.permute.xlu0 %2238
      %2242 = vset.pattern.permute.xlu0 0
      %2243 = vperm.xlu0 %2242, %v2169
      %v2244 = vpop.permute.xlu0 %2243
      %2247 = vset.pattern.permute.xlu0 0
      %2248 = vperm.xlu0 %2247, %v2170
      %v2249 = vpop.permute.xlu0 %2248
      %v2251 = vmul.f32 %v2139, %v2174
      %v2252 = vmul.f32 %v2140, %v2179
      %v2253 = vmul.f32 %v2141, %v2184
      %v2254 = vmul.f32 %v2142, %v2189
      %v2255 = vmul.f32 %v2143, %v2194
      %v2256 = vmul.f32 %v2144, %v2199
      %v2257 = vmul.f32 %v2145, %v2204
      %v2258 = vmul.f32 %v2146, %v2209
      %v2259 = vmul.f32 %v2147, %v2214
      %v2260 = vmul.f32 %v2148, %v2219
      %v2261 = vmul.f32 %v2149, %v2224
      %v2262 = vmul.f32 %v2150, %v2229
      %v2263 = vmul.f32 %v2151, %v2234
      %v2264 = vmul.f32 %v2152, %v2239
      %v2265 = vmul.f32 %v2153, %v2244
      %v2266 = vmul.f32 %v2154, %v2249
      %2267 = vst.msk [vmem:[#allocation2 + $0x8] sm:$0xff] %vm437, %v2251
      %2268 = vst.msk [vmem:[#allocation2 + $0x10] sm:$0xff] %vm437, %v2252
      %2269 = vst.msk [vmem:[#allocation2 + $0x18] sm:$0xff] %vm437, %v2253
      %2270 = vst.msk [vmem:[#allocation2 + $0x20] sm:$0xff] %vm437, %v2254
      %2271 = vst.msk [vmem:[#allocation2 + $0x28] sm:$0xff] %vm437, %v2255
      %2272 = vst.msk [vmem:[#allocation2 + $0x30] sm:$0xff] %vm437, %v2256
      %2273 = vst.msk [vmem:[#allocation2 + $0x38] sm:$0xff] %vm437, %v2257
      %2274 = vst.msk [vmem:[#allocation2 + $0x40] sm:$0xff] %vm437, %v2258
      %2275 = vst.msk [vmem:[#allocation2 + $0x48] sm:$0xff] %vm437, %v2259
      %2276 = vst.msk [vmem:[#allocation2 + $0x50] sm:$0xff] %vm437, %v2260
      %2277 = vst.msk [vmem:[#allocation2 + $0x58] sm:$0xff] %vm437, %v2261
      %2278 = vst.msk [vmem:[#allocation2 + $0x60] sm:$0xff] %vm437, %v2262
      %2279 = vst.msk [vmem:[#allocation2 + $0x68] sm:$0xff] %vm437, %v2263
      %2280 = vst.msk [vmem:[#allocation2 + $0x70] sm:$0xff] %vm437, %v2264
      %2281 = vst.msk [vmem:[#allocation2 + $0x78] sm:$0xff] %vm437, %v2265
      %2282 = vst.msk [vmem:[#allocation2 + $0x80] sm:$0xff] %vm437, %v2266
      %v2283 = vld [vmem:[#allocation2] sm:$0xff]
      %v2284 = vld [vmem:[#allocation2 + $0x8] sm:$0xff]
      %v2285 = vld [vmem:[#allocation2 + $0x10] sm:$0xff]
      %v2286 = vld [vmem:[#allocation2 + $0x18] sm:$0xff]
      %v2287 = vld [vmem:[#allocation2 + $0x20] sm:$0xff]
      %v2288 = vld [vmem:[#allocation2 + $0x28] sm:$0xff]
      %v2289 = vld [vmem:[#allocation2 + $0x30] sm:$0xff]
      %v2290 = vld [vmem:[#allocation2 + $0x38] sm:$0xff]
      %v2291 = vld [vmem:[#allocation2 + $0x40] sm:$0xff]
      %v2292 = vld [vmem:[#allocation2 + $0x48] sm:$0xff]
      %v2293 = vld [vmem:[#allocation2 + $0x50] sm:$0xff]
      %v2294 = vld [vmem:[#allocation2 + $0x58] sm:$0xff]
      %v2295 = vld [vmem:[#allocation2 + $0x60] sm:$0xff]
      %v2296 = vld [vmem:[#allocation2 + $0x68] sm:$0xff]
      %v2297 = vld [vmem:[#allocation2 + $0x70] sm:$0xff]
      %v2298 = vld [vmem:[#allocation2 + $0x78] sm:$0xff]
      %v2299 = vld [vmem:[#allocation2 + $0x80] sm:$0xff]
      %v2300 = vld [vmem:[#allocation2 + $0x88] sm:$0xff]
      %v2301 = vrot.slane %v2283, 7
      %v2302 = vrot.slane %v2284, 7
      %v2303 = vrot.slane %v2285, 7
      %v2304 = vrot.slane %v2286, 7
      %v2305 = vrot.slane %v2287, 7
      %v2306 = vrot.slane %v2288, 7
      %v2307 = vrot.slane %v2289, 7
      %v2308 = vrot.slane %v2290, 7
      %v2309 = vrot.slane %v2291, 7
      %v2310 = vrot.slane %v2292, 7
      %v2311 = vrot.slane %v2293, 7
      %v2312 = vrot.slane %v2294, 7
      %v2313 = vrot.slane %v2295, 7
      %v2314 = vrot.slane %v2296, 7
      %v2315 = vrot.slane %v2297, 7
      %v2316 = vrot.slane %v2298, 7
      %v2317 = vsel %vm1161, %v2315, %v2316
      %v2318 = vsel %vm1161, %v2314, %v2315
      %v2319 = vsel %vm1161, %v2313, %v2314
      %v2320 = vsel %vm1161, %v2312, %v2313
      %v2321 = vsel %vm1161, %v2311, %v2312
      %v2322 = vsel %vm1161, %v2310, %v2311
      %v2323 = vsel %vm1161, %v2309, %v2310
      %v2324 = vsel %vm1161, %v2308, %v2309
      %v2325 = vsel %vm1161, %v2307, %v2308
      %v2326 = vsel %vm1161, %v2306, %v2307
      %v2327 = vsel %vm1161, %v2305, %v2306
      %v2328 = vsel %vm1161, %v2304, %v2305
      %v2329 = vsel %vm1161, %v2303, %v2304
      %v2330 = vsel %vm1161, %v2302, %v2303
      %v2331 = vsel %vm1161, %v2301, %v2302
      %v2332 = vsel %vm1161, %v2316, %v2301
      %v2333 = vrot.slane %v2283, 1
      %v2334 = vrot.slane %v2284, 1
      %v2335 = vrot.slane %v2285, 1
      %v2336 = vrot.slane %v2286, 1
      %v2337 = vrot.slane %v2287, 1
      %v2338 = vrot.slane %v2288, 1
      %v2339 = vrot.slane %v2289, 1
      %v2340 = vrot.slane %v2290, 1
      %v2341 = vrot.slane %v2291, 1
      %v2342 = vrot.slane %v2292, 1
      %v2343 = vrot.slane %v2293, 1
      %v2344 = vrot.slane %v2294, 1
      %v2345 = vrot.slane %v2295, 1
      %v2346 = vrot.slane %v2296, 1
      %v2347 = vrot.slane %v2297, 1
      %v2348 = vrot.slane %v2298, 1
      %v2349 = vsel %vm1194, %v2347, %v2348
      %v2350 = vsel %vm1194, %v2346, %v2347
      %v2351 = vsel %vm1194, %v2345, %v2346
      %v2352 = vsel %vm1194, %v2344, %v2345
      %v2353 = vsel %vm1194, %v2343, %v2344
      %v2354 = vsel %vm1194, %v2342, %v2343
      %v2355 = vsel %vm1194, %v2341, %v2342
      %v2356 = vsel %vm1194, %v2340, %v2341
      %v2357 = vsel %vm1194, %v2339, %v2340
      %v2358 = vsel %vm1194, %v2338, %v2339
      %v2359 = vsel %vm1194, %v2337, %v2338
      %v2360 = vsel %vm1194, %v2336, %v2337
      %v2361 = vsel %vm1194, %v2335, %v2336
      %v2362 = vsel %vm1194, %v2334, %v2335
      %v2363 = vsel %vm1194, %v2333, %v2334
      %v2364 = vsel %vm1194, %v2348, %v2333
      %v2365 = vrot.slane %v2299, 7
      %v2366 = vsel %vm1161, %v2316, %v2365
      %v2367 = vsel %vm1161, %v2365, %v2302
      %v2368 = vrot.slane %v2299, 1
      %v2369 = vsel %vm1194, %v2348, %v2368
      %v2370 = vsel %vm1194, %v2368, %v2334
      %v2371 = vrot.slane %v2300, 7
      %v2372 = vsel %vm1161, %v2365, %v2371
      %v2373 = vsel %vm1161, %v2371, %v2303
      %v2374 = vrot.slane %v2300, 1
      %v2375 = vsel %vm1194, %v2368, %v2374
      %v2376 = vsel %vm1194, %v2374, %v2335
      %2393 = vrot.lane.b32.xlu0 %v2283, 64
      %v2394 = vpop.permute.xlu0 %2393
      %2395 = vrot.lane.b32.xlu0 %v2284, 64
      %v2396 = vpop.permute.xlu0 %2395
      %2397 = vrot.lane.b32.xlu0 %v2285, 64
      %v2398 = vpop.permute.xlu0 %2397
      %2399 = vrot.lane.b32.xlu0 %v2286, 64
      %v2400 = vpop.permute.xlu0 %2399
      %2401 = vrot.lane.b32.xlu0 %v2287, 64
      %v2402 = vpop.permute.xlu0 %2401
      %2403 = vrot.lane.b32.xlu0 %v2288, 64
      %v2404 = vpop.permute.xlu0 %2403
      %2405 = vrot.lane.b32.xlu0 %v2289, 64
      %v2406 = vpop.permute.xlu0 %2405
      %2407 = vrot.lane.b32.xlu0 %v2290, 64
      %v2408 = vpop.permute.xlu0 %2407
      %2409 = vrot.lane.b32.xlu0 %v2291, 64
      %v2410 = vpop.permute.xlu0 %2409
      %2411 = vrot.lane.b32.xlu0 %v2292, 64
      %v2412 = vpop.permute.xlu0 %2411
      %2413 = vrot.lane.b32.xlu0 %v2293, 64
      %v2414 = vpop.permute.xlu0 %2413
      %2415 = vrot.lane.b32.xlu0 %v2294, 64
      %v2416 = vpop.permute.xlu0 %2415
      %2417 = vrot.lane.b32.xlu0 %v2295, 64
      %v2418 = vpop.permute.xlu0 %2417
      %2419 = vrot.lane.b32.xlu0 %v2296, 64
      %v2420 = vpop.permute.xlu0 %2419
      %2421 = vrot.lane.b32.xlu0 %v2297, 64
      %v2422 = vpop.permute.xlu0 %2421
      %2423 = vrot.lane.b32.xlu0 %v2298, 64
      %v2424 = vpop.permute.xlu0 %2423
      %2457 = vrot.lane.b32.xlu0 %v2367, 64
      %v2458 = vpop.permute.xlu0 %2457
      %2459 = vrot.lane.b32.xlu0 %v2330, 64
      %v2460 = vpop.permute.xlu0 %2459
      %2461 = vrot.lane.b32.xlu0 %v2329, 64
      %v2462 = vpop.permute.xlu0 %2461
      %2463 = vrot.lane.b32.xlu0 %v2328, 64
      %v2464 = vpop.permute.xlu0 %2463
      %2465 = vrot.lane.b32.xlu0 %v2327, 64
      %v2466 = vpop.permute.xlu0 %2465
      %2467 = vrot.lane.b32.xlu0 %v2326, 64
      %v2468 = vpop.permute.xlu0 %2467
      %2469 = vrot.lane.b32.xlu0 %v2325, 64
      %v2470 = vpop.permute.xlu0 %2469
      %2471 = vrot.lane.b32.xlu0 %v2324, 64
      %v2472 = vpop.permute.xlu0 %2471
      %2473 = vrot.lane.b32.xlu0 %v2323, 64
      %v2474 = vpop.permute.xlu0 %2473
      %2475 = vrot.lane.b32.xlu0 %v2322, 64
      %v2476 = vpop.permute.xlu0 %2475
      %2477 = vrot.lane.b32.xlu0 %v2321, 64
      %v2478 = vpop.permute.xlu0 %2477
      %2479 = vrot.lane.b32.xlu0 %v2320, 64
      %v2480 = vpop.permute.xlu0 %2479
      %2481 = vrot.lane.b32.xlu0 %v2319, 64
      %v2482 = vpop.permute.xlu0 %2481
      %2483 = vrot.lane.b32.xlu0 %v2318, 64
      %v2484 = vpop.permute.xlu0 %2483
      %2485 = vrot.lane.b32.xlu0 %v2317, 64
      %v2486 = vpop.permute.xlu0 %2485
      %2487 = vrot.lane.b32.xlu0 %v2366, 64
      %v2488 = vpop.permute.xlu0 %2487
      %2521 = vrot.lane.b32.xlu0 %v2362, 64
      %v2522 = vpop.permute.xlu0 %2521
      %2523 = vrot.lane.b32.xlu0 %v2361, 64
      %v2524 = vpop.permute.xlu0 %2523
      %2525 = vrot.lane.b32.xlu0 %v2360, 64
      %v2526 = vpop.permute.xlu0 %2525
      %2527 = vrot.lane.b32.xlu0 %v2359, 64
      %v2528 = vpop.permute.xlu0 %2527
      %2529 = vrot.lane.b32.xlu0 %v2358, 64
      %v2530 = vpop.permute.xlu0 %2529
      %2531 = vrot.lane.b32.xlu0 %v2357, 64
      %v2532 = vpop.permute.xlu0 %2531
      %2533 = vrot.lane.b32.xlu0 %v2356, 64
      %v2534 = vpop.permute.xlu0 %2533
      %2535 = vrot.lane.b32.xlu0 %v2355, 64
      %v2536 = vpop.permute.xlu0 %2535
      %2537 = vrot.lane.b32.xlu0 %v2354, 64
      %v2538 = vpop.permute.xlu0 %2537
      %2539 = vrot.lane.b32.xlu0 %v2353, 64
      %v2540 = vpop.permute.xlu0 %2539
      %2541 = vrot.lane.b32.xlu0 %v2352, 64
      %v2542 = vpop.permute.xlu0 %2541
      %2543 = vrot.lane.b32.xlu0 %v2351, 64
      %v2544 = vpop.permute.xlu0 %2543
      %2545 = vrot.lane.b32.xlu0 %v2350, 64
      %v2546 = vpop.permute.xlu0 %2545
      %2547 = vrot.lane.b32.xlu0 %v2349, 64
      %v2548 = vpop.permute.xlu0 %2547
      %2549 = vrot.lane.b32.xlu0 %v2369, 64
      %v2550 = vpop.permute.xlu0 %2549
      %2551 = vrot.lane.b32.xlu0 %v2370, 64
      %v2552 = vpop.permute.xlu0 %2551
      %2571 = vrot.lane.b32.xlu0 %v2299, 64
      %v2572 = vpop.permute.xlu0 %2571
      %2573 = vrot.lane.b32.xlu0 %v2300, 64
      %v2574 = vpop.permute.xlu0 %2573
      %v2577 = vsel %vm437, %v2332, %v2394
      %v2578 = vsel %vm437, %v2331, %v2396
      %v2579 = vsel %vm437, %v2330, %v2398
      %v2580 = vsel %vm437, %v2329, %v2400
      %v2581 = vsel %vm437, %v2328, %v2402
      %v2582 = vsel %vm437, %v2327, %v2404
      %v2583 = vsel %vm437, %v2326, %v2406
      %v2584 = vsel %vm437, %v2325, %v2408
      %v2585 = vsel %vm437, %v2324, %v2410
      %v2586 = vsel %vm437, %v2323, %v2412
      %v2587 = vsel %vm437, %v2322, %v2414
      %v2588 = vsel %vm437, %v2321, %v2416
      %v2589 = vsel %vm437, %v2320, %v2418
      %v2590 = vsel %vm437, %v2319, %v2420
      %v2591 = vsel %vm437, %v2318, %v2422
      %v2592 = vsel %vm437, %v2317, %v2424
      %v2593 = vsel %vm437, %v2363, %v2458
      %v2594 = vsel %vm437, %v2362, %v2460
      %v2595 = vsel %vm437, %v2361, %v2462
      %v2596 = vsel %vm437, %v2360, %v2464
      %v2597 = vsel %vm437, %v2359, %v2466
      %v2598 = vsel %vm437, %v2358, %v2468
      %v2599 = vsel %vm437, %v2357, %v2470
      %v2600 = vsel %vm437, %v2356, %v2472
      %v2601 = vsel %vm437, %v2355, %v2474
      %v2602 = vsel %vm437, %v2354, %v2476
      %v2603 = vsel %vm437, %v2353, %v2478
      %v2604 = vsel %vm437, %v2352, %v2480
      %v2605 = vsel %vm437, %v2351, %v2482
      %v2606 = vsel %vm437, %v2350, %v2484
      %v2607 = vsel %vm437, %v2349, %v2486
      %v2608 = vsel %vm437, %v2364, %v2488
      %v2609 = vsel %vm437, %v2284, %v2522
      %v2610 = vsel %vm437, %v2285, %v2524
      %v2611 = vsel %vm437, %v2286, %v2526
      %v2612 = vsel %vm437, %v2287, %v2528
      %v2613 = vsel %vm437, %v2288, %v2530
      %v2614 = vsel %vm437, %v2289, %v2532
      %v2615 = vsel %vm437, %v2290, %v2534
      %v2616 = vsel %vm437, %v2291, %v2536
      %v2617 = vsel %vm437, %v2292, %v2538
      %v2618 = vsel %vm437, %v2293, %v2540
      %v2619 = vsel %vm437, %v2294, %v2542
      %v2620 = vsel %vm437, %v2295, %v2544
      %v2621 = vsel %vm437, %v2296, %v2546
      %v2622 = vsel %vm437, %v2297, %v2548
      %v2623 = vsel %vm437, %v2298, %v2550
      %v2624 = vsel %vm437, %v2299, %v2552
      %v2625 = vsel %vm437, %v2373, %v2398
      %v2626 = vsel %vm437, %v2366, %v2572
      %v2627 = vsel %vm437, %v2372, %v2574
      %v2628 = vpack.c.bf16 %v2578, %v2577
      %v2629 = vpack.c.bf16 %v2594, %v2593
      %v2630 = vpack.c.bf16 %v2610, %v2609
      %v2631 = vpack.c.bf16 %v2580, %v2625
      %v2632 = vpack.c.bf16 %v2360, %v2361
      %v2633 = vpack.c.bf16 %v2580, %v2579
      %v2634 = vpack.c.bf16 %v2596, %v2595
      %v2635 = vpack.c.bf16 %v2612, %v2611
      %v2636 = vpack.c.bf16 %v2582, %v2581
      %v2637 = vpack.c.bf16 %v2358, %v2359
      %v2638 = vpack.c.bf16 %v2598, %v2597
      %v2639 = vpack.c.bf16 %v2614, %v2613
      %v2640 = vpack.c.bf16 %v2584, %v2583
      %v2641 = vpack.c.bf16 %v2356, %v2357
      %v2642 = vpack.c.bf16 %v2600, %v2599
      %v2643 = vpack.c.bf16 %v2616, %v2615
      %v2644 = vpack.c.bf16 %v2586, %v2585
      %v2645 = vpack.c.bf16 %v2354, %v2355
      %v2646 = vpack.c.bf16 %v2602, %v2601
      %v2647 = vpack.c.bf16 %v2618, %v2617
      %v2648 = vpack.c.bf16 %v2588, %v2587
      %v2649 = vpack.c.bf16 %v2352, %v2353
      %v2650 = vpack.c.bf16 %v2604, %v2603
      %v2651 = vpack.c.bf16 %v2620, %v2619
      %v2652 = vpack.c.bf16 %v2590, %v2589
      %v2653 = vpack.c.bf16 %v2350, %v2351
      %v2654 = vpack.c.bf16 %v2606, %v2605
      %v2655 = vpack.c.bf16 %v2622, %v2621
      %v2656 = vpack.c.bf16 %v2592, %v2591
      %v2657 = vpack.c.bf16 %v2369, %v2349
      %v2658 = vpack.c.bf16 %v2608, %v2607
      %v2659 = vpack.c.bf16 %v2624, %v2623
      %v2660 = vpack.c.bf16 %v2627, %v2626
      %v2661 = vpack.c.bf16 %v2376, %v2375
      %v2662 = vld [vmem:[%s5 + $0x120] sm:$0xf]
      %v2663 = vld [vmem:[%s5 + $0x124] sm:$0xf]
      %v2664 = vld [vmem:[%s5 + $0x128] sm:$0xf]
      %v2665 = vld [vmem:[%s5 + $0x12c] sm:$0xf]
      %v2666 = vld [vmem:[%s5 + $0x130] sm:$0xf]
      %v2667 = vld [vmem:[%s5 + $0x134] sm:$0xf]
      %v2668 = vld [vmem:[%s5 + $0x138] sm:$0xf]
      %v2669 = vld [vmem:[%s5 + $0x13c] sm:$0xf]
      %v2670 = vld [vmem:[%s5 + $0x140] sm:$0xf]
      %v2671 = vld [vmem:[%s5 + $0x144] sm:$0xf]
      %v2672 = vld [vmem:[%s5 + $0x148] sm:$0xf]
      %v2673 = vld [vmem:[%s5 + $0x14c] sm:$0xf]
      %v2674 = vld [vmem:[%s5 + $0x150] sm:$0xf]
      %v2675 = vld [vmem:[%s5 + $0x154] sm:$0xf]
      %v2676 = vld [vmem:[%s5 + $0x158] sm:$0xf]
      %v2677 = vld [vmem:[%s5 + $0x15c] sm:$0xf]
      %v2678 = vld [vmem:[%s5 + $0x160] sm:$0xf]
      %v2679 = vld [vmem:[%s5 + $0x164] sm:$0xf]
      %v2680 = vld [vmem:[%s5 + $0x168] sm:$0xf]
      %v2681 = vld [vmem:[%s5 + $0x16c] sm:$0xf]
      %v2682 = vld [vmem:[%s5 + $0x170] sm:$0xf]
      %v2683 = vld [vmem:[%s5 + $0x174] sm:$0xf]
      %v2684 = vld [vmem:[%s5 + $0x178] sm:$0xf]
      %v2685 = vld [vmem:[%s5 + $0x17c] sm:$0xf]
      %v2686 = vld [vmem:[%s5 + $0x180] sm:$0xf]
      %v2687 = vld [vmem:[%s5 + $0x184] sm:$0xf]
      %v2688 = vld [vmem:[%s5 + $0x188] sm:$0xf]
      %v2689 = vld [vmem:[%s5 + $0x18c] sm:$0xf]
      %v2690 = vld [vmem:[%s5 + $0x190] sm:$0xf]
      %v2691 = vld [vmem:[%s5 + $0x194] sm:$0xf]
      %v2692 = vld [vmem:[%s5 + $0x198] sm:$0xf]
      %v2693 = vld [vmem:[%s5 + $0x19c] sm:$0xf]
      %v2694 = vld [vmem:[%s5 + $0x1a0] sm:$0xf]
      %v2695 = vld [vmem:[%s5 + $0x1a4] sm:$0xf]
      %v2696 = vld [vmem:[%s5 + $0x1a8] sm:$0xf]
      %v2697 = vld [vmem:[%s5 + $0x1ac] sm:$0xf]
      %v2698 = vld [vmem:[%s5 + $0x1b0] sm:$0xf]
      %v2699 = vld [vmem:[%s5 + $0x1b4] sm:$0xf]
      %v2700 = vld [vmem:[%s5 + $0x1b8] sm:$0xf]
      %v2701 = vld [vmem:[%s5 + $0x1bc] sm:$0xf]
      %v2702 = vld [vmem:[%s5 + $0x1c0] sm:$0xf]
      %v2703 = vld [vmem:[%s5 + $0x1c4] sm:$0xf]
      %v2704 = vld [vmem:[%s5 + $0x1c8] sm:$0xf]
      %v2705 = vld [vmem:[%s5 + $0x1cc] sm:$0xf]
      %v2706 = vld [vmem:[%s5 + $0x1d0] sm:$0xf]
      %v2707 = vld [vmem:[%s5 + $0x1d4] sm:$0xf]
      %v2708 = vld [vmem:[%s5 + $0x1d8] sm:$0xf]
      %v2709 = vld [vmem:[%s5 + $0x1dc] sm:$0xf]
      %v2710 = vld [vmem:[%s5 + $0x1e0] sm:$0xf]
      %v2711 = vld [vmem:[%s5 + $0x1e4] sm:$0xf]
      %v2712 = vld [vmem:[%s5 + $0x1e8] sm:$0xf]
      %v2713 = vld [vmem:[%s5 + $0x1ec] sm:$0xf]
      %v2714 = vld [vmem:[%s5 + $0x1f0] sm:$0xf]
      %v2715 = vld [vmem:[%s5 + $0x1f4] sm:$0xf]
      %v2716 = vld [vmem:[%s5 + $0x1f8] sm:$0xf]
      %v2717 = vld [vmem:[%s5 + $0x1fc] sm:$0xf]
      %v2718 = vld [vmem:[%s5 + $0x200] sm:$0xf]
      %v2719 = vld [vmem:[%s5 + $0x204] sm:$0xf]
      %v2720 = vld [vmem:[%s5 + $0x208] sm:$0xf]
      %v2721 = vld [vmem:[%s5 + $0x20c] sm:$0xf]
      %v2722 = vld [vmem:[%s5 + $0x210] sm:$0xf]
      %v2723 = vld [vmem:[%s5 + $0x214] sm:$0xf]
      %v2724 = vld [vmem:[%s5 + $0x218] sm:$0xf]
      %v2725 = vld [vmem:[%s5 + $0x21c] sm:$0xf]
      %v2726 = vld [vmem:[%s5 + $0x220] sm:$0xf]
      %v2727 = vld [vmem:[%s5 + $0x224] sm:$0xf]
      %v2728 = vld [vmem:[%s5 + $0x228] sm:$0xf]
      %v2729 = vld [vmem:[%s5 + $0x22c] sm:$0xf]
      %v2730 = vld [vmem:[%s5 + $0x230] sm:$0xf]
      %v2731 = vld [vmem:[%s5 + $0x234] sm:$0xf]
      %v2732 = vld [vmem:[%s5 + $0x238] sm:$0xf]
      %v2733 = vld [vmem:[%s5 + $0x23c] sm:$0xf]
      %v2806 = vunpack.c.l.b16 %v2662
      %v2807 = vunpack.c.l.b16 %v2663
      %v2808 = vunpack.c.l.b16 %v2664
      %v2809 = vunpack.c.l.b16 %v2665
      %v2810 = vunpack.c.l.b16 %v2666
      %v2811 = vunpack.c.l.b16 %v2667
      %v2812 = vunpack.c.l.b16 %v2668
      %v2813 = vunpack.c.l.b16 %v2669
      %v2814 = vunpack.c.l.b16 %v2670
      %v2815 = vunpack.c.l.b16 %v2671
      %v2816 = vunpack.c.l.b16 %v2672
      %v2817 = vunpack.c.l.b16 %v2673
      %v2818 = vunpack.c.l.b16 %v2674
      %v2819 = vunpack.c.l.b16 %v2675
      %v2820 = vunpack.c.l.b16 %v2676
      %v2821 = vunpack.c.l.b16 %v2677
      %v2822 = vunpack.c.l.b16 %v2678
      %v2823 = vunpack.c.l.b16 %v2679
      %v2824 = vunpack.c.l.b16 %v2680
      %v2825 = vunpack.c.l.b16 %v2681
      %v2826 = vunpack.c.l.b16 %v2682
      %v2827 = vunpack.c.l.b16 %v2683
      %v2828 = vunpack.c.l.b16 %v2684
      %v2829 = vunpack.c.l.b16 %v2685
      %v2830 = vunpack.c.l.b16 %v2686
      %v2831 = vunpack.c.l.b16 %v2687
      %v2832 = vunpack.c.l.b16 %v2688
      %v2833 = vunpack.c.l.b16 %v2689
      %v2834 = vunpack.c.l.b16 %v2690
      %v2835 = vunpack.c.l.b16 %v2691
      %v2836 = vunpack.c.l.b16 %v2692
      %v2837 = vunpack.c.l.b16 %v2693
      %v2838 = vunpack.c.l.b16 %v2694
      %v2839 = vunpack.c.l.b16 %v2695
      %v2840 = vunpack.c.l.b16 %v2696
      %v2841 = vunpack.c.l.b16 %v2697
      %v2842 = vunpack.c.l.b16 %v2698
      %v2843 = vunpack.c.l.b16 %v2699
      %v2844 = vunpack.c.l.b16 %v2700
      %v2845 = vunpack.c.l.b16 %v2701
      %v2846 = vunpack.c.l.b16 %v2702
      %v2847 = vunpack.c.l.b16 %v2703
      %v2848 = vunpack.c.l.b16 %v2704
      %v2849 = vunpack.c.l.b16 %v2705
      %v2850 = vunpack.c.l.b16 %v2706
      %v2851 = vunpack.c.l.b16 %v2707
      %v2852 = vunpack.c.l.b16 %v2708
      %v2853 = vunpack.c.l.b16 %v2709
      %v2854 = vunpack.c.l.b16 %v2710
      %v2855 = vunpack.c.l.b16 %v2711
      %v2856 = vunpack.c.l.b16 %v2712
      %v2857 = vunpack.c.l.b16 %v2713
      %v2858 = vunpack.c.l.b16 %v2714
      %v2859 = vunpack.c.l.b16 %v2715
      %v2860 = vunpack.c.l.b16 %v2716
      %v2861 = vunpack.c.l.b16 %v2717
      %v2862 = vunpack.c.l.b16 %v2718
      %v2863 = vunpack.c.l.b16 %v2719
      %v2864 = vunpack.c.l.b16 %v2720
      %v2865 = vunpack.c.l.b16 %v2721
      %v2866 = vunpack.c.l.b16 %v2722
      %v2867 = vunpack.c.l.b16 %v2723
      %v2868 = vunpack.c.l.b16 %v2724
      %v2869 = vunpack.c.l.b16 %v2725
      %v2870 = vunpack.c.l.b16 %v2726
      %v2871 = vunpack.c.l.b16 %v2727
      %v2872 = vunpack.c.l.b16 %v2728
      %v2873 = vunpack.c.l.b16 %v2729
      %v2874 = vunpack.c.l.b16 %v2730
      %v2875 = vunpack.c.l.b16 %v2731
      %v2876 = vunpack.c.l.b16 %v2732
      %v2877 = vunpack.c.l.b16 %v2733
      %v2878 = vpack.c.b16 %v2807, %v2806
      %v2879 = vpack.c.b16 %v2809, %v2808
      %v2880 = vpack.c.b16 %v2811, %v2810
      %v2881 = vpack.c.b16 %v2813, %v2812
      %v2882 = vpack.c.b16 %v2815, %v2814
      %v2883 = vpack.c.b16 %v2817, %v2816
      %v2884 = vpack.c.b16 %v2819, %v2818
      %v2885 = vpack.c.b16 %v2821, %v2820
      %v2886 = vpack.c.b16 %v2823, %v2822
      %v2887 = vpack.c.b16 %v2825, %v2824
      %v2888 = vpack.c.b16 %v2827, %v2826
      %v2889 = vpack.c.b16 %v2829, %v2828
      %v2890 = vpack.c.b16 %v2831, %v2830
      %v2891 = vpack.c.b16 %v2833, %v2832
      %v2892 = vpack.c.b16 %v2835, %v2834
      %v2893 = vpack.c.b16 %v2837, %v2836
      %v2894 = vpack.c.b16 %v2839, %v2838
      %v2895 = vpack.c.b16 %v2841, %v2840
      %v2896 = vpack.c.b16 %v2843, %v2842
      %v2897 = vpack.c.b16 %v2845, %v2844
      %v2898 = vpack.c.b16 %v2847, %v2846
      %v2899 = vpack.c.b16 %v2849, %v2848
      %v2900 = vpack.c.b16 %v2851, %v2850
      %v2901 = vpack.c.b16 %v2853, %v2852
      %v2902 = vpack.c.b16 %v2855, %v2854
      %v2903 = vpack.c.b16 %v2857, %v2856
      %v2904 = vpack.c.b16 %v2859, %v2858
      %v2905 = vpack.c.b16 %v2861, %v2860
      %v2906 = vpack.c.b16 %v2863, %v2862
      %v2907 = vpack.c.b16 %v2865, %v2864
      %v2908 = vpack.c.b16 %v2867, %v2866
      %v2909 = vpack.c.b16 %v2869, %v2868
      %v2910 = vpack.c.b16 %v2871, %v2870
      %v2911 = vpack.c.b16 %v2873, %v2872
      %v2912 = vpack.c.b16 %v2875, %v2874
      %v2913 = vpack.c.b16 %v2877, %v2876
      %v2951 = vsel %vm437, %v2632, 0
      %v2954 = vsel %vm437, %v2637, 0
      %v2957 = vsel %vm437, %v2641, 0
      %v2960 = vsel %vm437, %v2645, 0
      %v2963 = vsel %vm437, %v2649, 0
      %v2966 = vsel %vm437, %v2653, 0
      %v2969 = vsel %vm437, %v2657, 0
      %v2972 = vsel %vm437, %v2661, 0
      %2974 = vmatpush.bf16.msra.mxu0 %v2885
      %2975 = vmatpush.bf16.msra.mxu0 %v2884
      %2976 = vmatpush.bf16.msra.mxu0 %v2883
      %2977 = vmatpush.bf16.msra.mxu0 %v2882
      %2978 = vmatpush.bf16.msra.mxu0 %v2881
      %2979 = vmatpush.bf16.msra.mxu0 %v2880
      %2980 = vmatpush.bf16.msra.mxu0 %v2879
      %2981 = vmatpush.bf16.msra.mxu0 %v2878
      %2982 = vmatmul.bf16.gmra.mxu0 %v2628
      %v2983 = vpop.f32.mrf.mxu0
      %v2984 = vadd.f32 0.0, %v2983
      %v2985 = vpop.f32.mrf.mxu0
      %v2986 = vadd.f32 0.0, %v2985
      %2987 = vmatmul.bf16.gmra.mxu0 %v2633
      %v2988 = vpop.f32.mrf.mxu0
      %v2989 = vadd.f32 0.0, %v2988
      %v2990 = vpop.f32.mrf.mxu0
      %v2991 = vadd.f32 0.0, %v2990
      %2992 = vmatmul.bf16.gmra.mxu0 %v2636
      %v2993 = vpop.f32.mrf.mxu0
      %v2994 = vadd.f32 0.0, %v2993
      %v2995 = vpop.f32.mrf.mxu0
      %v2996 = vadd.f32 0.0, %v2995
      %2997 = vmatmul.bf16.gmra.mxu0 %v2640
      %v2998 = vpop.f32.mrf.mxu0
      %v2999 = vadd.f32 0.0, %v2998
      %v3000 = vpop.f32.mrf.mxu0
      %v3001 = vadd.f32 0.0, %v3000
      %3002 = vmatmul.bf16.gmra.mxu0 %v2644
      %v3003 = vpop.f32.mrf.mxu0
      %v3004 = vadd.f32 0.0, %v3003
      %v3005 = vpop.f32.mrf.mxu0
      %v3006 = vadd.f32 0.0, %v3005
      %3007 = vmatmul.bf16.gmra.mxu0 %v2648
      %v3008 = vpop.f32.mrf.mxu0
      %v3009 = vadd.f32 0.0, %v3008
      %v3010 = vpop.f32.mrf.mxu0
      %v3011 = vadd.f32 0.0, %v3010
      %3012 = vmatmul.bf16.gmra.mxu0 %v2652
      %v3013 = vpop.f32.mrf.mxu0
      %v3014 = vadd.f32 0.0, %v3013
      %v3015 = vpop.f32.mrf.mxu0
      %v3016 = vadd.f32 0.0, %v3015
      %3017 = vmatmul.bf16.gmra.mxu0 %v2656
      %v3018 = vpop.f32.mrf.mxu0
      %v3019 = vadd.f32 0.0, %v3018
      %v3020 = vpop.f32.mrf.mxu0
      %v3021 = vadd.f32 0.0, %v3020
      %3022 = vdwg.mxu0
      %3023 = vmatpush.bf16.msra.mxu0 %v2893
      %3024 = vmatpush.bf16.msra.mxu0 %v2892
      %3025 = vmatpush.bf16.msra.mxu0 %v2891
      %3026 = vmatpush.bf16.msra.mxu0 %v2890
      %3027 = vmatpush.bf16.msra.mxu0 %v2889
      %3028 = vmatpush.bf16.msra.mxu0 %v2888
      %3029 = vmatpush.bf16.msra.mxu0 %v2887
      %3030 = vmatpush.bf16.msra.mxu0 %v2886
      %3031 = vmatmul.bf16.gmra.mxu0 %v2629
      %v3032 = vpop.f32.mrf.mxu0
      %v3033 = vadd.f32 %v2984, %v3032
      %v3034 = vpop.f32.mrf.mxu0
      %v3035 = vadd.f32 %v2986, %v3034
      %3036 = vmatmul.bf16.gmra.mxu0 %v2634
      %v3037 = vpop.f32.mrf.mxu0
      %v3038 = vadd.f32 %v2989, %v3037
      %v3039 = vpop.f32.mrf.mxu0
      %v3040 = vadd.f32 %v2991, %v3039
      %3041 = vmatmul.bf16.gmra.mxu0 %v2638
      %v3042 = vpop.f32.mrf.mxu0
      %v3043 = vadd.f32 %v2994, %v3042
      %v3044 = vpop.f32.mrf.mxu0
      %v3045 = vadd.f32 %v2996, %v3044
      %3046 = vmatmul.bf16.gmra.mxu0 %v2642
      %v3047 = vpop.f32.mrf.mxu0
      %v3048 = vadd.f32 %v2999, %v3047
      %v3049 = vpop.f32.mrf.mxu0
      %v3050 = vadd.f32 %v3001, %v3049
      %3051 = vmatmul.bf16.gmra.mxu0 %v2646
      %v3052 = vpop.f32.mrf.mxu0
      %v3053 = vadd.f32 %v3004, %v3052
      %v3054 = vpop.f32.mrf.mxu0
      %v3055 = vadd.f32 %v3006, %v3054
      %3056 = vmatmul.bf16.gmra.mxu0 %v2650
      %v3057 = vpop.f32.mrf.mxu0
      %v3058 = vadd.f32 %v3009, %v3057
      %v3059 = vpop.f32.mrf.mxu0
      %v3060 = vadd.f32 %v3011, %v3059
      %3061 = vmatmul.bf16.gmra.mxu0 %v2654
      %v3062 = vpop.f32.mrf.mxu0
      %v3063 = vadd.f32 %v3014, %v3062
      %v3064 = vpop.f32.mrf.mxu0
      %v3065 = vadd.f32 %v3016, %v3064
      %3066 = vmatmul.bf16.gmra.mxu0 %v2658
      %v3067 = vpop.f32.mrf.mxu0
      %v3068 = vadd.f32 %v3019, %v3067
      %v3069 = vpop.f32.mrf.mxu0
      %v3070 = vadd.f32 %v3021, %v3069
      %3071 = vdwg.mxu0
      %3072 = vmatpush.bf16.msra.mxu0 %v2901
      %3073 = vmatpush.bf16.msra.mxu0 %v2900
      %3074 = vmatpush.bf16.msra.mxu0 %v2899
      %3075 = vmatpush.bf16.msra.mxu0 %v2898
      %3076 = vmatpush.bf16.msra.mxu0 %v2897
      %3077 = vmatpush.bf16.msra.mxu0 %v2896
      %3078 = vmatpush.bf16.msra.mxu0 %v2895
      %3079 = vmatpush.bf16.msra.mxu0 %v2894
      %3080 = vmatmul.bf16.gmra.mxu0 %v2630
      %v3081 = vpop.f32.mrf.mxu0
      %v3082 = vadd.f32 %v3033, %v3081
      %v3083 = vpop.f32.mrf.mxu0
      %v3084 = vadd.f32 %v3035, %v3083
      %3085 = vmatmul.bf16.gmra.mxu0 %v2635
      %v3086 = vpop.f32.mrf.mxu0
      %v3087 = vadd.f32 %v3038, %v3086
      %v3088 = vpop.f32.mrf.mxu0
      %v3089 = vadd.f32 %v3040, %v3088
      %3090 = vmatmul.bf16.gmra.mxu0 %v2639
      %v3091 = vpop.f32.mrf.mxu0
      %v3092 = vadd.f32 %v3043, %v3091
      %v3093 = vpop.f32.mrf.mxu0
      %v3094 = vadd.f32 %v3045, %v3093
      %3095 = vmatmul.bf16.gmra.mxu0 %v2643
      %v3096 = vpop.f32.mrf.mxu0
      %v3097 = vadd.f32 %v3048, %v3096
      %v3098 = vpop.f32.mrf.mxu0
      %v3099 = vadd.f32 %v3050, %v3098
      %3100 = vmatmul.bf16.gmra.mxu0 %v2647
      %v3101 = vpop.f32.mrf.mxu0
      %v3102 = vadd.f32 %v3053, %v3101
      %v3103 = vpop.f32.mrf.mxu0
      %v3104 = vadd.f32 %v3055, %v3103
      %3105 = vmatmul.bf16.gmra.mxu0 %v2651
      %v3106 = vpop.f32.mrf.mxu0
      %v3107 = vadd.f32 %v3058, %v3106
      %v3108 = vpop.f32.mrf.mxu0
      %v3109 = vadd.f32 %v3060, %v3108
      %3110 = vmatmul.bf16.gmra.mxu0 %v2655
      %v3111 = vpop.f32.mrf.mxu0
      %v3112 = vadd.f32 %v3063, %v3111
      %v3113 = vpop.f32.mrf.mxu0
      %v3114 = vadd.f32 %v3065, %v3113
      %3115 = vmatmul.bf16.gmra.mxu0 %v2659
      %v3116 = vpop.f32.mrf.mxu0
      %v3117 = vadd.f32 %v3068, %v3116
      %v3118 = vpop.f32.mrf.mxu0
      %v3119 = vadd.f32 %v3070, %v3118
      %3120 = vdwg.mxu0
      %3121 = vmatpush.bf16.msra.mxu0 %v2909
      %3122 = vmatpush.bf16.msra.mxu0 %v2908
      %3123 = vmatpush.bf16.msra.mxu0 %v2907
      %3124 = vmatpush.bf16.msra.mxu0 %v2906
      %3125 = vmatpush.bf16.msra.mxu0 %v2905
      %3126 = vmatpush.bf16.msra.mxu0 %v2904
      %3127 = vmatpush.bf16.msra.mxu0 %v2903
      %3128 = vmatpush.bf16.msra.mxu0 %v2902
      %3129 = vmatmul.bf16.gmra.mxu0 %v2631
      %v3130 = vpop.f32.mrf.mxu0
      %v3131 = vadd.f32 %v3082, %v3130
      %v3132 = vpop.f32.mrf.mxu0
      %v3133 = vadd.f32 %v3084, %v3132
      %3134 = vmatmul.bf16.gmra.mxu0 %v2636
      %v3135 = vpop.f32.mrf.mxu0
      %v3136 = vadd.f32 %v3087, %v3135
      %v3137 = vpop.f32.mrf.mxu0
      %v3138 = vadd.f32 %v3089, %v3137
      %3139 = vmatmul.bf16.gmra.mxu0 %v2640
      %v3140 = vpop.f32.mrf.mxu0
      %v3141 = vadd.f32 %v3092, %v3140
      %v3142 = vpop.f32.mrf.mxu0
      %v3143 = vadd.f32 %v3094, %v3142
      %3144 = vmatmul.bf16.gmra.mxu0 %v2644
      %v3145 = vpop.f32.mrf.mxu0
      %v3146 = vadd.f32 %v3097, %v3145
      %v3147 = vpop.f32.mrf.mxu0
      %v3148 = vadd.f32 %v3099, %v3147
      %3149 = vmatmul.bf16.gmra.mxu0 %v2648
      %v3150 = vpop.f32.mrf.mxu0
      %v3151 = vadd.f32 %v3102, %v3150
      %v3152 = vpop.f32.mrf.mxu0
      %v3153 = vadd.f32 %v3104, %v3152
      %3154 = vmatmul.bf16.gmra.mxu0 %v2652
      %v3155 = vpop.f32.mrf.mxu0
      %v3156 = vadd.f32 %v3107, %v3155
      %v3157 = vpop.f32.mrf.mxu0
      %v3158 = vadd.f32 %v3109, %v3157
      %3159 = vmatmul.bf16.gmra.mxu0 %v2656
      %v3160 = vpop.f32.mrf.mxu0
      %v3161 = vadd.f32 %v3112, %v3160
      %v3162 = vpop.f32.mrf.mxu0
      %v3163 = vadd.f32 %v3114, %v3162
      %3164 = vmatmul.bf16.gmra.mxu0 %v2660
      %v3165 = vpop.f32.mrf.mxu0
      %v3166 = vadd.f32 %v3117, %v3165
      %v3167 = vpop.f32.mrf.mxu0
      %v3168 = vadd.f32 %v3119, %v3167
      %3169 = vdwg.mxu0
      %3170 = vmatpush.bf16.msra.mxu0 0
      %3171 = vmatpush.bf16.msra.mxu0 0
      %3172 = vmatpush.bf16.msra.mxu0 0
      %3173 = vmatpush.bf16.msra.mxu0 0
      %3174 = vmatpush.bf16.msra.mxu0 %v2913
      %3175 = vmatpush.bf16.msra.mxu0 %v2912
      %3176 = vmatpush.bf16.msra.mxu0 %v2911
      %3177 = vmatpush.bf16.msra.mxu0 %v2910
      %3178 = vmatmul.bf16.gmra.mxu0 %v2951
      %v3179 = vpop.f32.mrf.mxu0
      %v3180 = vadd.f32 %v3131, %v3179
      %v3181 = vpop.f32.mrf.mxu0
      %v3182 = vadd.f32 %v3133, %v3181
      %3183 = vmatmul.bf16.gmra.mxu0 %v2954
      %v3184 = vpop.f32.mrf.mxu0
      %v3185 = vadd.f32 %v3136, %v3184
      %v3186 = vpop.f32.mrf.mxu0
      %v3187 = vadd.f32 %v3138, %v3186
      %3188 = vmatmul.bf16.gmra.mxu0 %v2957
      %v3189 = vpop.f32.mrf.mxu0
      %v3190 = vadd.f32 %v3141, %v3189
      %v3191 = vpop.f32.mrf.mxu0
      %v3192 = vadd.f32 %v3143, %v3191
      %3193 = vmatmul.bf16.gmra.mxu0 %v2960
      %v3194 = vpop.f32.mrf.mxu0
      %v3195 = vadd.f32 %v3146, %v3194
      %v3196 = vpop.f32.mrf.mxu0
      %v3197 = vadd.f32 %v3148, %v3196
      %3198 = vmatmul.bf16.gmra.mxu0 %v2963
      %v3199 = vpop.f32.mrf.mxu0
      %v3200 = vadd.f32 %v3151, %v3199
      %v3201 = vpop.f32.mrf.mxu0
      %v3202 = vadd.f32 %v3153, %v3201
      %3203 = vmatmul.bf16.gmra.mxu0 %v2966
      %v3204 = vpop.f32.mrf.mxu0
      %v3205 = vadd.f32 %v3156, %v3204
      %v3206 = vpop.f32.mrf.mxu0
      %v3207 = vadd.f32 %v3158, %v3206
      %3208 = vmatmul.bf16.gmra.mxu0 %v2969
      %v3209 = vpop.f32.mrf.mxu0
      %v3210 = vadd.f32 %v3161, %v3209
      %v3211 = vpop.f32.mrf.mxu0
      %v3212 = vadd.f32 %v3163, %v3211
      %3213 = vmatmul.bf16.gmra.mxu0 %v2972
      %v3214 = vpop.f32.mrf.mxu0
      %v3215 = vadd.f32 %v3166, %v3214
      %v3216 = vpop.f32.mrf.mxu0
      %v3217 = vadd.f32 %v3168, %v3216
      %3218 = vdwg.mxu0
      %v3219 = vld [vmem:[%s6 + $0x2] sm:$0x1]
      %v3220 = vld [vmem:[%s6 + $0x3] sm:$0x1]
      %v3221 = vperm.slane %v3219, 0
      %v3222 = vmul.f32 %v3180, %v3221
      %v3223 = vmul.f32 %v3182, %v3221
      %v3224 = vmul.f32 %v3185, %v3221
      %v3225 = vmul.f32 %v3187, %v3221
      %v3226 = vmul.f32 %v3190, %v3221
      %v3227 = vmul.f32 %v3192, %v3221
      %v3228 = vmul.f32 %v3195, %v3221
      %v3229 = vmul.f32 %v3197, %v3221
      %v3230 = vmul.f32 %v3200, %v3221
      %v3231 = vmul.f32 %v3202, %v3221
      %v3232 = vmul.f32 %v3205, %v3221
      %v3233 = vmul.f32 %v3207, %v3221
      %v3234 = vmul.f32 %v3210, %v3221
      %v3235 = vmul.f32 %v3212, %v3221
      %v3236 = vmul.f32 %v3215, %v3221
      %v3237 = vmul.f32 %v3217, %v3221
      %v3238 = vperm.slane %v3220, 0
      %v3239 = vadd.f32 %v3222, %v3238
      %v3240 = vadd.f32 %v3223, %v3238
      %v3241 = vadd.f32 %v3224, %v3238
      %v3242 = vadd.f32 %v3225, %v3238
      %v3243 = vadd.f32 %v3226, %v3238
      %v3244 = vadd.f32 %v3227, %v3238
      %v3245 = vadd.f32 %v3228, %v3238
      %v3246 = vadd.f32 %v3229, %v3238
      %v3247 = vadd.f32 %v3230, %v3238
      %v3248 = vadd.f32 %v3231, %v3238
      %v3249 = vadd.f32 %v3232, %v3238
      %v3250 = vadd.f32 %v3233, %v3238
      %v3251 = vadd.f32 %v3234, %v3238
      %v3252 = vadd.f32 %v3235, %v3238
      %v3253 = vadd.f32 %v3236, %v3238
      %v3254 = vadd.f32 %v3237, %v3238
      %v3255 = vmax.f32 %v3239, 0.0
      %v3256 = vmax.f32 %v3240, 0.0
      %v3257 = vmax.f32 %v3241, 0.0
      %v3258 = vmax.f32 %v3242, 0.0
      %v3259 = vmax.f32 %v3243, 0.0
      %v3260 = vmax.f32 %v3244, 0.0
      %v3261 = vmax.f32 %v3245, 0.0
      %v3262 = vmax.f32 %v3246, 0.0
      %v3263 = vmax.f32 %v3247, 0.0
      %v3264 = vmax.f32 %v3248, 0.0
      %v3265 = vmax.f32 %v3249, 0.0
      %v3266 = vmax.f32 %v3250, 0.0
      %v3267 = vmax.f32 %v3251, 0.0
      %v3268 = vmax.f32 %v3252, 0.0
      %v3269 = vmax.f32 %v3253, 0.0
      %v3270 = vmax.f32 %v3254, 0.0
      %v3271 = vld [vmem:[%s431 + $0x1] sm:$0x1]
      %v3273 = vperm.slane %v3271, 0
      %v3275 = vmul.f32 %v3255, %v3273
      %v3276 = vmul.f32 %v3256, %v3273
      %v3277 = vmul.f32 %v3257, %v3273
      %v3278 = vmul.f32 %v3258, %v3273
      %v3279 = vmul.f32 %v3259, %v3273
      %v3280 = vmul.f32 %v3260, %v3273
      %v3281 = vmul.f32 %v3261, %v3273
      %v3282 = vmul.f32 %v3262, %v3273
      %v3283 = vmul.f32 %v3263, %v3273
      %v3284 = vmul.f32 %v3264, %v3273
      %v3285 = vmul.f32 %v3265, %v3273
      %v3286 = vmul.f32 %v3266, %v3273
      %v3287 = vmul.f32 %v3267, %v3273
      %v3288 = vmul.f32 %v3268, %v3273
      %v3289 = vmul.f32 %v3269, %v3273
      %v3290 = vmul.f32 %v3270, %v3273
      %v3291 = vadd.f32 %v3275, %v2284
      %v3292 = vadd.f32 %v3276, %v2285
      %v3293 = vadd.f32 %v3277, %v2286
      %v3294 = vadd.f32 %v3278, %v2287
      %v3295 = vadd.f32 %v3279, %v2288
      %v3296 = vadd.f32 %v3280, %v2289
      %v3297 = vadd.f32 %v3281, %v2290
      %v3298 = vadd.f32 %v3282, %v2291
      %v3299 = vadd.f32 %v3283, %v2292
      %v3300 = vadd.f32 %v3284, %v2293
      %v3301 = vadd.f32 %v3285, %v2294
      %v3302 = vadd.f32 %v3286, %v2295
      %v3303 = vadd.f32 %v3287, %v2296
      %v3304 = vadd.f32 %v3288, %v2297
      %v3305 = vadd.f32 %v3289, %v2298
      %v3306 = vadd.f32 %v3290, %v2299
      %v3307 = vld [vmem:[%s7] sm:$0xff]
      %v3308 = vld [vmem:[%s7 + $0x8] sm:$0xff]
      %v3309 = vld [vmem:[%s7 + $0x10] sm:$0xff]
      %v3310 = vld [vmem:[%s7 + $0x18] sm:$0xff]
      %v3311 = vld [vmem:[%s7 + $0x20] sm:$0xff]
      %v3312 = vld [vmem:[%s7 + $0x28] sm:$0xff]
      %v3313 = vld [vmem:[%s7 + $0x30] sm:$0xff]
      %v3314 = vld [vmem:[%s7 + $0x38] sm:$0xff]
      %v3315 = vld [vmem:[%s7 + $0x40] sm:$0xff]
      %v3316 = vld [vmem:[%s7 + $0x48] sm:$0xff]
      %v3317 = vld [vmem:[%s7 + $0x50] sm:$0xff]
      %v3318 = vld [vmem:[%s7 + $0x58] sm:$0xff]
      %v3319 = vld [vmem:[%s7 + $0x60] sm:$0xff]
      %v3320 = vld [vmem:[%s7 + $0x68] sm:$0xff]
      %v3321 = vld [vmem:[%s7 + $0x70] sm:$0xff]
      %v3322 = vld [vmem:[%s7 + $0x78] sm:$0xff]
      %3324 = vset.pattern.permute.xlu0 0
      %3325 = vperm.xlu0 %3324, %v3307
      %v3326 = vpop.permute.xlu0 %3325
      %3329 = vset.pattern.permute.xlu0 0
      %3330 = vperm.xlu0 %3329, %v3308
      %v3331 = vpop.permute.xlu0 %3330
      %3334 = vset.pattern.permute.xlu0 0
      %3335 = vperm.xlu0 %3334, %v3309
      %v3336 = vpop.permute.xlu0 %3335
      %3339 = vset.pattern.permute.xlu0 0
      %3340 = vperm.xlu0 %3339, %v3310
      %v3341 = vpop.permute.xlu0 %3340
      %3344 = vset.pattern.permute.xlu0 0
      %3345 = vperm.xlu0 %3344, %v3311
      %v3346 = vpop.permute.xlu0 %3345
      %3349 = vset.pattern.permute.xlu0 0
      %3350 = vperm.xlu0 %3349, %v3312
      %v3351 = vpop.permute.xlu0 %3350
      %3354 = vset.pattern.permute.xlu0 0
      %3355 = vperm.xlu0 %3354, %v3313
      %v3356 = vpop.permute.xlu0 %3355
      %3359 = vset.pattern.permute.xlu0 0
      %3360 = vperm.xlu0 %3359, %v3314
      %v3361 = vpop.permute.xlu0 %3360
      %3364 = vset.pattern.permute.xlu0 0
      %3365 = vperm.xlu0 %3364, %v3315
      %v3366 = vpop.permute.xlu0 %3365
      %3369 = vset.pattern.permute.xlu0 0
      %3370 = vperm.xlu0 %3369, %v3316
      %v3371 = vpop.permute.xlu0 %3370
      %3374 = vset.pattern.permute.xlu0 0
      %3375 = vperm.xlu0 %3374, %v3317
      %v3376 = vpop.permute.xlu0 %3375
      %3379 = vset.pattern.permute.xlu0 0
      %3380 = vperm.xlu0 %3379, %v3318
      %v3381 = vpop.permute.xlu0 %3380
      %3384 = vset.pattern.permute.xlu0 0
      %3385 = vperm.xlu0 %3384, %v3319
      %v3386 = vpop.permute.xlu0 %3385
      %3389 = vset.pattern.permute.xlu0 0
      %3390 = vperm.xlu0 %3389, %v3320
      %v3391 = vpop.permute.xlu0 %3390
      %3394 = vset.pattern.permute.xlu0 0
      %3395 = vperm.xlu0 %3394, %v3321
      %v3396 = vpop.permute.xlu0 %3395
      %3399 = vset.pattern.permute.xlu0 0
      %3400 = vperm.xlu0 %3399, %v3322
      %v3401 = vpop.permute.xlu0 %3400
      %v3403 = vmul.f32 %v3291, %v3326
      %v3404 = vmul.f32 %v3292, %v3331
      %v3405 = vmul.f32 %v3293, %v3336
      %v3406 = vmul.f32 %v3294, %v3341
      %v3407 = vmul.f32 %v3295, %v3346
      %v3408 = vmul.f32 %v3296, %v3351
      %v3409 = vmul.f32 %v3297, %v3356
      %v3410 = vmul.f32 %v3298, %v3361
      %v3411 = vmul.f32 %v3299, %v3366
      %v3412 = vmul.f32 %v3300, %v3371
      %v3413 = vmul.f32 %v3301, %v3376
      %v3414 = vmul.f32 %v3302, %v3381
      %v3415 = vmul.f32 %v3303, %v3386
      %v3416 = vmul.f32 %v3304, %v3391
      %v3417 = vmul.f32 %v3305, %v3396
      %v3418 = vmul.f32 %v3306, %v3401
      %3419 = vst.msk [vmem:[#allocation2 + $0x8] sm:$0xff] %vm437, %v3403
      %3420 = vst.msk [vmem:[#allocation2 + $0x10] sm:$0xff] %vm437, %v3404
      %3421 = vst.msk [vmem:[#allocation2 + $0x18] sm:$0xff] %vm437, %v3405
      %3422 = vst.msk [vmem:[#allocation2 + $0x20] sm:$0xff] %vm437, %v3406
      %3423 = vst.msk [vmem:[#allocation2 + $0x28] sm:$0xff] %vm437, %v3407
      %3424 = vst.msk [vmem:[#allocation2 + $0x30] sm:$0xff] %vm437, %v3408
      %3425 = vst.msk [vmem:[#allocation2 + $0x38] sm:$0xff] %vm437, %v3409
      %3426 = vst.msk [vmem:[#allocation2 + $0x40] sm:$0xff] %vm437, %v3410
      %3427 = vst.msk [vmem:[#allocation2 + $0x48] sm:$0xff] %vm437, %v3411
      %3428 = vst.msk [vmem:[#allocation2 + $0x50] sm:$0xff] %vm437, %v3412
      %3429 = vst.msk [vmem:[#allocation2 + $0x58] sm:$0xff] %vm437, %v3413
      %3430 = vst.msk [vmem:[#allocation2 + $0x60] sm:$0xff] %vm437, %v3414
      %3431 = vst.msk [vmem:[#allocation2 + $0x68] sm:$0xff] %vm437, %v3415
      %3432 = vst.msk [vmem:[#allocation2 + $0x70] sm:$0xff] %vm437, %v3416
      %3433 = vst.msk [vmem:[#allocation2 + $0x78] sm:$0xff] %vm437, %v3417
      %3434 = vst.msk [vmem:[#allocation2 + $0x80] sm:$0xff] %vm437, %v3418
      %v3435 = vld [vmem:[#allocation2 + $0x8] sm:$0xff]
      %v3436 = vld [vmem:[#allocation2 + $0x10] sm:$0xff]
      %v3437 = vld [vmem:[#allocation2 + $0x18] sm:$0xff]
      %v3438 = vld [vmem:[#allocation2 + $0x20] sm:$0xff]
      %v3439 = vld [vmem:[#allocation2 + $0x28] sm:$0xff]
      %v3440 = vld [vmem:[#allocation2 + $0x30] sm:$0xff]
      %v3441 = vld [vmem:[#allocation2 + $0x38] sm:$0xff]
      %v3442 = vld [vmem:[#allocation2 + $0x40] sm:$0xff]
      %v3443 = vld [vmem:[#allocation2 + $0x48] sm:$0xff]
      %v3444 = vld [vmem:[#allocation2 + $0x50] sm:$0xff]
      %v3445 = vld [vmem:[#allocation2 + $0x58] sm:$0xff]
      %v3446 = vld [vmem:[#allocation2 + $0x60] sm:$0xff]
      %v3447 = vld [vmem:[#allocation2 + $0x68] sm:$0xff]
      %v3448 = vld [vmem:[#allocation2 + $0x70] sm:$0xff]
      %v3449 = vld [vmem:[#allocation2 + $0x78] sm:$0xff]
      %v3450 = vld [vmem:[#allocation2 + $0x80] sm:$0xff]
      %v3451 = vld [vmem:[%s8] sm:$0xff]
      %3452 = vmatpush.msra.mxu0 %v3450
      %3453 = vmatpush.msra.mxu0 %v3449
      %3454 = vmatpush.msra.mxu0 %v3448
      %3455 = vmatpush.msra.mxu0 %v3447
      %3456 = vmatpush.msra.mxu0 %v3446
      %3457 = vmatpush.msra.mxu0 %v3445
      %3458 = vmatpush.msra.mxu0 %v3444
      %3459 = vmatpush.msra.mxu0 %v3443
      %3460 = vmatpush.msra.mxu0 %v3442
      %3461 = vmatpush.msra.mxu0 %v3441
      %3462 = vmatpush.msra.mxu0 %v3440
      %3463 = vmatpush.msra.mxu0 %v3439
      %3464 = vmatpush.msra.mxu0 %v3438
      %3465 = vmatpush.msra.mxu0 %v3437
      %3466 = vmatpush.msra.mxu0 %v3436
      %3467 = vmatpush.msra.mxu0 %v3435
      %3468 = vmatmul.f32.gmra.mxu0 %v3451
      %v3469 = vpop.f32.mrf.mxu0
      %v3470 = vadd.f32 0.0, %v3469
      %3471 = vdwg.mxu0
      %v3472 = vld [vmem:[%s9] sm:$0xff]
      %v3473 = vld [vmem:[%s9 + $0x8] sm:$0xff]
      %v3474 = vld [vmem:[%s9 + $0x10] sm:$0xff]
      %v3475 = vld [vmem:[%s9 + $0x18] sm:$0xff]
      %v3476 = vld [vmem:[%s9 + $0x20] sm:$0xff]
      %v3477 = vld [vmem:[%s9 + $0x28] sm:$0xff]
      %v3478 = vld [vmem:[%s9 + $0x30] sm:$0xff]
      %v3479 = vld [vmem:[%s9 + $0x38] sm:$0xff]
      %v3480 = vld [vmem:[%s10] sm:$0x1]
      %v3482 = vperm.slane %v3480, 0
      %v3485 = vsel %vm437, %v3470, 0
      %3487 = vmatpush.msra.mxu0 0.0
      %3488 = vmatpush.msra.mxu0 0.0
      %3489 = vmatpush.msra.mxu0 0.0
      %3490 = vmatpush.msra.mxu0 0.0
      %3491 = vmatpush.msra.mxu0 0.0
      %3492 = vmatpush.msra.mxu0 0.0
      %3493 = vmatpush.msra.mxu0 0.0
      %3494 = vmatpush.msra.mxu0 0.0
      %3495 = vmatpush.msra.mxu0 %v3479
      %3496 = vmatpush.msra.mxu0 %v3478
      %3497 = vmatpush.msra.mxu0 %v3477
      %3498 = vmatpush.msra.mxu0 %v3476
      %3499 = vmatpush.msra.mxu0 %v3475
      %3500 = vmatpush.msra.mxu0 %v3474
      %3501 = vmatpush.msra.mxu0 %v3473
      %3502 = vmatpush.msra.mxu0 %v3472
      %3503 = vmatmul.f32.gmra.mxu0 %v3485
      %v3504 = vpop.f32.mrf.mxu0
      %v3505 = vadd.f32 %v3482, %v3504
      %3506 = vdwg.mxu0
      %v3507 = vmax.f32 %v3505, 0.0
      %v3508 = vadd.f32 %v3507, %v3470
      %v3509 = vld [vmem:[%s11] sm:$0xff]
      %v3510 = vld [vmem:[%s11 + $0x8] sm:$0xff]
      %v3511 = vld [vmem:[%s11 + $0x10] sm:$0xff]
      %v3512 = vld [vmem:[%s11 + $0x18] sm:$0xff]
      %v3513 = vld [vmem:[%s11 + $0x20] sm:$0xff]
      %v3514 = vld [vmem:[%s11 + $0x28] sm:$0xff]
      %v3515 = vld [vmem:[%s11 + $0x30] sm:$0xff]
      %v3516 = vld [vmem:[%s11 + $0x38] sm:$0xff]
      %v3517 = vld [vmem:[%s12] sm:$0x1]
      %v3519 = vperm.slane %v3517, 0
      %v3522 = vsel %vm437, %v3508, 0
      %3524 = vmatpush.msra.mxu0 0.0
      %3525 = vmatpush.msra.mxu0 0.0
      %3526 = vmatpush.msra.mxu0 0.0
      %3527 = vmatpush.msra.mxu0 0.0
      %3528 = vmatpush.msra.mxu0 0.0
      %3529 = vmatpush.msra.mxu0 0.0
      %3530 = vmatpush.msra.mxu0 0.0
      %3531 = vmatpush.msra.mxu0 0.0
      %3532 = vmatpush.msra.mxu0 %v3516
      %3533 = vmatpush.msra.mxu0 %v3515
      %3534 = vmatpush.msra.mxu0 %v3514
      %3535 = vmatpush.msra.mxu0 %v3513
      %3536 = vmatpush.msra.mxu0 %v3512
      %3537 = vmatpush.msra.mxu0 %v3511
      %3538 = vmatpush.msra.mxu0 %v3510
      %3539 = vmatpush.msra.mxu0 %v3509
      %3540 = vmatmul.f32.gmra.mxu0 %v3522
      %v3541 = vpop.f32.mrf.mxu0
      %v3542 = vadd.f32 %v3519, %v3541
      %3543 = vdwg.mxu0
      %3544 = vst [vmem:[%s435] sm:$0xff] %v3542
      %p3545 = scmp.lt.s32.totalorder %s24, 1
      %s3546 = scalar_select %p3545, %s24, 1
      %s3547 = smul.addr %s3546, 8
      %s3548 = scalar_lea.vmem %s13, %s3547
      // Predicated region
      $region73: #{adaptive_convnet_forward.1} parent=71 // pred_check
        %p3549 = pneg %p320
      $region74: #{adaptive_convnet_forward.1} parent=71 // pred_check_branch
        %3551 = sbr.rel (%p3549) target = $region76
      $region75: #{adaptive_convnet_forward.1} parent=71 // pred_region
        _
      $region76: #{adaptive_convnet_forward.1} parent=71 // pred_fallthru
        _
    $region72: #{adaptive_convnet_forward.1} parent=5 // pred_fallthru
      _
    %p3552 = scmp.le.s32.totalorder 2, %s19
    // Predicated region
    $region77: #{adaptive_convnet_forward.1} parent=5 // pred_check
      %p3553 = pneg %p3552
    $region78: #{adaptive_convnet_forward.1} parent=5 // pred_check_branch
      %3555 = sbr.rel (%p3553) target = $region80
    $region79: #{adaptive_convnet_forward.1} parent=5 // pred_region
      %s3556 = ssub.s32 %s19, 2
      // Predicated region
      $region81: #{adaptive_convnet_forward.1} parent=79 // pred_check
        %p3557 = pneg %p326
      $region82: #{adaptive_convnet_forward.1} parent=79 // pred_check_branch
        %3559 = sbr.rel (%p3557) target = $region84
      $region83: #{adaptive_convnet_forward.1} parent=79 // pred_region
        %p3560 = scmp.lt.s32.totalorder %s25, 1
        %s3561 = scalar_select %p3560, %s25, 1
        %s3562 = smul.addr %s3561, 8
        %s3563 = scalar_lea.vmem %s13, %s3562
      $region84: #{adaptive_convnet_forward.1} parent=79 // pred_fallthru
        _
    $region80: #{adaptive_convnet_forward.1} parent=5 // pred_fallthru
      _
  $region6: #{adaptive_convnet_forward.1} parent=0 // loop_footer
    %s23 = sadd.s32 1, %s19
  $region7: #{adaptive_convnet_forward.1} parent=0 // loop_footer_branch
    %18 = sbr.rel target = $region3
  $region8: #{adaptive_convnet_forward.1} parent=0 // loop_exit
    _

</llo_original>
